<compile_context>
chip_gen: v5e
topology: v5e:2x2
jax: 0.10.0
libtpu: 0.0.40
codegen_flags: <defaults>
</compile_context>

<pallas_src>
import functools

import jax
import jax.numpy as jnp
from jax.experimental import pallas as pl
from jax.experimental.pallas import tpu as pltpu

_LANE = 128  # lane-chunk width for the fused conv -> relu -> pool stage


def _tsm_net_kernel(x_ref, wp_ref, wc_ref, wn_ref, b1_ref, w2_ref, b2_ref, o_ref,
                    *, num_frames, hw2p, block_clips, feature_dim, pool_scale):
    """One grid step processes `block_clips` clips, fully fused.

    x_ref : (2C, Bn*T*HW2p) f32  rows = (spatial-half, channel); lanes =
                                 (clip, frame, pixel-within-half)
    wp/wc/wn_ref : (F, C) f32    conv1x1 weights with the learnable-TSM blend folded in
    b1_ref: (F, 128)     f32     conv bias, pre-broadcast to the chunk width
    w2_ref: (F, Kp)      f32     new_fc weight, zero-padded to a 128-lane multiple
    b2_ref: (1, Kp)      f32     new_fc bias (pixel-padding correction folded in)
    o_ref : (Bn, Kp)     f32     per-clip logits (lane-dense)
    """
    T = num_frames
    HW2p = hw2p
    Bn = block_clips
    F = feature_dim
    C = wc_ref.shape[1]
    CW = _LANE
    nsub = HW2p // CW
    clip_lanes = T * HW2p

    def clip_body(b, pooled):
        base = b * clip_lanes                       # lane offset of clip b (x128)
        acc = jnp.zeros((F, CW), jnp.float32)       # 16 vregs; lives in registers
        for hh in range(2):                         # two spatial halves on sublanes
            rows = pl.ds(hh * C, C)
            for t in range(T):                      # static frame loop -> static TSM bounds
                for j in range(nsub):               # 128-lane sub-chunks of a frame-half
                    off = base + t * HW2p + j * CW
                    xc = x_ref[rows, pl.ds(pl.multiple_of(off, CW), CW)]
                    z = jnp.dot(wc_ref[...], xc,
                                preferred_element_type=jnp.float32)
                    if t > 0:                       # prev-frame TSM contribution
                        xp = x_ref[rows, pl.ds(pl.multiple_of(off - HW2p, CW), CW)]
                        z = z + jnp.dot(wp_ref[...], xp,
                                        preferred_element_type=jnp.float32)
                    if t < T - 1:                   # next-frame TSM contribution
                        xn = x_ref[rows, pl.ds(pl.multiple_of(off + HW2p, CW), CW)]
                        z = z + jnp.dot(wn_ref[...], xn,
                                        preferred_element_type=jnp.float32)
                    # bias + ReLU + pooled partial-sum, all in vregs
                    acc = acc + jnp.maximum(z + b1_ref[...], 0.0)
        s = jnp.sum(acc, axis=1, keepdims=True)     # (F, 1) per-clip pooled sum
        onehot = (jax.lax.broadcasted_iota(jnp.int32, (1, Bn), 1) == b
                  ).astype(jnp.float32)             # (1, Bn)
        return pooled + s * onehot

    pooled = jax.lax.fori_loop(0, Bn, clip_body,
                               jnp.zeros((F, Bn), jnp.float32))     # (F, Bn)

    # new_fc + average consensus over frames (mean folded into pool_scale):
    # one transposed-LHS MXU matmul, lane-dense (Bn, Kp) output.
    logits = jax.lax.dot_general(
        pooled, w2_ref[...],
        dimension_numbers=(((0,), (0,)), ((), ())),
        preferred_element_type=jnp.float32)                         # (Bn, Kp)
    o_ref[...] = (logits * pool_scale + b2_ref[...]).astype(o_ref.dtype)


def learnable_tsm_net_forward(x, params, num_frames, block_clips=32):
    n, c_t, h, w = x.shape
    T = num_frames
    assert c_t % T == 0
    C = c_t // T
    HW = h * w
    F = params["w1"].shape[1]
    K = params["w2"].shape[1]
    Kp = ((K + 127) // 128) * 128

    # Pad pixels so each of the two sublane-stacked halves is a 128-lane multiple.
    P2 = ((HW + 2 * _LANE - 1) // (2 * _LANE)) * (2 * _LANE)
    HW2p = P2 // 2

    # Clip block size: multiple of 8, big enough to amortize per-step overhead,
    # but keep >= 2 grid steps when the batch allows it (v7x has 2 TensorCores).
    Bn = max(8, ((block_clips + 7) // 8) * 8)
    while Bn > 8 and (n + Bn - 1) // Bn < 2:
        Bn = max(8, ((Bn // 2 + 7) // 8) * 8)
    n_pad = ((n + Bn - 1) // Bn) * Bn

    # ---- layout plumbing (XLA land): halves+channels fill the 8-sublane tile,
    # (clip, frame, pixel) flattened on lanes; no in-kernel transposes needed. ----
    xr = x.reshape(n, T, C, HW).astype(jnp.float32)
    xr = jnp.pad(xr, ((0, n_pad - n), (0, 0), (0, 0), (0, P2 - HW)))
    xr = xr.reshape(n_pad, T, C, 2, HW2p)
    x_all = jnp.transpose(xr, (3, 2, 0, 1, 4)).reshape(2 * C, n_pad * T * HW2p)

    # ---- fold the learnable TSM blend into the conv weights ----
    tsm = params["tsm"].astype(jnp.float32)              # (3, C): [prev, cur, next]
    w1 = params["w1"].astype(jnp.float32)                # (C, F)
    w_prev = jnp.transpose(w1 * tsm[0][:, None])         # (F, C)
    w_cur = jnp.transpose(w1 * tsm[1][:, None])
    w_next = jnp.transpose(w1 * tsm[2][:, None])
    b1 = params["b1"].astype(jnp.float32)
    b1b = jnp.broadcast_to(b1[:, None], (F, _LANE))      # pre-broadcast bias

    # new_fc (lane-padded).  Zero-padded pixels contribute relu(b1) per feature to
    # the pooled sum; fold the exact correction into the fc bias.
    w2 = params["w2"].astype(jnp.float32)
    b2 = params["b2"].astype(jnp.float32)
    b2_eff = b2 - ((P2 - HW) / HW) * (jnp.maximum(b1, 0.0) @ w2)
    w2p = jnp.zeros((F, Kp), jnp.float32).at[:, :K].set(w2)
    b2p = jnp.zeros((1, Kp), jnp.float32).at[0, :K].set(b2_eff)

    pool_scale = 1.0 / float(T * HW)                     # GAP + frame-mean combined

    kernel = functools.partial(
        _tsm_net_kernel, num_frames=T, hw2p=HW2p, block_clips=Bn,
        feature_dim=F, pool_scale=pool_scale)

    block_lanes = Bn * T * HW2p
    out = pl.pallas_call(
        kernel,
        out_shape=jax.ShapeDtypeStruct((n_pad, Kp), jnp.float32),
        grid=(n_pad // Bn,),
        in_specs=[
            pl.BlockSpec((2 * C, block_lanes), lambda g: (0, g)),   # x slab (clip block)
            pl.BlockSpec((F, C), lambda g: (0, 0)),                 # W_prev (TSM-folded)
            pl.BlockSpec((F, C), lambda g: (0, 0)),                 # W_cur
            pl.BlockSpec((F, C), lambda g: (0, 0)),                 # W_next
            pl.BlockSpec((F, _LANE), lambda g: (0, 0)),             # conv bias (broadcast)
            pl.BlockSpec((F, Kp), lambda g: (0, 0)),                # new_fc weight (padded)
            pl.BlockSpec((1, Kp), lambda g: (0, 0)),                # new_fc bias (padded)
        ],
        out_specs=pl.BlockSpec((Bn, Kp), lambda g: (g, 0)),
        compiler_params=pltpu.CompilerParams(
            dimension_semantics=("parallel",),      # clip blocks are independent
            vmem_limit_bytes=32 * 1024 * 1024),     # safe on v5e/v6e/v7x; usage ~2-3 MiB
    )(x_all, w_prev, w_cur, w_next, b1b, w2p, b2p)

    return out[:n, :K]


def reference_forward(x, params, num_frames):
    """Pure-JAX reference with identical math for correctness checking."""
    n, c_t, h, w = x.shape
    T = num_frames
    C = c_t // T
    xb = x.reshape(n, T, C, h * w).astype(jnp.float32)

    tsm = params["tsm"].astype(jnp.float32)                    # (3, C)
    wp = tsm[0].reshape(1, 1, C, 1)
    wc = tsm[1].reshape(1, 1, C, 1)
    wn = tsm[2].reshape(1, 1, C, 1)
    zeros = jnp.zeros_like(xb[:, :1])
    x_prev = jnp.concatenate([zeros, xb[:, :-1]], axis=1)
    x_next = jnp.concatenate([xb[:, 1:], zeros], axis=1)
    y = wc * xb + wp * x_prev + wn * x_next                    # (n, T, C, HW)

    z = jnp.einsum("ntch,cf->nthf", y, params["w1"].astype(jnp.float32),
                   precision=jax.lax.Precision.HIGHEST)        # (n, T, HW, F)
    z = jnp.maximum(z + params["b1"].reshape(1, 1, 1, -1), 0.0)
    feat = jnp.mean(z, axis=(1, 2))                            # GAP + frame mean
    logits = jnp.dot(feat, params["w2"].astype(jnp.float32),
                     precision=jax.lax.Precision.HIGHEST) + params["b2"].astype(jnp.float32)
    return logits                                              # (n, K)


if __name__ == "__main__":
    def make_case(case_key, n, T, C, h, w, F, K):
        kx, kt, k1, kb, k2 = jax.random.split(case_key, 5)
        x = jax.random.normal(kx, (n, T * C, h, w), dtype=jnp.float32)
        tsm = (jax.random.normal(kt, (3, C), dtype=jnp.float32) * 0.3
               + jnp.array([0.0, 1.0, 0.0], dtype=jnp.float32)[:, None])
        w1 = jax.random.normal(k1, (C, F), dtype=jnp.float32) * 0.5
        b1 = jax.random.normal(kb, (F,), dtype=jnp.float32) * 0.1
        w2 = jax.random.normal(k2, (F, K), dtype=jnp.float32) * 0.001  # nn.init.normal_(0, 0.001)
        b2 = jnp.zeros((K,), dtype=jnp.float32)                        # constant_(0)
        return x, {"tsm": tsm, "w1": w1, "b1": b1, "w2": w2, "b2": b2}

    key = jax.random.PRNGKey(0)
    ka, kb_ = jax.random.split(key)

    # Case 1: 12 clips x 8 frames, 4 ch/frame, 16x16 spatial.  Exercises clip
    # padding (n_pad=16) and a 2-step "parallel" grid.
    x, params = make_case(ka, n=12, T=8, C=4, h=16, w=16, F=128, K=16)
    out = jax.block_until_ready(learnable_tsm_net_forward(x, params, num_frames=8))
    ref = reference_forward(x, params, num_frames=8)
    assert out.shape == (12, 16), out.shape
    diff = float(jnp.max(jnp.abs(out - ref)))
    assert jnp.allclose(out, ref, atol=2e-4, rtol=2e-2), ("case1 max diff %e" % diff)

    # Case 2: non-128-aligned spatial (10x10 -> HW=100).  Exercises the zero-pixel
    # padding path and the folded bias correction.
    x, params = make_case(kb_, n=5, T=4, C=4, h=10, w=10, F=128, K=16)
    out = jax.block_until_ready(learnable_tsm_net_forward(x, params, num_frames=4))
    ref = reference_forward(x, params, num_frames=4)
    assert out.shape == (5, 16), out.shape
    diff = float(jnp.max(jnp.abs(out - ref)))
    assert jnp.allclose(out, ref, atol=2e-4, rtol=2e-2), ("case2 max diff %e" % diff)

    print("KERNEL_OK")
</pallas_src>

<mosaic_0001>
module attributes {stable_mosaic.version = 11 : i64} {
  func.func @_tsm_net_kernel(%arg0: i32, %arg1: memref<8x8192xf32, #tpu.memory_space<vmem>>, %arg2: memref<128x4xf32, #tpu.memory_space<vmem>>, %arg3: memref<128x4xf32, #tpu.memory_space<vmem>>, %arg4: memref<128x4xf32, #tpu.memory_space<vmem>>, %arg5: memref<128x128xf32, #tpu.memory_space<vmem>>, %arg6: memref<128x128xf32, #tpu.memory_space<vmem>>, %arg7: memref<1x128xf32, #tpu.memory_space<vmem>>, %arg8: memref<8x128xf32, #tpu.memory_space<vmem>>) attributes {dimension_semantics = [#tpu.dimension_semantics<parallel>], iteration_bounds = array<i64: 2>, scalar_prefetch = 0 : i64, scratch_operands = 0 : i64, tpu.core_type = #tpu.core_type<tc>, window_params = [{transform_indices = @transform_0, window_bounds = array<i64: 8, 8192>}, {pipeline_mode = #tpu.pipeline_mode<synchronous>, transform_indices = @transform_1, window_bounds = array<i64: 128, 4>}, {pipeline_mode = #tpu.pipeline_mode<synchronous>, transform_indices = @transform_2, window_bounds = array<i64: 128, 4>}, {pipeline_mode = #tpu.pipeline_mode<synchronous>, transform_indices = @transform_3, window_bounds = array<i64: 128, 4>}, {pipeline_mode = #tpu.pipeline_mode<synchronous>, transform_indices = @transform_4, window_bounds = array<i64: 128, 128>}, {pipeline_mode = #tpu.pipeline_mode<synchronous>, transform_indices = @transform_5, window_bounds = array<i64: 128, 128>}, {pipeline_mode = #tpu.pipeline_mode<synchronous>, transform_indices = @transform_6, window_bounds = array<i64: 1, 128>}, {transform_indices = @transform_7, window_bounds = array<i64: 8, 128>}]} {
    %cst = arith.constant 0.000000e+00 : f32
    %0 = vector.broadcast %cst : f32 to vector<128x8xf32>
    %c0_i32 = arith.constant 0 : i32
    %c8_i32 = arith.constant 8 : i32
    %1 = arith.addi %c0_i32, %c8_i32 : i32
    %c1_i32 = arith.constant 1 : i32
    %2 = scf.for %arg9 = %c0_i32 to %1 step %c1_i32 iter_args(%arg10 = %0) -> (vector<128x8xf32>)  : i32 {
      %c1024_i32 = arith.constant 1024 : i32
      %11 = arith.muli %arg9, %c1024_i32 : i32
      %cst_8 = arith.constant 0.000000e+00 : f32
      %12 = vector.broadcast %cst_8 : f32 to vector<128x128xf32>
      %c0_i32_9 = arith.constant 0 : i32
      %13 = arith.addi %11, %c0_i32_9 : i32
      %c0_i32_10 = arith.constant 0 : i32
      %14 = arith.addi %13, %c0_i32_10 : i32
      %15 = tpu.assume_multiple %14, 128 : i32
      %c0_11 = arith.constant 0 : index
      %16 = arith.index_cast %15 : i32 to index
      %17 = vector.load %arg1[%c0_11, %16] : memref<8x8192xf32, #tpu.memory_space<vmem>>, vector<4x128xf32>
      %c0_12 = arith.constant 0 : index
      %c0_13 = arith.constant 0 : index
      %18 = vector.load %arg3[%c0_12, %c0_13] : memref<128x4xf32, #tpu.memory_space<vmem>>, vector<128x4xf32>
      %cst_14 = arith.constant dense<0.000000e+00> : vector<128x128xf32>
      %19 = tpu.matmul %18, %17, %cst_14 {dimension_numbers = #tpu.dot_dimension_numbers<[1], [0], [0], [1], [0, 0, 1, 1], [], []>} : vector<128x4xf32>, vector<4x128xf32>, vector<128x128xf32> -> vector<128x128xf32>
      %c128_i32 = arith.constant 128 : i32
      %20 = arith.addi %14, %c128_i32 : i32
      %21 = tpu.assume_multiple %20, 128 : i32
      %c0_15 = arith.constant 0 : index
      %22 = arith.index_cast %21 : i32 to index
      %23 = vector.load %arg1[%c0_15, %22] : memref<8x8192xf32, #tpu.memory_space<vmem>>, vector<4x128xf32>
      %c0_16 = arith.constant 0 : index
      %c0_17 = arith.constant 0 : index
      %24 = vector.load %arg4[%c0_16, %c0_17] : memref<128x4xf32, #tpu.memory_space<vmem>>, vector<128x4xf32>
      %cst_18 = arith.constant dense<0.000000e+00> : vector<128x128xf32>
      %25 = tpu.matmul %24, %23, %cst_18 {dimension_numbers = #tpu.dot_dimension_numbers<[1], [0], [0], [1], [0, 0, 1, 1], [], []>} : vector<128x4xf32>, vector<4x128xf32>, vector<128x128xf32> -> vector<128x128xf32>
      %26 = arith.addf %19, %25 : vector<128x128xf32>
      %c0_19 = arith.constant 0 : index
      %c0_20 = arith.constant 0 : index
      %27 = vector.load %arg5[%c0_19, %c0_20] : memref<128x128xf32, #tpu.memory_space<vmem>>, vector<128x128xf32>
      %28 = arith.addf %26, %27 : vector<128x128xf32>
      %cst_21 = arith.constant 0.000000e+00 : f32
      %29 = vector.broadcast %cst_21 : f32 to vector<128x128xf32>
      %30 = arith.maximumf %28, %29 : vector<128x128xf32>
      %31 = arith.addf %12, %30 : vector<128x128xf32>
      %c128_i32_22 = arith.constant 128 : i32
      %32 = arith.addi %11, %c128_i32_22 : i32
      %c0_i32_23 = arith.constant 0 : i32
      %33 = arith.addi %32, %c0_i32_23 : i32
      %34 = tpu.assume_multiple %33, 128 : i32
      %c0_24 = arith.constant 0 : index
      %35 = arith.index_cast %34 : i32 to index
      %36 = vector.load %arg1[%c0_24, %35] : memref<8x8192xf32, #tpu.memory_space<vmem>>, vector<4x128xf32>
      %c0_25 = arith.constant 0 : index
      %c0_26 = arith.constant 0 : index
      %37 = vector.load %arg3[%c0_25, %c0_26] : memref<128x4xf32, #tpu.memory_space<vmem>>, vector<128x4xf32>
      %cst_27 = arith.constant dense<0.000000e+00> : vector<128x128xf32>
      %38 = tpu.matmul %37, %36, %cst_27 {dimension_numbers = #tpu.dot_dimension_numbers<[1], [0], [0], [1], [0, 0, 1, 1], [], []>} : vector<128x4xf32>, vector<4x128xf32>, vector<128x128xf32> -> vector<128x128xf32>
      %c128_i32_28 = arith.constant 128 : i32
      %39 = arith.subi %33, %c128_i32_28 : i32
      %40 = tpu.assume_multiple %39, 128 : i32
      %c0_29 = arith.constant 0 : index
      %41 = arith.index_cast %40 : i32 to index
      %42 = vector.load %arg1[%c0_29, %41] : memref<8x8192xf32, #tpu.memory_space<vmem>>, vector<4x128xf32>
      %c0_30 = arith.constant 0 : index
      %c0_31 = arith.constant 0 : index
      %43 = vector.load %arg2[%c0_30, %c0_31] : memref<128x4xf32, #tpu.memory_space<vmem>>, vector<128x4xf32>
      %cst_32 = arith.constant dense<0.000000e+00> : vector<128x128xf32>
      %44 = tpu.matmul %43, %42, %cst_32 {dimension_numbers = #tpu.dot_dimension_numbers<[1], [0], [0], [1], [0, 0, 1, 1], [], []>} : vector<128x4xf32>, vector<4x128xf32>, vector<128x128xf32> -> vector<128x128xf32>
      %45 = arith.addf %38, %44 : vector<128x128xf32>
      %c128_i32_33 = arith.constant 128 : i32
      %46 = arith.addi %33, %c128_i32_33 : i32
      %47 = tpu.assume_multiple %46, 128 : i32
      %c0_34 = arith.constant 0 : index
      %48 = arith.index_cast %47 : i32 to index
      %49 = vector.load %arg1[%c0_34, %48] : memref<8x8192xf32, #tpu.memory_space<vmem>>, vector<4x128xf32>
      %c0_35 = arith.constant 0 : index
      %c0_36 = arith.constant 0 : index
      %50 = vector.load %arg4[%c0_35, %c0_36] : memref<128x4xf32, #tpu.memory_space<vmem>>, vector<128x4xf32>
      %cst_37 = arith.constant dense<0.000000e+00> : vector<128x128xf32>
      %51 = tpu.matmul %50, %49, %cst_37 {dimension_numbers = #tpu.dot_dimension_numbers<[1], [0], [0], [1], [0, 0, 1, 1], [], []>} : vector<128x4xf32>, vector<4x128xf32>, vector<128x128xf32> -> vector<128x128xf32>
      %52 = arith.addf %45, %51 : vector<128x128xf32>
      %c0_38 = arith.constant 0 : index
      %c0_39 = arith.constant 0 : index
      %53 = vector.load %arg5[%c0_38, %c0_39] : memref<128x128xf32, #tpu.memory_space<vmem>>, vector<128x128xf32>
      %54 = arith.addf %52, %53 : vector<128x128xf32>
      %cst_40 = arith.constant 0.000000e+00 : f32
      %55 = vector.broadcast %cst_40 : f32 to vector<128x128xf32>
      %56 = arith.maximumf %54, %55 : vector<128x128xf32>
      %57 = arith.addf %31, %56 : vector<128x128xf32>
      %c256_i32 = arith.constant 256 : i32
      %58 = arith.addi %11, %c256_i32 : i32
      %c0_i32_41 = arith.constant 0 : i32
      %59 = arith.addi %58, %c0_i32_41 : i32
      %60 = tpu.assume_multiple %59, 128 : i32
      %c0_42 = arith.constant 0 : index
      %61 = arith.index_cast %60 : i32 to index
      %62 = vector.load %arg1[%c0_42, %61] : memref<8x8192xf32, #tpu.memory_space<vmem>>, vector<4x128xf32>
      %c0_43 = arith.constant 0 : index
      %c0_44 = arith.constant 0 : index
      %63 = vector.load %arg3[%c0_43, %c0_44] : memref<128x4xf32, #tpu.memory_space<vmem>>, vector<128x4xf32>
      %cst_45 = arith.constant dense<0.000000e+00> : vector<128x128xf32>
      %64 = tpu.matmul %63, %62, %cst_45 {dimension_numbers = #tpu.dot_dimension_numbers<[1], [0], [0], [1], [0, 0, 1, 1], [], []>} : vector<128x4xf32>, vector<4x128xf32>, vector<128x128xf32> -> vector<128x128xf32>
      %c128_i32_46 = arith.constant 128 : i32
      %65 = arith.subi %59, %c128_i32_46 : i32
      %66 = tpu.assume_multiple %65, 128 : i32
      %c0_47 = arith.constant 0 : index
      %67 = arith.index_cast %66 : i32 to index
      %68 = vector.load %arg1[%c0_47, %67] : memref<8x8192xf32, #tpu.memory_space<vmem>>, vector<4x128xf32>
      %c0_48 = arith.constant 0 : index
      %c0_49 = arith.constant 0 : index
      %69 = vector.load %arg2[%c0_48, %c0_49] : memref<128x4xf32, #tpu.memory_space<vmem>>, vector<128x4xf32>
      %cst_50 = arith.constant dense<0.000000e+00> : vector<128x128xf32>
      %70 = tpu.matmul %69, %68, %cst_50 {dimension_numbers = #tpu.dot_dimension_numbers<[1], [0], [0], [1], [0, 0, 1, 1], [], []>} : vector<128x4xf32>, vector<4x128xf32>, vector<128x128xf32> -> vector<128x128xf32>
      %71 = arith.addf %64, %70 : vector<128x128xf32>
      %c128_i32_51 = arith.constant 128 : i32
      %72 = arith.addi %59, %c128_i32_51 : i32
      %73 = tpu.assume_multiple %72, 128 : i32
      %c0_52 = arith.constant 0 : index
      %74 = arith.index_cast %73 : i32 to index
      %75 = vector.load %arg1[%c0_52, %74] : memref<8x8192xf32, #tpu.memory_space<vmem>>, vector<4x128xf32>
      %c0_53 = arith.constant 0 : index
      %c0_54 = arith.constant 0 : index
      %76 = vector.load %arg4[%c0_53, %c0_54] : memref<128x4xf32, #tpu.memory_space<vmem>>, vector<128x4xf32>
      %cst_55 = arith.constant dense<0.000000e+00> : vector<128x128xf32>
      %77 = tpu.matmul %76, %75, %cst_55 {dimension_numbers = #tpu.dot_dimension_numbers<[1], [0], [0], [1], [0, 0, 1, 1], [], []>} : vector<128x4xf32>, vector<4x128xf32>, vector<128x128xf32> -> vector<128x128xf32>
      %78 = arith.addf %71, %77 : vector<128x128xf32>
      %c0_56 = arith.constant 0 : index
      %c0_57 = arith.constant 0 : index
      %79 = vector.load %arg5[%c0_56, %c0_57] : memref<128x128xf32, #tpu.memory_space<vmem>>, vector<128x128xf32>
      %80 = arith.addf %78, %79 : vector<128x128xf32>
      %cst_58 = arith.constant 0.000000e+00 : f32
      %81 = vector.broadcast %cst_58 : f32 to vector<128x128xf32>
      %82 = arith.maximumf %80, %81 : vector<128x128xf32>
      %83 = arith.addf %57, %82 : vector<128x128xf32>
      %c384_i32 = arith.constant 384 : i32
      %84 = arith.addi %11, %c384_i32 : i32
      %c0_i32_59 = arith.constant 0 : i32
      %85 = arith.addi %84, %c0_i32_59 : i32
      %86 = tpu.assume_multiple %85, 128 : i32
      %c0_60 = arith.constant 0 : index
      %87 = arith.index_cast %86 : i32 to index
      %88 = vector.load %arg1[%c0_60, %87] : memref<8x8192xf32, #tpu.memory_space<vmem>>, vector<4x128xf32>
      %c0_61 = arith.constant 0 : index
      %c0_62 = arith.constant 0 : index
      %89 = vector.load %arg3[%c0_61, %c0_62] : memref<128x4xf32, #tpu.memory_space<vmem>>, vector<128x4xf32>
      %cst_63 = arith.constant dense<0.000000e+00> : vector<128x128xf32>
      %90 = tpu.matmul %89, %88, %cst_63 {dimension_numbers = #tpu.dot_dimension_numbers<[1], [0], [0], [1], [0, 0, 1, 1], [], []>} : vector<128x4xf32>, vector<4x128xf32>, vector<128x128xf32> -> vector<128x128xf32>
      %c128_i32_64 = arith.constant 128 : i32
      %91 = arith.subi %85, %c128_i32_64 : i32
      %92 = tpu.assume_multiple %91, 128 : i32
      %c0_65 = arith.constant 0 : index
      %93 = arith.index_cast %92 : i32 to index
      %94 = vector.load %arg1[%c0_65, %93] : memref<8x8192xf32, #tpu.memory_space<vmem>>, vector<4x128xf32>
      %c0_66 = arith.constant 0 : index
      %c0_67 = arith.constant 0 : index
      %95 = vector.load %arg2[%c0_66, %c0_67] : memref<128x4xf32, #tpu.memory_space<vmem>>, vector<128x4xf32>
      %cst_68 = arith.constant dense<0.000000e+00> : vector<128x128xf32>
      %96 = tpu.matmul %95, %94, %cst_68 {dimension_numbers = #tpu.dot_dimension_numbers<[1], [0], [0], [1], [0, 0, 1, 1], [], []>} : vector<128x4xf32>, vector<4x128xf32>, vector<128x128xf32> -> vector<128x128xf32>
      %97 = arith.addf %90, %96 : vector<128x128xf32>
      %c128_i32_69 = arith.constant 128 : i32
      %98 = arith.addi %85, %c128_i32_69 : i32
      %99 = tpu.assume_multiple %98, 128 : i32
      %c0_70 = arith.constant 0 : index
      %100 = arith.index_cast %99 : i32 to index
      %101 = vector.load %arg1[%c0_70, %100] : memref<8x8192xf32, #tpu.memory_space<vmem>>, vector<4x128xf32>
      %c0_71 = arith.constant 0 : index
      %c0_72 = arith.constant 0 : index
      %102 = vector.load %arg4[%c0_71, %c0_72] : memref<128x4xf32, #tpu.memory_space<vmem>>, vector<128x4xf32>
      %cst_73 = arith.constant dense<0.000000e+00> : vector<128x128xf32>
      %103 = tpu.matmul %102, %101, %cst_73 {dimension_numbers = #tpu.dot_dimension_numbers<[1], [0], [0], [1], [0, 0, 1, 1], [], []>} : vector<128x4xf32>, vector<4x128xf32>, vector<128x128xf32> -> vector<128x128xf32>
      %104 = arith.addf %97, %103 : vector<128x128xf32>
      %c0_74 = arith.constant 0 : index
      %c0_75 = arith.constant 0 : index
      %105 = vector.load %arg5[%c0_74, %c0_75] : memref<128x128xf32, #tpu.memory_space<vmem>>, vector<128x128xf32>
      %106 = arith.addf %104, %105 : vector<128x128xf32>
      %cst_76 = arith.constant 0.000000e+00 : f32
      %107 = vector.broadcast %cst_76 : f32 to vector<128x128xf32>
      %108 = arith.maximumf %106, %107 : vector<128x128xf32>
      %109 = arith.addf %83, %108 : vector<128x128xf32>
      %c512_i32 = arith.constant 512 : i32
      %110 = arith.addi %11, %c512_i32 : i32
      %c0_i32_77 = arith.constant 0 : i32
      %111 = arith.addi %110, %c0_i32_77 : i32
      %112 = tpu.assume_multiple %111, 128 : i32
      %c0_78 = arith.constant 0 : index
      %113 = arith.index_cast %112 : i32 to index
      %114 = vector.load %arg1[%c0_78, %113] : memref<8x8192xf32, #tpu.memory_space<vmem>>, vector<4x128xf32>
      %c0_79 = arith.constant 0 : index
      %c0_80 = arith.constant 0 : index
      %115 = vector.load %arg3[%c0_79, %c0_80] : memref<128x4xf32, #tpu.memory_space<vmem>>, vector<128x4xf32>
      %cst_81 = arith.constant dense<0.000000e+00> : vector<128x128xf32>
      %116 = tpu.matmul %115, %114, %cst_81 {dimension_numbers = #tpu.dot_dimension_numbers<[1], [0], [0], [1], [0, 0, 1, 1], [], []>} : vector<128x4xf32>, vector<4x128xf32>, vector<128x128xf32> -> vector<128x128xf32>
      %c128_i32_82 = arith.constant 128 : i32
      %117 = arith.subi %111, %c128_i32_82 : i32
      %118 = tpu.assume_multiple %117, 128 : i32
      %c0_83 = arith.constant 0 : index
      %119 = arith.index_cast %118 : i32 to index
      %120 = vector.load %arg1[%c0_83, %119] : memref<8x8192xf32, #tpu.memory_space<vmem>>, vector<4x128xf32>
      %c0_84 = arith.constant 0 : index
      %c0_85 = arith.constant 0 : index
      %121 = vector.load %arg2[%c0_84, %c0_85] : memref<128x4xf32, #tpu.memory_space<vmem>>, vector<128x4xf32>
      %cst_86 = arith.constant dense<0.000000e+00> : vector<128x128xf32>
      %122 = tpu.matmul %121, %120, %cst_86 {dimension_numbers = #tpu.dot_dimension_numbers<[1], [0], [0], [1], [0, 0, 1, 1], [], []>} : vector<128x4xf32>, vector<4x128xf32>, vector<128x128xf32> -> vector<128x128xf32>
      %123 = arith.addf %116, %122 : vector<128x128xf32>
      %c128_i32_87 = arith.constant 128 : i32
      %124 = arith.addi %111, %c128_i32_87 : i32
      %125 = tpu.assume_multiple %124, 128 : i32
      %c0_88 = arith.constant 0 : index
      %126 = arith.index_cast %125 : i32 to index
      %127 = vector.load %arg1[%c0_88, %126] : memref<8x8192xf32, #tpu.memory_space<vmem>>, vector<4x128xf32>
      %c0_89 = arith.constant 0 : index
      %c0_90 = arith.constant 0 : index
      %128 = vector.load %arg4[%c0_89, %c0_90] : memref<128x4xf32, #tpu.memory_space<vmem>>, vector<128x4xf32>
      %cst_91 = arith.constant dense<0.000000e+00> : vector<128x128xf32>
      %129 = tpu.matmul %128, %127, %cst_91 {dimension_numbers = #tpu.dot_dimension_numbers<[1], [0], [0], [1], [0, 0, 1, 1], [], []>} : vector<128x4xf32>, vector<4x128xf32>, vector<128x128xf32> -> vector<128x128xf32>
      %130 = arith.addf %123, %129 : vector<128x128xf32>
      %c0_92 = arith.constant 0 : index
      %c0_93 = arith.constant 0 : index
      %131 = vector.load %arg5[%c0_92, %c0_93] : memref<128x128xf32, #tpu.memory_space<vmem>>, vector<128x128xf32>
      %132 = arith.addf %130, %131 : vector<128x128xf32>
      %cst_94 = arith.constant 0.000000e+00 : f32
      %133 = vector.broadcast %cst_94 : f32 to vector<128x128xf32>
      %134 = arith.maximumf %132, %133 : vector<128x128xf32>
      %135 = arith.addf %109, %134 : vector<128x128xf32>
      %c640_i32 = arith.constant 640 : i32
      %136 = arith.addi %11, %c640_i32 : i32
      %c0_i32_95 = arith.constant 0 : i32
      %137 = arith.addi %136, %c0_i32_95 : i32
      %138 = tpu.assume_multiple %137, 128 : i32
      %c0_96 = arith.constant 0 : index
      %139 = arith.index_cast %138 : i32 to index
      %140 = vector.load %arg1[%c0_96, %139] : memref<8x8192xf32, #tpu.memory_space<vmem>>, vector<4x128xf32>
      %c0_97 = arith.constant 0 : index
      %c0_98 = arith.constant 0 : index
      %141 = vector.load %arg3[%c0_97, %c0_98] : memref<128x4xf32, #tpu.memory_space<vmem>>, vector<128x4xf32>
      %cst_99 = arith.constant dense<0.000000e+00> : vector<128x128xf32>
      %142 = tpu.matmul %141, %140, %cst_99 {dimension_numbers = #tpu.dot_dimension_numbers<[1], [0], [0], [1], [0, 0, 1, 1], [], []>} : vector<128x4xf32>, vector<4x128xf32>, vector<128x128xf32> -> vector<128x128xf32>
      %c128_i32_100 = arith.constant 128 : i32
      %143 = arith.subi %137, %c128_i32_100 : i32
      %144 = tpu.assume_multiple %143, 128 : i32
      %c0_101 = arith.constant 0 : index
      %145 = arith.index_cast %144 : i32 to index
      %146 = vector.load %arg1[%c0_101, %145] : memref<8x8192xf32, #tpu.memory_space<vmem>>, vector<4x128xf32>
      %c0_102 = arith.constant 0 : index
      %c0_103 = arith.constant 0 : index
      %147 = vector.load %arg2[%c0_102, %c0_103] : memref<128x4xf32, #tpu.memory_space<vmem>>, vector<128x4xf32>
      %cst_104 = arith.constant dense<0.000000e+00> : vector<128x128xf32>
      %148 = tpu.matmul %147, %146, %cst_104 {dimension_numbers = #tpu.dot_dimension_numbers<[1], [0], [0], [1], [0, 0, 1, 1], [], []>} : vector<128x4xf32>, vector<4x128xf32>, vector<128x128xf32> -> vector<128x128xf32>
      %149 = arith.addf %142, %148 : vector<128x128xf32>
      %c128_i32_105 = arith.constant 128 : i32
      %150 = arith.addi %137, %c128_i32_105 : i32
      %151 = tpu.assume_multiple %150, 128 : i32
      %c0_106 = arith.constant 0 : index
      %152 = arith.index_cast %151 : i32 to index
      %153 = vector.load %arg1[%c0_106, %152] : memref<8x8192xf32, #tpu.memory_space<vmem>>, vector<4x128xf32>
      %c0_107 = arith.constant 0 : index
      %c0_108 = arith.constant 0 : index
      %154 = vector.load %arg4[%c0_107, %c0_108] : memref<128x4xf32, #tpu.memory_space<vmem>>, vector<128x4xf32>
      %cst_109 = arith.constant dense<0.000000e+00> : vector<128x128xf32>
      %155 = tpu.matmul %154, %153, %cst_109 {dimension_numbers = #tpu.dot_dimension_numbers<[1], [0], [0], [1], [0, 0, 1, 1], [], []>} : vector<128x4xf32>, vector<4x128xf32>, vector<128x128xf32> -> vector<128x128xf32>
      %156 = arith.addf %149, %155 : vector<128x128xf32>
      %c0_110 = arith.constant 0 : index
      %c0_111 = arith.constant 0 : index
      %157 = vector.load %arg5[%c0_110, %c0_111] : memref<128x128xf32, #tpu.memory_space<vmem>>, vector<128x128xf32>
      %158 = arith.addf %156, %157 : vector<128x128xf32>
      %cst_112 = arith.constant 0.000000e+00 : f32
      %159 = vector.broadcast %cst_112 : f32 to vector<128x128xf32>
      %160 = arith.maximumf %158, %159 : vector<128x128xf32>
      %161 = arith.addf %135, %160 : vector<128x128xf32>
      %c768_i32 = arith.constant 768 : i32
      %162 = arith.addi %11, %c768_i32 : i32
      %c0_i32_113 = arith.constant 0 : i32
      %163 = arith.addi %162, %c0_i32_113 : i32
      %164 = tpu.assume_multiple %163, 128 : i32
      %c0_114 = arith.constant 0 : index
      %165 = arith.index_cast %164 : i32 to index
      %166 = vector.load %arg1[%c0_114, %165] : memref<8x8192xf32, #tpu.memory_space<vmem>>, vector<4x128xf32>
      %c0_115 = arith.constant 0 : index
      %c0_116 = arith.constant 0 : index
      %167 = vector.load %arg3[%c0_115, %c0_116] : memref<128x4xf32, #tpu.memory_space<vmem>>, vector<128x4xf32>
      %cst_117 = arith.constant dense<0.000000e+00> : vector<128x128xf32>
      %168 = tpu.matmul %167, %166, %cst_117 {dimension_numbers = #tpu.dot_dimension_numbers<[1], [0], [0], [1], [0, 0, 1, 1], [], []>} : vector<128x4xf32>, vector<4x128xf32>, vector<128x128xf32> -> vector<128x128xf32>
      %c128_i32_118 = arith.constant 128 : i32
      %169 = arith.subi %163, %c128_i32_118 : i32
      %170 = tpu.assume_multiple %169, 128 : i32
      %c0_119 = arith.constant 0 : index
      %171 = arith.index_cast %170 : i32 to index
      %172 = vector.load %arg1[%c0_119, %171] : memref<8x8192xf32, #tpu.memory_space<vmem>>, vector<4x128xf32>
      %c0_120 = arith.constant 0 : index
      %c0_121 = arith.constant 0 : index
      %173 = vector.load %arg2[%c0_120, %c0_121] : memref<128x4xf32, #tpu.memory_space<vmem>>, vector<128x4xf32>
      %cst_122 = arith.constant dense<0.000000e+00> : vector<128x128xf32>
      %174 = tpu.matmul %173, %172, %cst_122 {dimension_numbers = #tpu.dot_dimension_numbers<[1], [0], [0], [1], [0, 0, 1, 1], [], []>} : vector<128x4xf32>, vector<4x128xf32>, vector<128x128xf32> -> vector<128x128xf32>
      %175 = arith.addf %168, %174 : vector<128x128xf32>
      %c128_i32_123 = arith.constant 128 : i32
      %176 = arith.addi %163, %c128_i32_123 : i32
      %177 = tpu.assume_multiple %176, 128 : i32
      %c0_124 = arith.constant 0 : index
      %178 = arith.index_cast %177 : i32 to index
      %179 = vector.load %arg1[%c0_124, %178] : memref<8x8192xf32, #tpu.memory_space<vmem>>, vector<4x128xf32>
      %c0_125 = arith.constant 0 : index
      %c0_126 = arith.constant 0 : index
      %180 = vector.load %arg4[%c0_125, %c0_126] : memref<128x4xf32, #tpu.memory_space<vmem>>, vector<128x4xf32>
      %cst_127 = arith.constant dense<0.000000e+00> : vector<128x128xf32>
      %181 = tpu.matmul %180, %179, %cst_127 {dimension_numbers = #tpu.dot_dimension_numbers<[1], [0], [0], [1], [0, 0, 1, 1], [], []>} : vector<128x4xf32>, vector<4x128xf32>, vector<128x128xf32> -> vector<128x128xf32>
      %182 = arith.addf %175, %181 : vector<128x128xf32>
      %c0_128 = arith.constant 0 : index
      %c0_129 = arith.constant 0 : index
      %183 = vector.load %arg5[%c0_128, %c0_129] : memref<128x128xf32, #tpu.memory_space<vmem>>, vector<128x128xf32>
      %184 = arith.addf %182, %183 : vector<128x128xf32>
      %cst_130 = arith.constant 0.000000e+00 : f32
      %185 = vector.broadcast %cst_130 : f32 to vector<128x128xf32>
      %186 = arith.maximumf %184, %185 : vector<128x128xf32>
      %187 = arith.addf %161, %186 : vector<128x128xf32>
      %c896_i32 = arith.constant 896 : i32
      %188 = arith.addi %11, %c896_i32 : i32
      %c0_i32_131 = arith.constant 0 : i32
      %189 = arith.addi %188, %c0_i32_131 : i32
      %190 = tpu.assume_multiple %189, 128 : i32
      %c0_132 = arith.constant 0 : index
      %191 = arith.index_cast %190 : i32 to index
      %192 = vector.load %arg1[%c0_132, %191] : memref<8x8192xf32, #tpu.memory_space<vmem>>, vector<4x128xf32>
      %c0_133 = arith.constant 0 : index
      %c0_134 = arith.constant 0 : index
      %193 = vector.load %arg3[%c0_133, %c0_134] : memref<128x4xf32, #tpu.memory_space<vmem>>, vector<128x4xf32>
      %cst_135 = arith.constant dense<0.000000e+00> : vector<128x128xf32>
      %194 = tpu.matmul %193, %192, %cst_135 {dimension_numbers = #tpu.dot_dimension_numbers<[1], [0], [0], [1], [0, 0, 1, 1], [], []>} : vector<128x4xf32>, vector<4x128xf32>, vector<128x128xf32> -> vector<128x128xf32>
      %c128_i32_136 = arith.constant 128 : i32
      %195 = arith.subi %189, %c128_i32_136 : i32
      %196 = tpu.assume_multiple %195, 128 : i32
      %c0_137 = arith.constant 0 : index
      %197 = arith.index_cast %196 : i32 to index
      %198 = vector.load %arg1[%c0_137, %197] : memref<8x8192xf32, #tpu.memory_space<vmem>>, vector<4x128xf32>
      %c0_138 = arith.constant 0 : index
      %c0_139 = arith.constant 0 : index
      %199 = vector.load %arg2[%c0_138, %c0_139] : memref<128x4xf32, #tpu.memory_space<vmem>>, vector<128x4xf32>
      %cst_140 = arith.constant dense<0.000000e+00> : vector<128x128xf32>
      %200 = tpu.matmul %199, %198, %cst_140 {dimension_numbers = #tpu.dot_dimension_numbers<[1], [0], [0], [1], [0, 0, 1, 1], [], []>} : vector<128x4xf32>, vector<4x128xf32>, vector<128x128xf32> -> vector<128x128xf32>
      %201 = arith.addf %194, %200 : vector<128x128xf32>
      %c0_141 = arith.constant 0 : index
      %c0_142 = arith.constant 0 : index
      %202 = vector.load %arg5[%c0_141, %c0_142] : memref<128x128xf32, #tpu.memory_space<vmem>>, vector<128x128xf32>
      %203 = arith.addf %201, %202 : vector<128x128xf32>
      %cst_143 = arith.constant 0.000000e+00 : f32
      %204 = vector.broadcast %cst_143 : f32 to vector<128x128xf32>
      %205 = arith.maximumf %203, %204 : vector<128x128xf32>
      %206 = arith.addf %187, %205 : vector<128x128xf32>
      %c0_i32_144 = arith.constant 0 : i32
      %207 = arith.addi %11, %c0_i32_144 : i32
      %c0_i32_145 = arith.constant 0 : i32
      %208 = arith.addi %207, %c0_i32_145 : i32
      %209 = tpu.assume_multiple %208, 128 : i32
      %c4 = arith.constant 4 : index
      %210 = arith.index_cast %209 : i32 to index
      %211 = vector.load %arg1[%c4, %210] : memref<8x8192xf32, #tpu.memory_space<vmem>>, vector<4x128xf32>
      %c0_146 = arith.constant 0 : index
      %c0_147 = arith.constant 0 : index
      %212 = vector.load %arg3[%c0_146, %c0_147] : memref<128x4xf32, #tpu.memory_space<vmem>>, vector<128x4xf32>
      %cst_148 = arith.constant dense<0.000000e+00> : vector<128x128xf32>
      %213 = tpu.matmul %212, %211, %cst_148 {dimension_numbers = #tpu.dot_dimension_numbers<[1], [0], [0], [1], [0, 0, 1, 1], [], []>} : vector<128x4xf32>, vector<4x128xf32>, vector<128x128xf32> -> vector<128x128xf32>
      %c128_i32_149 = arith.constant 128 : i32
      %214 = arith.addi %208, %c128_i32_149 : i32
      %215 = tpu.assume_multiple %214, 128 : i32
      %c4_150 = arith.constant 4 : index
      %216 = arith.index_cast %215 : i32 to index
      %217 = vector.load %arg1[%c4_150, %216] : memref<8x8192xf32, #tpu.memory_space<vmem>>, vector<4x128xf32>
      %c0_151 = arith.constant 0 : index
      %c0_152 = arith.constant 0 : index
      %218 = vector.load %arg4[%c0_151, %c0_152] : memref<128x4xf32, #tpu.memory_space<vmem>>, vector<128x4xf32>
      %cst_153 = arith.constant dense<0.000000e+00> : vector<128x128xf32>
      %219 = tpu.matmul %218, %217, %cst_153 {dimension_numbers = #tpu.dot_dimension_numbers<[1], [0], [0], [1], [0, 0, 1, 1], [], []>} : vector<128x4xf32>, vector<4x128xf32>, vector<128x128xf32> -> vector<128x128xf32>
      %220 = arith.addf %213, %219 : vector<128x128xf32>
      %c0_154 = arith.constant 0 : index
      %c0_155 = arith.constant 0 : index
      %221 = vector.load %arg5[%c0_154, %c0_155] : memref<128x128xf32, #tpu.memory_space<vmem>>, vector<128x128xf32>
      %222 = arith.addf %220, %221 : vector<128x128xf32>
      %cst_156 = arith.constant 0.000000e+00 : f32
      %223 = vector.broadcast %cst_156 : f32 to vector<128x128xf32>
      %224 = arith.maximumf %222, %223 : vector<128x128xf32>
      %225 = arith.addf %206, %224 : vector<128x128xf32>
      %c128_i32_157 = arith.constant 128 : i32
      %226 = arith.addi %11, %c128_i32_157 : i32
      %c0_i32_158 = arith.constant 0 : i32
      %227 = arith.addi %226, %c0_i32_158 : i32
      %228 = tpu.assume_multiple %227, 128 : i32
      %c4_159 = arith.constant 4 : index
      %229 = arith.index_cast %228 : i32 to index
      %230 = vector.load %arg1[%c4_159, %229] : memref<8x8192xf32, #tpu.memory_space<vmem>>, vector<4x128xf32>
      %c0_160 = arith.constant 0 : index
      %c0_161 = arith.constant 0 : index
      %231 = vector.load %arg3[%c0_160, %c0_161] : memref<128x4xf32, #tpu.memory_space<vmem>>, vector<128x4xf32>
      %cst_162 = arith.constant dense<0.000000e+00> : vector<128x128xf32>
      %232 = tpu.matmul %231, %230, %cst_162 {dimension_numbers = #tpu.dot_dimension_numbers<[1], [0], [0], [1], [0, 0, 1, 1], [], []>} : vector<128x4xf32>, vector<4x128xf32>, vector<128x128xf32> -> vector<128x128xf32>
      %c128_i32_163 = arith.constant 128 : i32
      %233 = arith.subi %227, %c128_i32_163 : i32
      %234 = tpu.assume_multiple %233, 128 : i32
      %c4_164 = arith.constant 4 : index
      %235 = arith.index_cast %234 : i32 to index
      %236 = vector.load %arg1[%c4_164, %235] : memref<8x8192xf32, #tpu.memory_space<vmem>>, vector<4x128xf32>
      %c0_165 = arith.constant 0 : index
      %c0_166 = arith.constant 0 : index
      %237 = vector.load %arg2[%c0_165, %c0_166] : memref<128x4xf32, #tpu.memory_space<vmem>>, vector<128x4xf32>
      %cst_167 = arith.constant dense<0.000000e+00> : vector<128x128xf32>
      %238 = tpu.matmul %237, %236, %cst_167 {dimension_numbers = #tpu.dot_dimension_numbers<[1], [0], [0], [1], [0, 0, 1, 1], [], []>} : vector<128x4xf32>, vector<4x128xf32>, vector<128x128xf32> -> vector<128x128xf32>
      %239 = arith.addf %232, %238 : vector<128x128xf32>
      %c128_i32_168 = arith.constant 128 : i32
      %240 = arith.addi %227, %c128_i32_168 : i32
      %241 = tpu.assume_multiple %240, 128 : i32
      %c4_169 = arith.constant 4 : index
      %242 = arith.index_cast %241 : i32 to index
      %243 = vector.load %arg1[%c4_169, %242] : memref<8x8192xf32, #tpu.memory_space<vmem>>, vector<4x128xf32>
      %c0_170 = arith.constant 0 : index
      %c0_171 = arith.constant 0 : index
      %244 = vector.load %arg4[%c0_170, %c0_171] : memref<128x4xf32, #tpu.memory_space<vmem>>, vector<128x4xf32>
      %cst_172 = arith.constant dense<0.000000e+00> : vector<128x128xf32>
      %245 = tpu.matmul %244, %243, %cst_172 {dimension_numbers = #tpu.dot_dimension_numbers<[1], [0], [0], [1], [0, 0, 1, 1], [], []>} : vector<128x4xf32>, vector<4x128xf32>, vector<128x128xf32> -> vector<128x128xf32>
      %246 = arith.addf %239, %245 : vector<128x128xf32>
      %c0_173 = arith.constant 0 : index
      %c0_174 = arith.constant 0 : index
      %247 = vector.load %arg5[%c0_173, %c0_174] : memref<128x128xf32, #tpu.memory_space<vmem>>, vector<128x128xf32>
      %248 = arith.addf %246, %247 : vector<128x128xf32>
      %cst_175 = arith.constant 0.000000e+00 : f32
      %249 = vector.broadcast %cst_175 : f32 to vector<128x128xf32>
      %250 = arith.maximumf %248, %249 : vector<128x128xf32>
      %251 = arith.addf %225, %250 : vector<128x128xf32>
      %c256_i32_176 = arith.constant 256 : i32
      %252 = arith.addi %11, %c256_i32_176 : i32
      %c0_i32_177 = arith.constant 0 : i32
      %253 = arith.addi %252, %c0_i32_177 : i32
      %254 = tpu.assume_multiple %253, 128 : i32
      %c4_178 = arith.constant 4 : index
      %255 = arith.index_cast %254 : i32 to index
      %256 = vector.load %arg1[%c4_178, %255] : memref<8x8192xf32, #tpu.memory_space<vmem>>, vector<4x128xf32>
      %c0_179 = arith.constant 0 : index
      %c0_180 = arith.constant 0 : index
      %257 = vector.load %arg3[%c0_179, %c0_180] : memref<128x4xf32, #tpu.memory_space<vmem>>, vector<128x4xf32>
      %cst_181 = arith.constant dense<0.000000e+00> : vector<128x128xf32>
      %258 = tpu.matmul %257, %256, %cst_181 {dimension_numbers = #tpu.dot_dimension_numbers<[1], [0], [0], [1], [0, 0, 1, 1], [], []>} : vector<128x4xf32>, vector<4x128xf32>, vector<128x128xf32> -> vector<128x128xf32>
      %c128_i32_182 = arith.constant 128 : i32
      %259 = arith.subi %253, %c128_i32_182 : i32
      %260 = tpu.assume_multiple %259, 128 : i32
      %c4_183 = arith.constant 4 : index
      %261 = arith.index_cast %260 : i32 to index
      %262 = vector.load %arg1[%c4_183, %261] : memref<8x8192xf32, #tpu.memory_space<vmem>>, vector<4x128xf32>
      %c0_184 = arith.constant 0 : index
      %c0_185 = arith.constant 0 : index
      %263 = vector.load %arg2[%c0_184, %c0_185] : memref<128x4xf32, #tpu.memory_space<vmem>>, vector<128x4xf32>
      %cst_186 = arith.constant dense<0.000000e+00> : vector<128x128xf32>
      %264 = tpu.matmul %263, %262, %cst_186 {dimension_numbers = #tpu.dot_dimension_numbers<[1], [0], [0], [1], [0, 0, 1, 1], [], []>} : vector<128x4xf32>, vector<4x128xf32>, vector<128x128xf32> -> vector<128x128xf32>
      %265 = arith.addf %258, %264 : vector<128x128xf32>
      %c128_i32_187 = arith.constant 128 : i32
      %266 = arith.addi %253, %c128_i32_187 : i32
      %267 = tpu.assume_multiple %266, 128 : i32
      %c4_188 = arith.constant 4 : index
      %268 = arith.index_cast %267 : i32 to index
      %269 = vector.load %arg1[%c4_188, %268] : memref<8x8192xf32, #tpu.memory_space<vmem>>, vector<4x128xf32>
      %c0_189 = arith.constant 0 : index
      %c0_190 = arith.constant 0 : index
      %270 = vector.load %arg4[%c0_189, %c0_190] : memref<128x4xf32, #tpu.memory_space<vmem>>, vector<128x4xf32>
      %cst_191 = arith.constant dense<0.000000e+00> : vector<128x128xf32>
      %271 = tpu.matmul %270, %269, %cst_191 {dimension_numbers = #tpu.dot_dimension_numbers<[1], [0], [0], [1], [0, 0, 1, 1], [], []>} : vector<128x4xf32>, vector<4x128xf32>, vector<128x128xf32> -> vector<128x128xf32>
      %272 = arith.addf %265, %271 : vector<128x128xf32>
      %c0_192 = arith.constant 0 : index
      %c0_193 = arith.constant 0 : index
      %273 = vector.load %arg5[%c0_192, %c0_193] : memref<128x128xf32, #tpu.memory_space<vmem>>, vector<128x128xf32>
      %274 = arith.addf %272, %273 : vector<128x128xf32>
      %cst_194 = arith.constant 0.000000e+00 : f32
      %275 = vector.broadcast %cst_194 : f32 to vector<128x128xf32>
      %276 = arith.maximumf %274, %275 : vector<128x128xf32>
      %277 = arith.addf %251, %276 : vector<128x128xf32>
      %c384_i32_195 = arith.constant 384 : i32
      %278 = arith.addi %11, %c384_i32_195 : i32
      %c0_i32_196 = arith.constant 0 : i32
      %279 = arith.addi %278, %c0_i32_196 : i32
      %280 = tpu.assume_multiple %279, 128 : i32
      %c4_197 = arith.constant 4 : index
      %281 = arith.index_cast %280 : i32 to index
      %282 = vector.load %arg1[%c4_197, %281] : memref<8x8192xf32, #tpu.memory_space<vmem>>, vector<4x128xf32>
      %c0_198 = arith.constant 0 : index
      %c0_199 = arith.constant 0 : index
      %283 = vector.load %arg3[%c0_198, %c0_199] : memref<128x4xf32, #tpu.memory_space<vmem>>, vector<128x4xf32>
      %cst_200 = arith.constant dense<0.000000e+00> : vector<128x128xf32>
      %284 = tpu.matmul %283, %282, %cst_200 {dimension_numbers = #tpu.dot_dimension_numbers<[1], [0], [0], [1], [0, 0, 1, 1], [], []>} : vector<128x4xf32>, vector<4x128xf32>, vector<128x128xf32> -> vector<128x128xf32>
      %c128_i32_201 = arith.constant 128 : i32
      %285 = arith.subi %279, %c128_i32_201 : i32
      %286 = tpu.assume_multiple %285, 128 : i32
      %c4_202 = arith.constant 4 : index
      %287 = arith.index_cast %286 : i32 to index
      %288 = vector.load %arg1[%c4_202, %287] : memref<8x8192xf32, #tpu.memory_space<vmem>>, vector<4x128xf32>
      %c0_203 = arith.constant 0 : index
      %c0_204 = arith.constant 0 : index
      %289 = vector.load %arg2[%c0_203, %c0_204] : memref<128x4xf32, #tpu.memory_space<vmem>>, vector<128x4xf32>
      %cst_205 = arith.constant dense<0.000000e+00> : vector<128x128xf32>
      %290 = tpu.matmul %289, %288, %cst_205 {dimension_numbers = #tpu.dot_dimension_numbers<[1], [0], [0], [1], [0, 0, 1, 1], [], []>} : vector<128x4xf32>, vector<4x128xf32>, vector<128x128xf32> -> vector<128x128xf32>
      %291 = arith.addf %284, %290 : vector<128x128xf32>
      %c128_i32_206 = arith.constant 128 : i32
      %292 = arith.addi %279, %c128_i32_206 : i32
      %293 = tpu.assume_multiple %292, 128 : i32
      %c4_207 = arith.constant 4 : index
      %294 = arith.index_cast %293 : i32 to index
      %295 = vector.load %arg1[%c4_207, %294] : memref<8x8192xf32, #tpu.memory_space<vmem>>, vector<4x128xf32>
      %c0_208 = arith.constant 0 : index
      %c0_209 = arith.constant 0 : index
      %296 = vector.load %arg4[%c0_208, %c0_209] : memref<128x4xf32, #tpu.memory_space<vmem>>, vector<128x4xf32>
      %cst_210 = arith.constant dense<0.000000e+00> : vector<128x128xf32>
      %297 = tpu.matmul %296, %295, %cst_210 {dimension_numbers = #tpu.dot_dimension_numbers<[1], [0], [0], [1], [0, 0, 1, 1], [], []>} : vector<128x4xf32>, vector<4x128xf32>, vector<128x128xf32> -> vector<128x128xf32>
      %298 = arith.addf %291, %297 : vector<128x128xf32>
      %c0_211 = arith.constant 0 : index
      %c0_212 = arith.constant 0 : index
      %299 = vector.load %arg5[%c0_211, %c0_212] : memref<128x128xf32, #tpu.memory_space<vmem>>, vector<128x128xf32>
      %300 = arith.addf %298, %299 : vector<128x128xf32>
      %cst_213 = arith.constant 0.000000e+00 : f32
      %301 = vector.broadcast %cst_213 : f32 to vector<128x128xf32>
      %302 = arith.maximumf %300, %301 : vector<128x128xf32>
      %303 = arith.addf %277, %302 : vector<128x128xf32>
      %c512_i32_214 = arith.constant 512 : i32
      %304 = arith.addi %11, %c512_i32_214 : i32
      %c0_i32_215 = arith.constant 0 : i32
      %305 = arith.addi %304, %c0_i32_215 : i32
      %306 = tpu.assume_multiple %305, 128 : i32
      %c4_216 = arith.constant 4 : index
      %307 = arith.index_cast %306 : i32 to index
      %308 = vector.load %arg1[%c4_216, %307] : memref<8x8192xf32, #tpu.memory_space<vmem>>, vector<4x128xf32>
      %c0_217 = arith.constant 0 : index
      %c0_218 = arith.constant 0 : index
      %309 = vector.load %arg3[%c0_217, %c0_218] : memref<128x4xf32, #tpu.memory_space<vmem>>, vector<128x4xf32>
      %cst_219 = arith.constant dense<0.000000e+00> : vector<128x128xf32>
      %310 = tpu.matmul %309, %308, %cst_219 {dimension_numbers = #tpu.dot_dimension_numbers<[1], [0], [0], [1], [0, 0, 1, 1], [], []>} : vector<128x4xf32>, vector<4x128xf32>, vector<128x128xf32> -> vector<128x128xf32>
      %c128_i32_220 = arith.constant 128 : i32
      %311 = arith.subi %305, %c128_i32_220 : i32
      %312 = tpu.assume_multiple %311, 128 : i32
      %c4_221 = arith.constant 4 : index
      %313 = arith.index_cast %312 : i32 to index
      %314 = vector.load %arg1[%c4_221, %313] : memref<8x8192xf32, #tpu.memory_space<vmem>>, vector<4x128xf32>
      %c0_222 = arith.constant 0 : index
      %c0_223 = arith.constant 0 : index
      %315 = vector.load %arg2[%c0_222, %c0_223] : memref<128x4xf32, #tpu.memory_space<vmem>>, vector<128x4xf32>
      %cst_224 = arith.constant dense<0.000000e+00> : vector<128x128xf32>
      %316 = tpu.matmul %315, %314, %cst_224 {dimension_numbers = #tpu.dot_dimension_numbers<[1], [0], [0], [1], [0, 0, 1, 1], [], []>} : vector<128x4xf32>, vector<4x128xf32>, vector<128x128xf32> -> vector<128x128xf32>
      %317 = arith.addf %310, %316 : vector<128x128xf32>
      %c128_i32_225 = arith.constant 128 : i32
      %318 = arith.addi %305, %c128_i32_225 : i32
      %319 = tpu.assume_multiple %318, 128 : i32
      %c4_226 = arith.constant 4 : index
      %320 = arith.index_cast %319 : i32 to index
      %321 = vector.load %arg1[%c4_226, %320] : memref<8x8192xf32, #tpu.memory_space<vmem>>, vector<4x128xf32>
      %c0_227 = arith.constant 0 : index
      %c0_228 = arith.constant 0 : index
      %322 = vector.load %arg4[%c0_227, %c0_228] : memref<128x4xf32, #tpu.memory_space<vmem>>, vector<128x4xf32>
      %cst_229 = arith.constant dense<0.000000e+00> : vector<128x128xf32>
      %323 = tpu.matmul %322, %321, %cst_229 {dimension_numbers = #tpu.dot_dimension_numbers<[1], [0], [0], [1], [0, 0, 1, 1], [], []>} : vector<128x4xf32>, vector<4x128xf32>, vector<128x128xf32> -> vector<128x128xf32>
      %324 = arith.addf %317, %323 : vector<128x128xf32>
      %c0_230 = arith.constant 0 : index
      %c0_231 = arith.constant 0 : index
      %325 = vector.load %arg5[%c0_230, %c0_231] : memref<128x128xf32, #tpu.memory_space<vmem>>, vector<128x128xf32>
      %326 = arith.addf %324, %325 : vector<128x128xf32>
      %cst_232 = arith.constant 0.000000e+00 : f32
      %327 = vector.broadcast %cst_232 : f32 to vector<128x128xf32>
      %328 = arith.maximumf %326, %327 : vector<128x128xf32>
      %329 = arith.addf %303, %328 : vector<128x128xf32>
      %c640_i32_233 = arith.constant 640 : i32
      %330 = arith.addi %11, %c640_i32_233 : i32
      %c0_i32_234 = arith.constant 0 : i32
      %331 = arith.addi %330, %c0_i32_234 : i32
      %332 = tpu.assume_multiple %331, 128 : i32
      %c4_235 = arith.constant 4 : index
      %333 = arith.index_cast %332 : i32 to index
      %334 = vector.load %arg1[%c4_235, %333] : memref<8x8192xf32, #tpu.memory_space<vmem>>, vector<4x128xf32>
      %c0_236 = arith.constant 0 : index
      %c0_237 = arith.constant 0 : index
      %335 = vector.load %arg3[%c0_236, %c0_237] : memref<128x4xf32, #tpu.memory_space<vmem>>, vector<128x4xf32>
      %cst_238 = arith.constant dense<0.000000e+00> : vector<128x128xf32>
      %336 = tpu.matmul %335, %334, %cst_238 {dimension_numbers = #tpu.dot_dimension_numbers<[1], [0], [0], [1], [0, 0, 1, 1], [], []>} : vector<128x4xf32>, vector<4x128xf32>, vector<128x128xf32> -> vector<128x128xf32>
      %c128_i32_239 = arith.constant 128 : i32
      %337 = arith.subi %331, %c128_i32_239 : i32
      %338 = tpu.assume_multiple %337, 128 : i32
      %c4_240 = arith.constant 4 : index
      %339 = arith.index_cast %338 : i32 to index
      %340 = vector.load %arg1[%c4_240, %339] : memref<8x8192xf32, #tpu.memory_space<vmem>>, vector<4x128xf32>
      %c0_241 = arith.constant 0 : index
      %c0_242 = arith.constant 0 : index
      %341 = vector.load %arg2[%c0_241, %c0_242] : memref<128x4xf32, #tpu.memory_space<vmem>>, vector<128x4xf32>
      %cst_243 = arith.constant dense<0.000000e+00> : vector<128x128xf32>
      %342 = tpu.matmul %341, %340, %cst_243 {dimension_numbers = #tpu.dot_dimension_numbers<[1], [0], [0], [1], [0, 0, 1, 1], [], []>} : vector<128x4xf32>, vector<4x128xf32>, vector<128x128xf32> -> vector<128x128xf32>
      %343 = arith.addf %336, %342 : vector<128x128xf32>
      %c128_i32_244 = arith.constant 128 : i32
      %344 = arith.addi %331, %c128_i32_244 : i32
      %345 = tpu.assume_multiple %344, 128 : i32
      %c4_245 = arith.constant 4 : index
      %346 = arith.index_cast %345 : i32 to index
      %347 = vector.load %arg1[%c4_245, %346] : memref<8x8192xf32, #tpu.memory_space<vmem>>, vector<4x128xf32>
      %c0_246 = arith.constant 0 : index
      %c0_247 = arith.constant 0 : index
      %348 = vector.load %arg4[%c0_246, %c0_247] : memref<128x4xf32, #tpu.memory_space<vmem>>, vector<128x4xf32>
      %cst_248 = arith.constant dense<0.000000e+00> : vector<128x128xf32>
      %349 = tpu.matmul %348, %347, %cst_248 {dimension_numbers = #tpu.dot_dimension_numbers<[1], [0], [0], [1], [0, 0, 1, 1], [], []>} : vector<128x4xf32>, vector<4x128xf32>, vector<128x128xf32> -> vector<128x128xf32>
      %350 = arith.addf %343, %349 : vector<128x128xf32>
      %c0_249 = arith.constant 0 : index
      %c0_250 = arith.constant 0 : index
      %351 = vector.load %arg5[%c0_249, %c0_250] : memref<128x128xf32, #tpu.memory_space<vmem>>, vector<128x128xf32>
      %352 = arith.addf %350, %351 : vector<128x128xf32>
      %cst_251 = arith.constant 0.000000e+00 : f32
      %353 = vector.broadcast %cst_251 : f32 to vector<128x128xf32>
      %354 = arith.maximumf %352, %353 : vector<128x128xf32>
      %355 = arith.addf %329, %354 : vector<128x128xf32>
      %c768_i32_252 = arith.constant 768 : i32
      %356 = arith.addi %11, %c768_i32_252 : i32
      %c0_i32_253 = arith.constant 0 : i32
      %357 = arith.addi %356, %c0_i32_253 : i32
      %358 = tpu.assume_multiple %357, 128 : i32
      %c4_254 = arith.constant 4 : index
      %359 = arith.index_cast %358 : i32 to index
      %360 = vector.load %arg1[%c4_254, %359] : memref<8x8192xf32, #tpu.memory_space<vmem>>, vector<4x128xf32>
      %c0_255 = arith.constant 0 : index
      %c0_256 = arith.constant 0 : index
      %361 = vector.load %arg3[%c0_255, %c0_256] : memref<128x4xf32, #tpu.memory_space<vmem>>, vector<128x4xf32>
      %cst_257 = arith.constant dense<0.000000e+00> : vector<128x128xf32>
      %362 = tpu.matmul %361, %360, %cst_257 {dimension_numbers = #tpu.dot_dimension_numbers<[1], [0], [0], [1], [0, 0, 1, 1], [], []>} : vector<128x4xf32>, vector<4x128xf32>, vector<128x128xf32> -> vector<128x128xf32>
      %c128_i32_258 = arith.constant 128 : i32
      %363 = arith.subi %357, %c128_i32_258 : i32
      %364 = tpu.assume_multiple %363, 128 : i32
      %c4_259 = arith.constant 4 : index
      %365 = arith.index_cast %364 : i32 to index
      %366 = vector.load %arg1[%c4_259, %365] : memref<8x8192xf32, #tpu.memory_space<vmem>>, vector<4x128xf32>
      %c0_260 = arith.constant 0 : index
      %c0_261 = arith.constant 0 : index
      %367 = vector.load %arg2[%c0_260, %c0_261] : memref<128x4xf32, #tpu.memory_space<vmem>>, vector<128x4xf32>
      %cst_262 = arith.constant dense<0.000000e+00> : vector<128x128xf32>
      %368 = tpu.matmul %367, %366, %cst_262 {dimension_numbers = #tpu.dot_dimension_numbers<[1], [0], [0], [1], [0, 0, 1, 1], [], []>} : vector<128x4xf32>, vector<4x128xf32>, vector<128x128xf32> -> vector<128x128xf32>
      %369 = arith.addf %362, %368 : vector<128x128xf32>
      %c128_i32_263 = arith.constant 128 : i32
      %370 = arith.addi %357, %c128_i32_263 : i32
      %371 = tpu.assume_multiple %370, 128 : i32
      %c4_264 = arith.constant 4 : index
      %372 = arith.index_cast %371 : i32 to index
      %373 = vector.load %arg1[%c4_264, %372] : memref<8x8192xf32, #tpu.memory_space<vmem>>, vector<4x128xf32>
      %c0_265 = arith.constant 0 : index
      %c0_266 = arith.constant 0 : index
      %374 = vector.load %arg4[%c0_265, %c0_266] : memref<128x4xf32, #tpu.memory_space<vmem>>, vector<128x4xf32>
      %cst_267 = arith.constant dense<0.000000e+00> : vector<128x128xf32>
      %375 = tpu.matmul %374, %373, %cst_267 {dimension_numbers = #tpu.dot_dimension_numbers<[1], [0], [0], [1], [0, 0, 1, 1], [], []>} : vector<128x4xf32>, vector<4x128xf32>, vector<128x128xf32> -> vector<128x128xf32>
      %376 = arith.addf %369, %375 : vector<128x128xf32>
      %c0_268 = arith.constant 0 : index
      %c0_269 = arith.constant 0 : index
      %377 = vector.load %arg5[%c0_268, %c0_269] : memref<128x128xf32, #tpu.memory_space<vmem>>, vector<128x128xf32>
      %378 = arith.addf %376, %377 : vector<128x128xf32>
      %cst_270 = arith.constant 0.000000e+00 : f32
      %379 = vector.broadcast %cst_270 : f32 to vector<128x128xf32>
      %380 = arith.maximumf %378, %379 : vector<128x128xf32>
      %381 = arith.addf %355, %380 : vector<128x128xf32>
      %c896_i32_271 = arith.constant 896 : i32
      %382 = arith.addi %11, %c896_i32_271 : i32
      %c0_i32_272 = arith.constant 0 : i32
      %383 = arith.addi %382, %c0_i32_272 : i32
      %384 = tpu.assume_multiple %383, 128 : i32
      %c4_273 = arith.constant 4 : index
      %385 = arith.index_cast %384 : i32 to index
      %386 = vector.load %arg1[%c4_273, %385] : memref<8x8192xf32, #tpu.memory_space<vmem>>, vector<4x128xf32>
      %c0_274 = arith.constant 0 : index
      %c0_275 = arith.constant 0 : index
      %387 = vector.load %arg3[%c0_274, %c0_275] : memref<128x4xf32, #tpu.memory_space<vmem>>, vector<128x4xf32>
      %cst_276 = arith.constant dense<0.000000e+00> : vector<128x128xf32>
      %388 = tpu.matmul %387, %386, %cst_276 {dimension_numbers = #tpu.dot_dimension_numbers<[1], [0], [0], [1], [0, 0, 1, 1], [], []>} : vector<128x4xf32>, vector<4x128xf32>, vector<128x128xf32> -> vector<128x128xf32>
      %c128_i32_277 = arith.constant 128 : i32
      %389 = arith.subi %383, %c128_i32_277 : i32
      %390 = tpu.assume_multiple %389, 128 : i32
      %c4_278 = arith.constant 4 : index
      %391 = arith.index_cast %390 : i32 to index
      %392 = vector.load %arg1[%c4_278, %391] : memref<8x8192xf32, #tpu.memory_space<vmem>>, vector<4x128xf32>
      %c0_279 = arith.constant 0 : index
      %c0_280 = arith.constant 0 : index
      %393 = vector.load %arg2[%c0_279, %c0_280] : memref<128x4xf32, #tpu.memory_space<vmem>>, vector<128x4xf32>
      %cst_281 = arith.constant dense<0.000000e+00> : vector<128x128xf32>
      %394 = tpu.matmul %393, %392, %cst_281 {dimension_numbers = #tpu.dot_dimension_numbers<[1], [0], [0], [1], [0, 0, 1, 1], [], []>} : vector<128x4xf32>, vector<4x128xf32>, vector<128x128xf32> -> vector<128x128xf32>
      %395 = arith.addf %388, %394 : vector<128x128xf32>
      %c0_282 = arith.constant 0 : index
      %c0_283 = arith.constant 0 : index
      %396 = vector.load %arg5[%c0_282, %c0_283] : memref<128x128xf32, #tpu.memory_space<vmem>>, vector<128x128xf32>
      %397 = arith.addf %395, %396 : vector<128x128xf32>
      %cst_284 = arith.constant 0.000000e+00 : f32
      %398 = vector.broadcast %cst_284 : f32 to vector<128x128xf32>
      %399 = arith.maximumf %397, %398 : vector<128x128xf32>
      %400 = arith.addf %381, %399 : vector<128x128xf32>
      %cst_285 = arith.constant dense<0.000000e+00> : vector<128xf32>
      %401 = vector.multi_reduction <add>, %400, %cst_285 [1] : vector<128x128xf32> to vector<128xf32>
      %402 = vector.shape_cast %401 : vector<128xf32> to vector<128x1xf32>
      %403 = tpu.iota {dimensions = array<i32: 1>} : vector<1x8xi32>
      %404 = vector.broadcast %arg9 : i32 to vector<1x8xi32>
      %405 = arith.cmpi eq, %403, %404 : vector<1x8xi32>
      %406 = arith.extui %405 : vector<1x8xi1> to vector<1x8xi32>
      %407 = arith.sitofp %406 : vector<1x8xi32> to vector<1x8xf32>
      %408 = vector.broadcast %402 : vector<128x1xf32> to vector<128x8xf32>
      %409 = vector.broadcast %407 : vector<1x8xf32> to vector<128x8xf32>
      %410 = arith.mulf %408, %409 : vector<128x8xf32>
      %411 = arith.addf %arg10, %410 : vector<128x8xf32>
      scf.yield %411 : vector<128x8xf32>
    }
    %c8_i32_0 = arith.constant 8 : i32
    %c0 = arith.constant 0 : index
    %c0_1 = arith.constant 0 : index
    %3 = vector.load %arg6[%c0, %c0_1] : memref<128x128xf32, #tpu.memory_space<vmem>>, vector<128x128xf32>
    %cst_2 = arith.constant dense<0.000000e+00> : vector<8x128xf32>
    %4 = tpu.matmul %2, %3, %cst_2 {dimension_numbers = #tpu.dot_dimension_numbers<[0], [0], [1], [1], [0, 1, 1, 1], [], []>} : vector<128x8xf32>, vector<128x128xf32>, vector<8x128xf32> -> vector<8x128xf32>
    %cst_3 = arith.constant 4.8828125E-4 : f32
    %5 = vector.broadcast %cst_3 : f32 to vector<8x128xf32>
    %6 = arith.mulf %4, %5 : vector<8x128xf32>
    %c0_4 = arith.constant 0 : index
    %c0_5 = arith.constant 0 : index
    %7 = vector.load %arg7[%c0_4, %c0_5] : memref<1x128xf32, #tpu.memory_space<vmem>>, vector<1x128xf32>
    %8 = vector.broadcast %7 : vector<1x128xf32> to vector<8x128xf32>
    %9 = arith.addf %6, %8 : vector<8x128xf32>
    %c0_6 = arith.constant 0 : index
    %c0_7 = arith.constant 0 : index
    %10 = vector.load %arg8[%c0_6, %c0_7] : memref<8x128xf32, #tpu.memory_space<vmem>>, vector<8x128xf32>
    tpu.vector_store %arg8[%c0_6, %c0_7], %9 {strides = array<i32>} : memref<8x128xf32, #tpu.memory_space<vmem>>, vector<8x128xf32>,
    return
  }
  func.func @transform_0(%arg0: i32) -> (i32, i32) {
    %c0_i32 = arith.constant 0 : i32
    %c0_i32_0 = arith.constant 0 : i32
    return %c0_i32, %arg0 : i32, i32
  }
  func.func @transform_1(%arg0: i32) -> (i32, i32) {
    %c0_i32 = arith.constant 0 : i32
    %c0_i32_0 = arith.constant 0 : i32
    %c0_i32_1 = arith.constant 0 : i32
    return %c0_i32, %c0_i32_0 : i32, i32
  }
  func.func @transform_2(%arg0: i32) -> (i32, i32) {
    %c0_i32 = arith.constant 0 : i32
    %c0_i32_0 = arith.constant 0 : i32
    %c0_i32_1 = arith.constant 0 : i32
    return %c0_i32, %c0_i32_0 : i32, i32
  }
  func.func @transform_3(%arg0: i32) -> (i32, i32) {
    %c0_i32 = arith.constant 0 : i32
    %c0_i32_0 = arith.constant 0 : i32
    %c0_i32_1 = arith.constant 0 : i32
    return %c0_i32, %c0_i32_0 : i32, i32
  }
  func.func @transform_4(%arg0: i32) -> (i32, i32) {
    %c0_i32 = arith.constant 0 : i32
    %c0_i32_0 = arith.constant 0 : i32
    %c0_i32_1 = arith.constant 0 : i32
    return %c0_i32, %c0_i32_0 : i32, i32
  }
  func.func @transform_5(%arg0: i32) -> (i32, i32) {
    %c0_i32 = arith.constant 0 : i32
    %c0_i32_0 = arith.constant 0 : i32
    %c0_i32_1 = arith.constant 0 : i32
    return %c0_i32, %c0_i32_0 : i32, i32
  }
  func.func @transform_6(%arg0: i32) -> (i32, i32) {
    %c0_i32 = arith.constant 0 : i32
    %c0_i32_0 = arith.constant 0 : i32
    %c0_i32_1 = arith.constant 0 : i32
    return %c0_i32, %c0_i32_0 : i32, i32
  }
  func.func @transform_7(%arg0: i32) -> (i32, i32) {
    %c0_i32 = arith.constant 0 : i32
    %c0_i32_0 = arith.constant 0 : i32
    return %arg0, %c0_i32 : i32, i32
  }
}

</mosaic_0001>

<llo_original>
// kernel: tpu_custom_call.1
$region0: #{tpu_custom_call.1}
  #allocation0 [shape = 'u32[]', space=smem, size = 0x4, offset = 0x4, fixed_abs, tag = 'smem constant byte address 0x4 - core index']
  #allocation1 [shape = 'u32[72,128]{1,0:T(1,128)}', space=vmem, size = 0x9000, scoped, tag = 'internal scratch']
  %s0 = inlined_call_operand.hbm [shape: f32[8,16384], index: 0, kind: input, shape index: {}]
  %s1 = inlined_call_operand.vmem [shape: f32[128,4], index: 1, kind: input, shape index: {}]
  %s2 = inlined_call_operand.vmem [shape: f32[128,4], index: 2, kind: input, shape index: {}]
  %s3 = inlined_call_operand.vmem [shape: f32[128,4], index: 3, kind: input, shape index: {}]
  %s4 = inlined_call_operand.vmem [shape: f32[128,128], index: 4, kind: input, shape index: {}]
  %s5 = inlined_call_operand.vmem [shape: f32[128,128], index: 5, kind: input, shape index: {}]
  %s6 = inlined_call_operand.vmem [shape: f32[1,128], index: 6, kind: input, shape index: {}]
  %s7 = inlined_call_operand.hbm [shape: f32[16,128], index: 7, kind: output, shape index: {}]
  %s8 = sld [smem:[#allocation0]]
  $region72: #{tpu_custom_call.1} parent=0
    _
  %s10 = ssub.s32 1, %s8
  %s11 = scalar_select 0, %s10, %s8
  $region1: #{tpu_custom_call.1} parent=0
    #allocation2 [shape = 'u8[524288]{0}', space=vmem, size = 0x80000, scoped, tag = 'input window, operand 0']
    #allocation3 [shape = 's32[2]{0}', space=sflag, size = 0x8, scoped, tag = 'scoped memory for tpu_custom_call.1']
    #allocation4 [shape = 's32[2]{0}', space=sflag, size = 0x8, scoped, tag = 'scoped memory for tpu_custom_call.1']
    #allocation5 [shape = 'u8[8192]{0}', space=vmem, size = 0x2000, scoped, tag = 'output window, operand 0']
    %12 = vsyncpa [#allocation3], 0
    %s13 = scalar_lea.sflag [#allocation3], 1
    %14 = vsyncpa %s13, 0
    %15 = vsyncpa [#allocation4], 0
    %s16 = scalar_lea.sflag [#allocation4], 1
    %17 = vsyncpa %s16, 0
    loop: start=0, step=1, limit=4
    $region2: #{tpu_custom_call.1} parent=1 // loop_pre_header
      _
    $region3: #{tpu_custom_call.1} parent=1 // loop_header
      %s19 = sphi 0, %s23
      %p20 = scmp.ge.s32.totalorder %s19, 4
      %s29 = sphi 0, %s31
      %s32 = sphi 0, %s29
      %s33 = sphi 0, %s32
      %s49 = sphi 0, %s33
      %s53 = sphi 0, %s53
      %s55 = sphi 0, %s53
      %s56 = sphi 0, %s55
      %s70 = sphi 0, %s56
      %s74 = sphi 0, %s74
      %s76 = sphi 0, %s74
      %s77 = sphi 0, %s76
      %s91 = sphi 0, %s77
      %s95 = sphi 0, %s95
      %s97 = sphi 0, %s95
      %s98 = sphi 0, %s97
      %s112 = sphi 0, %s98
      %s116 = sphi 0, %s116
      %s118 = sphi 0, %s116
      %s119 = sphi 0, %s118
      %s133 = sphi 0, %s119
      %s137 = sphi 0, %s137
      %s139 = sphi 0, %s137
      %s140 = sphi 0, %s139
      %s154 = sphi 0, %s140
      %s158 = sphi 0, %s158
      %s160 = sphi 0, %s158
      %s161 = sphi 0, %s160
      %s175 = sphi 0, %s161
      %s181 = sphi 0, %s183
      %s184 = sphi 0, %s181
      %s185 = sphi 0, %s184
      %s201 = sphi 0, %s185
    $region4: #{tpu_custom_call.1} parent=1 // loop_header_branch
      %22 = sbr.rel (%p20) target = $region8
    $region5: #{tpu_custom_call.1} parent=1 // loop_body
      %s24 = ssub.s32 %s19, 1
      %s25 = ssub.s32 %s19, 2
      %s26 = sadd.s32 %s19, 1
      %s27 = ssub.s32 %s19, %s26
      %p28 = scmp.eq.s32.totalorder %s27, 0
      %s30 = sadd.s32 %s29, 1
      %s31 = scalar_select %p28, %s29, %s30
      %p34 = pneg %p28
      %p35 = scmp.eq.s32.totalorder %s19, 1
      %p36 = por %p34, %p35
      %p37 = scmp.ne.s32.totalorder %s29, %s32
      %p38 = scmp.eq.s32.totalorder %s19, 0
      %p39 = por %p37, %p38
      %p40 = scmp.ne.s32.totalorder %s29, %s32
      %p41 = scmp.eq.s32.totalorder %s24, 1
      %p42 = por %p40, %p41
      %p43 = scmp.ne.s32.totalorder %s32, %s33
      %p44 = scmp.eq.s32.totalorder %s24, 0
      %p45 = por %p43, %p44
      %p46 = scmp.ne.s32.totalorder %s32, %s33
      %p47 = scmp.eq.s32.totalorder %s25, 1
      %p48 = por %p46, %p47
      %p50 = scmp.ne.s32.totalorder %s33, %s49
      %p51 = scmp.eq.s32.totalorder %s25, 0
      %p52 = por %p50, %p51
      %s54 = sadd.s32 %s53, 1
      %p57 = scmp.eq.s32.totalorder %s19, 1
      %p58 = scmp.ne.s32.totalorder %s53, %s55
      %p59 = scmp.eq.s32.totalorder %s19, 0
      %p60 = por %p58, %p59
      %p61 = scmp.ne.s32.totalorder %s53, %s55
      %p62 = scmp.eq.s32.totalorder %s24, 1
      %p63 = por %p61, %p62
      %p64 = scmp.ne.s32.totalorder %s55, %s56
      %p65 = scmp.eq.s32.totalorder %s24, 0
      %p66 = por %p64, %p65
      %p67 = scmp.ne.s32.totalorder %s55, %s56
      %p68 = scmp.eq.s32.totalorder %s25, 1
      %p69 = por %p67, %p68
      %p71 = scmp.ne.s32.totalorder %s56, %s70
      %p72 = scmp.eq.s32.totalorder %s25, 0
      %p73 = por %p71, %p72
      %s75 = sadd.s32 %s74, 1
      %p78 = scmp.eq.s32.totalorder %s19, 1
      %p79 = scmp.ne.s32.totalorder %s74, %s76
      %p80 = scmp.eq.s32.totalorder %s19, 0
      %p81 = por %p79, %p80
      %p82 = scmp.ne.s32.totalorder %s74, %s76
      %p83 = scmp.eq.s32.totalorder %s24, 1
      %p84 = por %p82, %p83
      %p85 = scmp.ne.s32.totalorder %s76, %s77
      %p86 = scmp.eq.s32.totalorder %s24, 0
      %p87 = por %p85, %p86
      %p88 = scmp.ne.s32.totalorder %s76, %s77
      %p89 = scmp.eq.s32.totalorder %s25, 1
      %p90 = por %p88, %p89
      %p92 = scmp.ne.s32.totalorder %s77, %s91
      %p93 = scmp.eq.s32.totalorder %s25, 0
      %p94 = por %p92, %p93
      %s96 = sadd.s32 %s95, 1
      %p99 = scmp.eq.s32.totalorder %s19, 1
      %p100 = scmp.ne.s32.totalorder %s95, %s97
      %p101 = scmp.eq.s32.totalorder %s19, 0
      %p102 = por %p100, %p101
      %p103 = scmp.ne.s32.totalorder %s95, %s97
      %p104 = scmp.eq.s32.totalorder %s24, 1
      %p105 = por %p103, %p104
      %p106 = scmp.ne.s32.totalorder %s97, %s98
      %p107 = scmp.eq.s32.totalorder %s24, 0
      %p108 = por %p106, %p107
      %p109 = scmp.ne.s32.totalorder %s97, %s98
      %p110 = scmp.eq.s32.totalorder %s25, 1
      %p111 = por %p109, %p110
      %p113 = scmp.ne.s32.totalorder %s98, %s112
      %p114 = scmp.eq.s32.totalorder %s25, 0
      %p115 = por %p113, %p114
      %s117 = sadd.s32 %s116, 1
      %p120 = scmp.eq.s32.totalorder %s19, 1
      %p121 = scmp.ne.s32.totalorder %s116, %s118
      %p122 = scmp.eq.s32.totalorder %s19, 0
      %p123 = por %p121, %p122
      %p124 = scmp.ne.s32.totalorder %s116, %s118
      %p125 = scmp.eq.s32.totalorder %s24, 1
      %p126 = por %p124, %p125
      %p127 = scmp.ne.s32.totalorder %s118, %s119
      %p128 = scmp.eq.s32.totalorder %s24, 0
      %p129 = por %p127, %p128
      %p130 = scmp.ne.s32.totalorder %s118, %s119
      %p131 = scmp.eq.s32.totalorder %s25, 1
      %p132 = por %p130, %p131
      %p134 = scmp.ne.s32.totalorder %s119, %s133
      %p135 = scmp.eq.s32.totalorder %s25, 0
      %p136 = por %p134, %p135
      %s138 = sadd.s32 %s137, 1
      %p141 = scmp.eq.s32.totalorder %s19, 1
      %p142 = scmp.ne.s32.totalorder %s137, %s139
      %p143 = scmp.eq.s32.totalorder %s19, 0
      %p144 = por %p142, %p143
      %p145 = scmp.ne.s32.totalorder %s137, %s139
      %p146 = scmp.eq.s32.totalorder %s24, 1
      %p147 = por %p145, %p146
      %p148 = scmp.ne.s32.totalorder %s139, %s140
      %p149 = scmp.eq.s32.totalorder %s24, 0
      %p150 = por %p148, %p149
      %p151 = scmp.ne.s32.totalorder %s139, %s140
      %p152 = scmp.eq.s32.totalorder %s25, 1
      %p153 = por %p151, %p152
      %p155 = scmp.ne.s32.totalorder %s140, %s154
      %p156 = scmp.eq.s32.totalorder %s25, 0
      %p157 = por %p155, %p156
      %s159 = sadd.s32 %s158, 1
      %p162 = scmp.eq.s32.totalorder %s19, 1
      %p163 = scmp.ne.s32.totalorder %s158, %s160
      %p164 = scmp.eq.s32.totalorder %s19, 0
      %p165 = por %p163, %p164
      %p166 = scmp.ne.s32.totalorder %s158, %s160
      %p167 = scmp.eq.s32.totalorder %s24, 1
      %p168 = por %p166, %p167
      %p169 = scmp.ne.s32.totalorder %s160, %s161
      %p170 = scmp.eq.s32.totalorder %s24, 0
      %p171 = por %p169, %p170
      %p172 = scmp.ne.s32.totalorder %s160, %s161
      %p173 = scmp.eq.s32.totalorder %s25, 1
      %p174 = por %p172, %p173
      %p176 = scmp.ne.s32.totalorder %s161, %s175
      %p177 = scmp.eq.s32.totalorder %s25, 0
      %p178 = por %p176, %p177
      %s179 = ssub.s32 %s19, %s26
      %p180 = scmp.eq.s32.totalorder %s179, 0
      %s182 = sadd.s32 %s181, 1
      %s183 = scalar_select %p180, %s181, %s182
      %p186 = pneg %p180
      %p187 = scmp.eq.s32.totalorder %s19, 1
      %p188 = por %p186, %p187
      %p189 = scmp.ne.s32.totalorder %s181, %s184
      %p190 = scmp.eq.s32.totalorder %s19, 0
      %p191 = por %p189, %p190
      %p192 = scmp.ne.s32.totalorder %s181, %s184
      %p193 = scmp.eq.s32.totalorder %s24, 1
      %p194 = por %p192, %p193
      %p195 = scmp.ne.s32.totalorder %s184, %s185
      %p196 = scmp.eq.s32.totalorder %s24, 0
      %p197 = por %p195, %p196
      %p198 = scmp.ne.s32.totalorder %s184, %s185
      %p199 = scmp.eq.s32.totalorder %s25, 1
      %p200 = por %p198, %p199
      %p202 = scmp.ne.s32.totalorder %s185, %s201
      %p203 = scmp.eq.s32.totalorder %s25, 0
      %p204 = por %p202, %p203
      %p205 = scmp.le.s32.totalorder 1, %s19
      %p206 = scmp.lt.s32.totalorder %s19, 3
      %p207 = pnand %p205, %p206
      %p208 = pneg %p207
      // Predicated region
      $region9: #{tpu_custom_call.1} parent=5 // pred_check
        _
      $region10: #{tpu_custom_call.1} parent=5 // pred_check_branch
        %210 = sbr.rel (%p207) target = $region12
      $region11: #{tpu_custom_call.1} parent=5 // pred_region
        %s211 = ssub.s32 %s19, 1
        // Predicated region
        $region13: #{tpu_custom_call.1} parent=11 // pred_check
          %p212 = pneg %p66
        $region14: #{tpu_custom_call.1} parent=11 // pred_check_branch
          %214 = sbr.rel (%p212) target = $region16
        $region15: #{tpu_custom_call.1} parent=11 // pred_region
          _
        $region16: #{tpu_custom_call.1} parent=11 // pred_fallthru
          _
        // Predicated region
        $region17: #{tpu_custom_call.1} parent=11 // pred_check
          %p215 = pneg %p87
        $region18: #{tpu_custom_call.1} parent=11 // pred_check_branch
          %217 = sbr.rel (%p215) target = $region20
        $region19: #{tpu_custom_call.1} parent=11 // pred_region
          _
        $region20: #{tpu_custom_call.1} parent=11 // pred_fallthru
          _
        // Predicated region
        $region21: #{tpu_custom_call.1} parent=11 // pred_check
          %p218 = pneg %p108
        $region22: #{tpu_custom_call.1} parent=11 // pred_check_branch
          %220 = sbr.rel (%p218) target = $region24
        $region23: #{tpu_custom_call.1} parent=11 // pred_region
          _
        $region24: #{tpu_custom_call.1} parent=11 // pred_fallthru
          _
        // Predicated region
        $region25: #{tpu_custom_call.1} parent=11 // pred_check
          %p221 = pneg %p129
        $region26: #{tpu_custom_call.1} parent=11 // pred_check_branch
          %223 = sbr.rel (%p221) target = $region28
        $region27: #{tpu_custom_call.1} parent=11 // pred_region
          _
        $region28: #{tpu_custom_call.1} parent=11 // pred_fallthru
          _
        // Predicated region
        $region29: #{tpu_custom_call.1} parent=11 // pred_check
          %p224 = pneg %p150
        $region30: #{tpu_custom_call.1} parent=11 // pred_check_branch
          %226 = sbr.rel (%p224) target = $region32
        $region31: #{tpu_custom_call.1} parent=11 // pred_region
          _
        $region32: #{tpu_custom_call.1} parent=11 // pred_fallthru
          _
        // Predicated region
        $region33: #{tpu_custom_call.1} parent=11 // pred_check
          %p227 = pneg %p171
        $region34: #{tpu_custom_call.1} parent=11 // pred_check_branch
          %229 = sbr.rel (%p227) target = $region36
        $region35: #{tpu_custom_call.1} parent=11 // pred_region
          _
        $region36: #{tpu_custom_call.1} parent=11 // pred_fallthru
          _
      $region12: #{tpu_custom_call.1} parent=5 // pred_fallthru
        _
      %p230 = scmp.lt.s32.totalorder %s19, 2
      // Predicated region
      $region37: #{tpu_custom_call.1} parent=5 // pred_check
        %p231 = pneg %p230
      $region38: #{tpu_custom_call.1} parent=5 // pred_check_branch
        %233 = sbr.rel (%p231) target = $region40
      $region39: #{tpu_custom_call.1} parent=5 // pred_region
        // Predicated region
        $region41: #{tpu_custom_call.1} parent=39 // pred_check
          %p234 = pneg %p39
        $region42: #{tpu_custom_call.1} parent=39 // pred_check_branch
          %236 = sbr.rel (%p234) target = $region44
        $region43: #{tpu_custom_call.1} parent=39 // pred_region
          %s237 = sand.u32 %s29, 1
          %s238 = scalar_lea.sflag [#allocation3], %s237
          %s239 = sand.u32 %s29, 1
          %s240 = smul.addr %s239, 512
          %s241 = scalar_lea.vmem [#allocation2], %s240
          %s242 = smul.u32 64, %s19
          %244 = vsyncadd %s238, 0
          %s245 = smul.addr %s242, 8
          %s246 = scalar_lea.hbm %s0, %s245
          %s248 = sshll.u32 %s246, 4
          %s249 = int_to_ptr.hbm [resolvable:$true] %s248
          %s250 = sshll.u32 %s241, 4
          %s251 = int_to_ptr.vmem [resolvable:$true] %s250
          %253 = dma.hbm_to_vmem [thread:$0]  %s249, 8192, %s251, %s238
        $region44: #{tpu_custom_call.1} parent=39 // pred_fallthru
          _
      $region40: #{tpu_custom_call.1} parent=5 // pred_fallthru
        _
      %p254 = scmp.le.s32.totalorder 1, %s19
      %p255 = scmp.lt.s32.totalorder %s19, 3
      %p256 = pnand %p254, %p255
      %p257 = pneg %p256
      // Predicated region
      $region45: #{tpu_custom_call.1} parent=5 // pred_check
        _
      $region46: #{tpu_custom_call.1} parent=5 // pred_check_branch
        %259 = sbr.rel (%p256) target = $region48
      $region47: #{tpu_custom_call.1} parent=5 // pred_region
        %s260 = ssub.s32 %s19, 1
        %s261 = sand.u32 %s32, 1
        %s262 = scalar_lea.sflag [#allocation3], %s261
        %s263 = sand.u32 %s32, 1
        %s264 = smul.addr %s263, 512
        %s265 = scalar_lea.vmem [#allocation2], %s264
        // Predicated region
        $region49: #{tpu_custom_call.1} parent=47 // pred_check
          %p266 = pneg %p45
        $region50: #{tpu_custom_call.1} parent=47 // pred_check_branch
          %268 = sbr.rel (%p266) target = $region52
        $region51: #{tpu_custom_call.1} parent=47 // pred_region
          %270 = dma.done %s262, 8192
        $region52: #{tpu_custom_call.1} parent=47 // pred_fallthru
          _
        %s271 = sand.u32 %s32, 1
        %s272 = scalar_lea.sflag [#allocation3], %s271
        %s273 = sand.u32 %s32, 1
        %s274 = smul.addr %s273, 512
        %s275 = scalar_lea.vmem [#allocation2], %s274
        %p276 = pneg %p45
        %p277 = pneg %p42
        %p278 = pneg %p66
        %p279 = pneg %p63
        %p280 = pneg %p87
        %p281 = pneg %p84
        %p282 = pneg %p108
        %p283 = pneg %p105
        %p284 = pneg %p129
        %p285 = pneg %p126
        %p286 = pneg %p150
        %p287 = pneg %p147
        %p288 = pneg %p171
        %p289 = pneg %p168
        %p290 = pneg %p197
        %p291 = pneg %p194
        %s292 = sand.u32 %s184, 1
        %s293 = scalar_lea.sflag [#allocation4], %s292
        %s294 = sand.u32 %s184, 1
        %s295 = smul.addr %s294, 8
        %s296 = scalar_lea.vmem [#allocation5], %s295
        %s297 = smul.u32 64, %s24
        loop: start=0, step=1, limit=8
        $region53: #{tpu_custom_call.1} parent=47 // loop_pre_header
          _
        $region54: #{tpu_custom_call.1} parent=47 // loop_header
          %s299 = sphi 0, %s303
          %p300 = scmp.ge.s32.totalorder %s299, 8
          %v304 = vphi 0.0, %v4516
          %v305 = vphi 0.0, %v4517
          %v306 = vphi 0.0, %v4518
          %v307 = vphi 0.0, %v4519
          %v308 = vphi 0.0, %v4520
          %v309 = vphi 0.0, %v4521
          %v310 = vphi 0.0, %v4522
          %v311 = vphi 0.0, %v4523
          %v312 = vphi 0.0, %v4524
          %v313 = vphi 0.0, %v4525
          %v314 = vphi 0.0, %v4526
          %v315 = vphi 0.0, %v4527
          %v316 = vphi 0.0, %v4528
          %v317 = vphi 0.0, %v4529
          %v318 = vphi 0.0, %v4530
          %v319 = vphi 0.0, %v4531
        $region55: #{tpu_custom_call.1} parent=47 // loop_header_branch
          %302 = sbr.rel (%p300) target = $region59
        $region56: #{tpu_custom_call.1} parent=47 // loop_body
          %s320 = smul.u32 %s299, 1024
          %s321 = sshra.s32 %s320, 7
          %s322 = sand.u32 %s320, 127
          %s323 = smul.addr %s321, 8
          %s324 = scalar_lea.vmem %s265, %s323 [#allocation2]
          %v325 = vld [vmem:[%s324] sm:$0xf]
          %v326 = vld [vmem:[%s2] sm:$0xff]
          %v327 = vld [vmem:[%s2 + $0x8] sm:$0xff]
          %v328 = vld [vmem:[%s2 + $0x10] sm:$0xff]
          %v329 = vld [vmem:[%s2 + $0x18] sm:$0xff]
          %v330 = vld [vmem:[%s2 + $0x20] sm:$0xff]
          %v331 = vld [vmem:[%s2 + $0x28] sm:$0xff]
          %v332 = vld [vmem:[%s2 + $0x30] sm:$0xff]
          %v333 = vld [vmem:[%s2 + $0x38] sm:$0xff]
          %v334 = vld [vmem:[%s2 + $0x40] sm:$0xff]
          %v335 = vld [vmem:[%s2 + $0x48] sm:$0xff]
          %v336 = vld [vmem:[%s2 + $0x50] sm:$0xff]
          %v337 = vld [vmem:[%s2 + $0x58] sm:$0xff]
          %v338 = vld [vmem:[%s2 + $0x60] sm:$0xff]
          %v339 = vld [vmem:[%s2 + $0x68] sm:$0xff]
          %v340 = vld [vmem:[%s2 + $0x70] sm:$0xff]
          %v341 = vld [vmem:[%s2 + $0x78] sm:$0xff]
          %s342 = sadd.s32 %s320, 128
          %s343 = sshra.s32 %s342, 7
          %s344 = sand.u32 %s342, 127
          %s345 = smul.addr %s343, 8
          %s346 = scalar_lea.vmem %s265, %s345 [#allocation2]
          %v347 = vld [vmem:[%s346] sm:$0xf]
          %v348 = vld [vmem:[%s3] sm:$0xff]
          %v349 = vld [vmem:[%s3 + $0x8] sm:$0xff]
          %v350 = vld [vmem:[%s3 + $0x10] sm:$0xff]
          %v351 = vld [vmem:[%s3 + $0x18] sm:$0xff]
          %v352 = vld [vmem:[%s3 + $0x20] sm:$0xff]
          %v353 = vld [vmem:[%s3 + $0x28] sm:$0xff]
          %v354 = vld [vmem:[%s3 + $0x30] sm:$0xff]
          %v355 = vld [vmem:[%s3 + $0x38] sm:$0xff]
          %v356 = vld [vmem:[%s3 + $0x40] sm:$0xff]
          %v357 = vld [vmem:[%s3 + $0x48] sm:$0xff]
          %v358 = vld [vmem:[%s3 + $0x50] sm:$0xff]
          %v359 = vld [vmem:[%s3 + $0x58] sm:$0xff]
          %v360 = vld [vmem:[%s3 + $0x60] sm:$0xff]
          %v361 = vld [vmem:[%s3 + $0x68] sm:$0xff]
          %v362 = vld [vmem:[%s3 + $0x70] sm:$0xff]
          %v363 = vld [vmem:[%s3 + $0x78] sm:$0xff]
          %vm364 = vcmask 31744
          %v366 = vsel %vm364, %v348, 0
          %v369 = vsel %vm364, %v349, 0
          %v372 = vsel %vm364, %v350, 0
          %v375 = vsel %vm364, %v351, 0
          %v378 = vsel %vm364, %v352, 0
          %v381 = vsel %vm364, %v353, 0
          %v384 = vsel %vm364, %v354, 0
          %v387 = vsel %vm364, %v355, 0
          %v390 = vsel %vm364, %v356, 0
          %v393 = vsel %vm364, %v357, 0
          %v396 = vsel %vm364, %v358, 0
          %v399 = vsel %vm364, %v359, 0
          %v402 = vsel %vm364, %v360, 0
          %v405 = vsel %vm364, %v361, 0
          %v408 = vsel %vm364, %v362, 0
          %v411 = vsel %vm364, %v363, 0
          %vm413 = vcmask 1043456
          %v415 = vsel %vm413, %v347, 0
          %417 = vmatpush.msra.mxu0 0.0
          %418 = vmatpush.msra.mxu0 0.0
          %419 = vmatpush.msra.mxu0 0.0
          %420 = vmatpush.msra.mxu0 0.0
          %421 = vmatpush.msra.mxu0 0.0
          %422 = vmatpush.msra.mxu0 0.0
          %423 = vmatpush.msra.mxu0 0.0
          %424 = vmatpush.msra.mxu0 0.0
          %425 = vmatpush.msra.mxu0 0.0
          %426 = vmatpush.msra.mxu0 0.0
          %427 = vmatpush.msra.mxu0 0.0
          %428 = vmatpush.msra.mxu0 0.0
          %429 = vmatpush.msra.mxu0 0.0
          %430 = vmatpush.msra.mxu0 0.0
          %431 = vmatpush.msra.mxu0 0.0
          %432 = vmatpush.msra.mxu0 %v415
          %433 = vmatmul.f32.gmra.mxu0 %v366
          %v434 = vpop.f32.mrf.mxu0
          %v435 = vadd.f32 0.0, %v434
          %436 = vmatmul.f32.gmra.mxu0 %v369
          %v437 = vpop.f32.mrf.mxu0
          %v438 = vadd.f32 0.0, %v437
          %439 = vmatmul.f32.gmra.mxu0 %v372
          %v440 = vpop.f32.mrf.mxu0
          %v441 = vadd.f32 0.0, %v440
          %442 = vmatmul.f32.gmra.mxu0 %v375
          %v443 = vpop.f32.mrf.mxu0
          %v444 = vadd.f32 0.0, %v443
          %445 = vmatmul.f32.gmra.mxu0 %v378
          %v446 = vpop.f32.mrf.mxu0
          %v447 = vadd.f32 0.0, %v446
          %448 = vmatmul.f32.gmra.mxu0 %v381
          %v449 = vpop.f32.mrf.mxu0
          %v450 = vadd.f32 0.0, %v449
          %451 = vmatmul.f32.gmra.mxu0 %v384
          %v452 = vpop.f32.mrf.mxu0
          %v453 = vadd.f32 0.0, %v452
          %454 = vmatmul.f32.gmra.mxu0 %v387
          %v455 = vpop.f32.mrf.mxu0
          %v456 = vadd.f32 0.0, %v455
          %457 = vmatmul.f32.gmra.mxu0 %v390
          %v458 = vpop.f32.mrf.mxu0
          %v459 = vadd.f32 0.0, %v458
          %460 = vmatmul.f32.gmra.mxu0 %v393
          %v461 = vpop.f32.mrf.mxu0
          %v462 = vadd.f32 0.0, %v461
          %463 = vmatmul.f32.gmra.mxu0 %v396
          %v464 = vpop.f32.mrf.mxu0
          %v465 = vadd.f32 0.0, %v464
          %466 = vmatmul.f32.gmra.mxu0 %v399
          %v467 = vpop.f32.mrf.mxu0
          %v468 = vadd.f32 0.0, %v467
          %469 = vmatmul.f32.gmra.mxu0 %v402
          %v470 = vpop.f32.mrf.mxu0
          %v471 = vadd.f32 0.0, %v470
          %472 = vmatmul.f32.gmra.mxu0 %v405
          %v473 = vpop.f32.mrf.mxu0
          %v474 = vadd.f32 0.0, %v473
          %475 = vmatmul.f32.gmra.mxu0 %v408
          %v476 = vpop.f32.mrf.mxu0
          %v477 = vadd.f32 0.0, %v476
          %478 = vmatmul.f32.gmra.mxu0 %v411
          %v479 = vpop.f32.mrf.mxu0
          %v480 = vadd.f32 0.0, %v479
          %481 = vdwg.mxu0
          %v483 = vsel %vm364, %v326, 0
          %v486 = vsel %vm364, %v327, 0
          %v489 = vsel %vm364, %v328, 0
          %v492 = vsel %vm364, %v329, 0
          %v495 = vsel %vm364, %v330, 0
          %v498 = vsel %vm364, %v331, 0
          %v501 = vsel %vm364, %v332, 0
          %v504 = vsel %vm364, %v333, 0
          %v507 = vsel %vm364, %v334, 0
          %v510 = vsel %vm364, %v335, 0
          %v513 = vsel %vm364, %v336, 0
          %v516 = vsel %vm364, %v337, 0
          %v519 = vsel %vm364, %v338, 0
          %v522 = vsel %vm364, %v339, 0
          %v525 = vsel %vm364, %v340, 0
          %v528 = vsel %vm364, %v341, 0
          %v531 = vsel %vm413, %v325, 0
          %533 = vmatpush.msra.mxu0 0.0
          %534 = vmatpush.msra.mxu0 0.0
          %535 = vmatpush.msra.mxu0 0.0
          %536 = vmatpush.msra.mxu0 0.0
          %537 = vmatpush.msra.mxu0 0.0
          %538 = vmatpush.msra.mxu0 0.0
          %539 = vmatpush.msra.mxu0 0.0
          %540 = vmatpush.msra.mxu0 0.0
          %541 = vmatpush.msra.mxu0 0.0
          %542 = vmatpush.msra.mxu0 0.0
          %543 = vmatpush.msra.mxu0 0.0
          %544 = vmatpush.msra.mxu0 0.0
          %545 = vmatpush.msra.mxu0 0.0
          %546 = vmatpush.msra.mxu0 0.0
          %547 = vmatpush.msra.mxu0 0.0
          %548 = vmatpush.msra.mxu0 %v531
          %549 = vmatmul.f32.gmra.mxu0 %v483
          %v550 = vpop.f32.mrf.mxu0
          %v551 = vadd.f32 %v435, %v550
          %552 = vmatmul.f32.gmra.mxu0 %v486
          %v553 = vpop.f32.mrf.mxu0
          %v554 = vadd.f32 %v438, %v553
          %555 = vmatmul.f32.gmra.mxu0 %v489
          %v556 = vpop.f32.mrf.mxu0
          %v557 = vadd.f32 %v441, %v556
          %558 = vmatmul.f32.gmra.mxu0 %v492
          %v559 = vpop.f32.mrf.mxu0
          %v560 = vadd.f32 %v444, %v559
          %561 = vmatmul.f32.gmra.mxu0 %v495
          %v562 = vpop.f32.mrf.mxu0
          %v563 = vadd.f32 %v447, %v562
          %564 = vmatmul.f32.gmra.mxu0 %v498
          %v565 = vpop.f32.mrf.mxu0
          %v566 = vadd.f32 %v450, %v565
          %567 = vmatmul.f32.gmra.mxu0 %v501
          %v568 = vpop.f32.mrf.mxu0
          %v569 = vadd.f32 %v453, %v568
          %570 = vmatmul.f32.gmra.mxu0 %v504
          %v571 = vpop.f32.mrf.mxu0
          %v572 = vadd.f32 %v456, %v571
          %573 = vmatmul.f32.gmra.mxu0 %v507
          %v574 = vpop.f32.mrf.mxu0
          %v575 = vadd.f32 %v459, %v574
          %576 = vmatmul.f32.gmra.mxu0 %v510
          %v577 = vpop.f32.mrf.mxu0
          %v578 = vadd.f32 %v462, %v577
          %579 = vmatmul.f32.gmra.mxu0 %v513
          %v580 = vpop.f32.mrf.mxu0
          %v581 = vadd.f32 %v465, %v580
          %582 = vmatmul.f32.gmra.mxu0 %v516
          %v583 = vpop.f32.mrf.mxu0
          %v584 = vadd.f32 %v468, %v583
          %585 = vmatmul.f32.gmra.mxu0 %v519
          %v586 = vpop.f32.mrf.mxu0
          %v587 = vadd.f32 %v471, %v586
          %588 = vmatmul.f32.gmra.mxu0 %v522
          %v589 = vpop.f32.mrf.mxu0
          %v590 = vadd.f32 %v474, %v589
          %591 = vmatmul.f32.gmra.mxu0 %v525
          %v592 = vpop.f32.mrf.mxu0
          %v593 = vadd.f32 %v477, %v592
          %594 = vmatmul.f32.gmra.mxu0 %v528
          %v595 = vpop.f32.mrf.mxu0
          %v596 = vadd.f32 %v480, %v595
          %597 = vdwg.mxu0
          %v598 = vld [vmem:[%s4] sm:$0xff]
          %v599 = vld [vmem:[%s4 + $0x8] sm:$0xff]
          %v600 = vld [vmem:[%s4 + $0x10] sm:$0xff]
          %v601 = vld [vmem:[%s4 + $0x18] sm:$0xff]
          %v602 = vld [vmem:[%s4 + $0x20] sm:$0xff]
          %v603 = vld [vmem:[%s4 + $0x28] sm:$0xff]
          %v604 = vld [vmem:[%s4 + $0x30] sm:$0xff]
          %v605 = vld [vmem:[%s4 + $0x38] sm:$0xff]
          %v606 = vld [vmem:[%s4 + $0x40] sm:$0xff]
          %v607 = vld [vmem:[%s4 + $0x48] sm:$0xff]
          %v608 = vld [vmem:[%s4 + $0x50] sm:$0xff]
          %v609 = vld [vmem:[%s4 + $0x58] sm:$0xff]
          %v610 = vld [vmem:[%s4 + $0x60] sm:$0xff]
          %v611 = vld [vmem:[%s4 + $0x68] sm:$0xff]
          %v612 = vld [vmem:[%s4 + $0x70] sm:$0xff]
          %v613 = vld [vmem:[%s4 + $0x78] sm:$0xff]
          %v614 = vadd.f32 %v551, %v598
          %v615 = vadd.f32 %v554, %v599
          %v616 = vadd.f32 %v557, %v600
          %v617 = vadd.f32 %v560, %v601
          %v618 = vadd.f32 %v563, %v602
          %v619 = vadd.f32 %v566, %v603
          %v620 = vadd.f32 %v569, %v604
          %v621 = vadd.f32 %v572, %v605
          %v622 = vadd.f32 %v575, %v606
          %v623 = vadd.f32 %v578, %v607
          %v624 = vadd.f32 %v581, %v608
          %v625 = vadd.f32 %v584, %v609
          %v626 = vadd.f32 %v587, %v610
          %v627 = vadd.f32 %v590, %v611
          %v628 = vadd.f32 %v593, %v612
          %v629 = vadd.f32 %v596, %v613
          %v630 = vmax.f32 %v614, 0.0
          %v631 = vmax.f32 %v615, 0.0
          %v632 = vmax.f32 %v616, 0.0
          %v633 = vmax.f32 %v617, 0.0
          %v634 = vmax.f32 %v618, 0.0
          %v635 = vmax.f32 %v619, 0.0
          %v636 = vmax.f32 %v620, 0.0
          %v637 = vmax.f32 %v621, 0.0
          %v638 = vmax.f32 %v622, 0.0
          %v639 = vmax.f32 %v623, 0.0
          %v640 = vmax.f32 %v624, 0.0
          %v641 = vmax.f32 %v625, 0.0
          %v642 = vmax.f32 %v626, 0.0
          %v643 = vmax.f32 %v627, 0.0
          %v644 = vmax.f32 %v628, 0.0
          %v645 = vmax.f32 %v629, 0.0
          %v646 = vadd.f32 %v630, 0.0
          %v647 = vadd.f32 %v631, 0.0
          %v648 = vadd.f32 %v632, 0.0
          %v649 = vadd.f32 %v633, 0.0
          %v650 = vadd.f32 %v634, 0.0
          %v651 = vadd.f32 %v635, 0.0
          %v652 = vadd.f32 %v636, 0.0
          %v653 = vadd.f32 %v637, 0.0
          %v654 = vadd.f32 %v638, 0.0
          %v655 = vadd.f32 %v639, 0.0
          %v656 = vadd.f32 %v640, 0.0
          %v657 = vadd.f32 %v641, 0.0
          %v658 = vadd.f32 %v642, 0.0
          %v659 = vadd.f32 %v643, 0.0
          %v660 = vadd.f32 %v644, 0.0
          %v661 = vadd.f32 %v645, 0.0
          %v662 = vld [vmem:[%s1] sm:$0xff]
          %v663 = vld [vmem:[%s1 + $0x8] sm:$0xff]
          %v664 = vld [vmem:[%s1 + $0x10] sm:$0xff]
          %v665 = vld [vmem:[%s1 + $0x18] sm:$0xff]
          %v666 = vld [vmem:[%s1 + $0x20] sm:$0xff]
          %v667 = vld [vmem:[%s1 + $0x28] sm:$0xff]
          %v668 = vld [vmem:[%s1 + $0x30] sm:$0xff]
          %v669 = vld [vmem:[%s1 + $0x38] sm:$0xff]
          %v670 = vld [vmem:[%s1 + $0x40] sm:$0xff]
          %v671 = vld [vmem:[%s1 + $0x48] sm:$0xff]
          %v672 = vld [vmem:[%s1 + $0x50] sm:$0xff]
          %v673 = vld [vmem:[%s1 + $0x58] sm:$0xff]
          %v674 = vld [vmem:[%s1 + $0x60] sm:$0xff]
          %v675 = vld [vmem:[%s1 + $0x68] sm:$0xff]
          %v676 = vld [vmem:[%s1 + $0x70] sm:$0xff]
          %v677 = vld [vmem:[%s1 + $0x78] sm:$0xff]
          %v679 = vsel %vm364, %v662, 0
          %v682 = vsel %vm364, %v663, 0
          %v685 = vsel %vm364, %v664, 0
          %v688 = vsel %vm364, %v665, 0
          %v691 = vsel %vm364, %v666, 0
          %v694 = vsel %vm364, %v667, 0
          %v697 = vsel %vm364, %v668, 0
          %v700 = vsel %vm364, %v669, 0
          %v703 = vsel %vm364, %v670, 0
          %v706 = vsel %vm364, %v671, 0
          %v709 = vsel %vm364, %v672, 0
          %v712 = vsel %vm364, %v673, 0
          %v715 = vsel %vm364, %v674, 0
          %v718 = vsel %vm364, %v675, 0
          %v721 = vsel %vm364, %v676, 0
          %v724 = vsel %vm364, %v677, 0
          %726 = vmatpush.msra.mxu0 0.0
          %727 = vmatpush.msra.mxu0 0.0
          %728 = vmatpush.msra.mxu0 0.0
          %729 = vmatpush.msra.mxu0 0.0
          %730 = vmatpush.msra.mxu0 0.0
          %731 = vmatpush.msra.mxu0 0.0
          %732 = vmatpush.msra.mxu0 0.0
          %733 = vmatpush.msra.mxu0 0.0
          %734 = vmatpush.msra.mxu0 0.0
          %735 = vmatpush.msra.mxu0 0.0
          %736 = vmatpush.msra.mxu0 0.0
          %737 = vmatpush.msra.mxu0 0.0
          %738 = vmatpush.msra.mxu0 0.0
          %739 = vmatpush.msra.mxu0 0.0
          %740 = vmatpush.msra.mxu0 0.0
          %741 = vmatpush.msra.mxu0 %v531
          %742 = vmatmul.f32.gmra.mxu0 %v679
          %v743 = vpop.f32.mrf.mxu0
          %v744 = vadd.f32 0.0, %v743
          %745 = vmatmul.f32.gmra.mxu0 %v682
          %v746 = vpop.f32.mrf.mxu0
          %v747 = vadd.f32 0.0, %v746
          %748 = vmatmul.f32.gmra.mxu0 %v685
          %v749 = vpop.f32.mrf.mxu0
          %v750 = vadd.f32 0.0, %v749
          %751 = vmatmul.f32.gmra.mxu0 %v688
          %v752 = vpop.f32.mrf.mxu0
          %v753 = vadd.f32 0.0, %v752
          %754 = vmatmul.f32.gmra.mxu0 %v691
          %v755 = vpop.f32.mrf.mxu0
          %v756 = vadd.f32 0.0, %v755
          %757 = vmatmul.f32.gmra.mxu0 %v694
          %v758 = vpop.f32.mrf.mxu0
          %v759 = vadd.f32 0.0, %v758
          %760 = vmatmul.f32.gmra.mxu0 %v697
          %v761 = vpop.f32.mrf.mxu0
          %v762 = vadd.f32 0.0, %v761
          %763 = vmatmul.f32.gmra.mxu0 %v700
          %v764 = vpop.f32.mrf.mxu0
          %v765 = vadd.f32 0.0, %v764
          %766 = vmatmul.f32.gmra.mxu0 %v703
          %v767 = vpop.f32.mrf.mxu0
          %v768 = vadd.f32 0.0, %v767
          %769 = vmatmul.f32.gmra.mxu0 %v706
          %v770 = vpop.f32.mrf.mxu0
          %v771 = vadd.f32 0.0, %v770
          %772 = vmatmul.f32.gmra.mxu0 %v709
          %v773 = vpop.f32.mrf.mxu0
          %v774 = vadd.f32 0.0, %v773
          %775 = vmatmul.f32.gmra.mxu0 %v712
          %v776 = vpop.f32.mrf.mxu0
          %v777 = vadd.f32 0.0, %v776
          %778 = vmatmul.f32.gmra.mxu0 %v715
          %v779 = vpop.f32.mrf.mxu0
          %v780 = vadd.f32 0.0, %v779
          %781 = vmatmul.f32.gmra.mxu0 %v718
          %v782 = vpop.f32.mrf.mxu0
          %v783 = vadd.f32 0.0, %v782
          %784 = vmatmul.f32.gmra.mxu0 %v721
          %v785 = vpop.f32.mrf.mxu0
          %v786 = vadd.f32 0.0, %v785
          %787 = vmatmul.f32.gmra.mxu0 %v724
          %v788 = vpop.f32.mrf.mxu0
          %v789 = vadd.f32 0.0, %v788
          %790 = vdwg.mxu0
          %791 = vmatpush.msra.mxu0 0.0
          %792 = vmatpush.msra.mxu0 0.0
          %793 = vmatpush.msra.mxu0 0.0
          %794 = vmatpush.msra.mxu0 0.0
          %795 = vmatpush.msra.mxu0 0.0
          %796 = vmatpush.msra.mxu0 0.0
          %797 = vmatpush.msra.mxu0 0.0
          %798 = vmatpush.msra.mxu0 0.0
          %799 = vmatpush.msra.mxu0 0.0
          %800 = vmatpush.msra.mxu0 0.0
          %801 = vmatpush.msra.mxu0 0.0
          %802 = vmatpush.msra.mxu0 0.0
          %803 = vmatpush.msra.mxu0 0.0
          %804 = vmatpush.msra.mxu0 0.0
          %805 = vmatpush.msra.mxu0 0.0
          %806 = vmatpush.msra.mxu0 %v415
          %807 = vmatmul.f32.gmra.mxu0 %v483
          %v808 = vpop.f32.mrf.mxu0
          %v809 = vadd.f32 %v744, %v808
          %810 = vmatmul.f32.gmra.mxu0 %v486
          %v811 = vpop.f32.mrf.mxu0
          %v812 = vadd.f32 %v747, %v811
          %813 = vmatmul.f32.gmra.mxu0 %v489
          %v814 = vpop.f32.mrf.mxu0
          %v815 = vadd.f32 %v750, %v814
          %816 = vmatmul.f32.gmra.mxu0 %v492
          %v817 = vpop.f32.mrf.mxu0
          %v818 = vadd.f32 %v753, %v817
          %819 = vmatmul.f32.gmra.mxu0 %v495
          %v820 = vpop.f32.mrf.mxu0
          %v821 = vadd.f32 %v756, %v820
          %822 = vmatmul.f32.gmra.mxu0 %v498
          %v823 = vpop.f32.mrf.mxu0
          %v824 = vadd.f32 %v759, %v823
          %825 = vmatmul.f32.gmra.mxu0 %v501
          %v826 = vpop.f32.mrf.mxu0
          %v827 = vadd.f32 %v762, %v826
          %828 = vmatmul.f32.gmra.mxu0 %v504
          %v829 = vpop.f32.mrf.mxu0
          %v830 = vadd.f32 %v765, %v829
          %831 = vmatmul.f32.gmra.mxu0 %v507
          %v832 = vpop.f32.mrf.mxu0
          %v833 = vadd.f32 %v768, %v832
          %834 = vmatmul.f32.gmra.mxu0 %v510
          %v835 = vpop.f32.mrf.mxu0
          %v836 = vadd.f32 %v771, %v835
          %837 = vmatmul.f32.gmra.mxu0 %v513
          %v838 = vpop.f32.mrf.mxu0
          %v839 = vadd.f32 %v774, %v838
          %840 = vmatmul.f32.gmra.mxu0 %v516
          %v841 = vpop.f32.mrf.mxu0
          %v842 = vadd.f32 %v777, %v841
          %843 = vmatmul.f32.gmra.mxu0 %v519
          %v844 = vpop.f32.mrf.mxu0
          %v845 = vadd.f32 %v780, %v844
          %846 = vmatmul.f32.gmra.mxu0 %v522
          %v847 = vpop.f32.mrf.mxu0
          %v848 = vadd.f32 %v783, %v847
          %849 = vmatmul.f32.gmra.mxu0 %v525
          %v850 = vpop.f32.mrf.mxu0
          %v851 = vadd.f32 %v786, %v850
          %852 = vmatmul.f32.gmra.mxu0 %v528
          %v853 = vpop.f32.mrf.mxu0
          %v854 = vadd.f32 %v789, %v853
          %855 = vdwg.mxu0
          %s856 = sadd.s32 %s320, 256
          %s857 = sshra.s32 %s856, 7
          %s858 = sand.u32 %s856, 127
          %s859 = smul.addr %s857, 8
          %s860 = scalar_lea.vmem %s265, %s859 [#allocation2]
          %v861 = vld [vmem:[%s860] sm:$0xf]
          %v863 = vsel %vm413, %v861, 0
          %865 = vmatpush.msra.mxu0 0.0
          %866 = vmatpush.msra.mxu0 0.0
          %867 = vmatpush.msra.mxu0 0.0
          %868 = vmatpush.msra.mxu0 0.0
          %869 = vmatpush.msra.mxu0 0.0
          %870 = vmatpush.msra.mxu0 0.0
          %871 = vmatpush.msra.mxu0 0.0
          %872 = vmatpush.msra.mxu0 0.0
          %873 = vmatpush.msra.mxu0 0.0
          %874 = vmatpush.msra.mxu0 0.0
          %875 = vmatpush.msra.mxu0 0.0
          %876 = vmatpush.msra.mxu0 0.0
          %877 = vmatpush.msra.mxu0 0.0
          %878 = vmatpush.msra.mxu0 0.0
          %879 = vmatpush.msra.mxu0 0.0
          %880 = vmatpush.msra.mxu0 %v863
          %881 = vmatmul.f32.gmra.mxu0 %v366
          %v882 = vpop.f32.mrf.mxu0
          %v883 = vadd.f32 0.0, %v882
          %884 = vmatmul.f32.gmra.mxu0 %v369
          %v885 = vpop.f32.mrf.mxu0
          %v886 = vadd.f32 0.0, %v885
          %887 = vmatmul.f32.gmra.mxu0 %v372
          %v888 = vpop.f32.mrf.mxu0
          %v889 = vadd.f32 0.0, %v888
          %890 = vmatmul.f32.gmra.mxu0 %v375
          %v891 = vpop.f32.mrf.mxu0
          %v892 = vadd.f32 0.0, %v891
          %893 = vmatmul.f32.gmra.mxu0 %v378
          %v894 = vpop.f32.mrf.mxu0
          %v895 = vadd.f32 0.0, %v894
          %896 = vmatmul.f32.gmra.mxu0 %v381
          %v897 = vpop.f32.mrf.mxu0
          %v898 = vadd.f32 0.0, %v897
          %899 = vmatmul.f32.gmra.mxu0 %v384
          %v900 = vpop.f32.mrf.mxu0
          %v901 = vadd.f32 0.0, %v900
          %902 = vmatmul.f32.gmra.mxu0 %v387
          %v903 = vpop.f32.mrf.mxu0
          %v904 = vadd.f32 0.0, %v903
          %905 = vmatmul.f32.gmra.mxu0 %v390
          %v906 = vpop.f32.mrf.mxu0
          %v907 = vadd.f32 0.0, %v906
          %908 = vmatmul.f32.gmra.mxu0 %v393
          %v909 = vpop.f32.mrf.mxu0
          %v910 = vadd.f32 0.0, %v909
          %911 = vmatmul.f32.gmra.mxu0 %v396
          %v912 = vpop.f32.mrf.mxu0
          %v913 = vadd.f32 0.0, %v912
          %914 = vmatmul.f32.gmra.mxu0 %v399
          %v915 = vpop.f32.mrf.mxu0
          %v916 = vadd.f32 0.0, %v915
          %917 = vmatmul.f32.gmra.mxu0 %v402
          %v918 = vpop.f32.mrf.mxu0
          %v919 = vadd.f32 0.0, %v918
          %920 = vmatmul.f32.gmra.mxu0 %v405
          %v921 = vpop.f32.mrf.mxu0
          %v922 = vadd.f32 0.0, %v921
          %923 = vmatmul.f32.gmra.mxu0 %v408
          %v924 = vpop.f32.mrf.mxu0
          %v925 = vadd.f32 0.0, %v924
          %926 = vmatmul.f32.gmra.mxu0 %v411
          %v927 = vpop.f32.mrf.mxu0
          %v928 = vadd.f32 0.0, %v927
          %929 = vdwg.mxu0
          %v930 = vadd.f32 %v809, %v883
          %v931 = vadd.f32 %v812, %v886
          %v932 = vadd.f32 %v815, %v889
          %v933 = vadd.f32 %v818, %v892
          %v934 = vadd.f32 %v821, %v895
          %v935 = vadd.f32 %v824, %v898
          %v936 = vadd.f32 %v827, %v901
          %v937 = vadd.f32 %v830, %v904
          %v938 = vadd.f32 %v833, %v907
          %v939 = vadd.f32 %v836, %v910
          %v940 = vadd.f32 %v839, %v913
          %v941 = vadd.f32 %v842, %v916
          %v942 = vadd.f32 %v845, %v919
          %v943 = vadd.f32 %v848, %v922
          %v944 = vadd.f32 %v851, %v925
          %v945 = vadd.f32 %v854, %v928
          %v946 = vadd.f32 %v930, %v598
          %v947 = vadd.f32 %v931, %v599
          %v948 = vadd.f32 %v932, %v600
          %v949 = vadd.f32 %v933, %v601
          %v950 = vadd.f32 %v934, %v602
          %v951 = vadd.f32 %v935, %v603
          %v952 = vadd.f32 %v936, %v604
          %v953 = vadd.f32 %v937, %v605
          %v954 = vadd.f32 %v938, %v606
          %v955 = vadd.f32 %v939, %v607
          %v956 = vadd.f32 %v940, %v608
          %v957 = vadd.f32 %v941, %v609
          %v958 = vadd.f32 %v942, %v610
          %v959 = vadd.f32 %v943, %v611
          %v960 = vadd.f32 %v944, %v612
          %v961 = vadd.f32 %v945, %v613
          %v962 = vmax.f32 %v946, 0.0
          %v963 = vmax.f32 %v947, 0.0
          %v964 = vmax.f32 %v948, 0.0
          %v965 = vmax.f32 %v949, 0.0
          %v966 = vmax.f32 %v950, 0.0
          %v967 = vmax.f32 %v951, 0.0
          %v968 = vmax.f32 %v952, 0.0
          %v969 = vmax.f32 %v953, 0.0
          %v970 = vmax.f32 %v954, 0.0
          %v971 = vmax.f32 %v955, 0.0
          %v972 = vmax.f32 %v956, 0.0
          %v973 = vmax.f32 %v957, 0.0
          %v974 = vmax.f32 %v958, 0.0
          %v975 = vmax.f32 %v959, 0.0
          %v976 = vmax.f32 %v960, 0.0
          %v977 = vmax.f32 %v961, 0.0
          %v978 = vadd.f32 %v646, %v962
          %v979 = vadd.f32 %v647, %v963
          %v980 = vadd.f32 %v648, %v964
          %v981 = vadd.f32 %v649, %v965
          %v982 = vadd.f32 %v650, %v966
          %v983 = vadd.f32 %v651, %v967
          %v984 = vadd.f32 %v652, %v968
          %v985 = vadd.f32 %v653, %v969
          %v986 = vadd.f32 %v654, %v970
          %v987 = vadd.f32 %v655, %v971
          %v988 = vadd.f32 %v656, %v972
          %v989 = vadd.f32 %v657, %v973
          %v990 = vadd.f32 %v658, %v974
          %v991 = vadd.f32 %v659, %v975
          %v992 = vadd.f32 %v660, %v976
          %v993 = vadd.f32 %v661, %v977
          %994 = vmatpush.msra.mxu0 0.0
          %995 = vmatpush.msra.mxu0 0.0
          %996 = vmatpush.msra.mxu0 0.0
          %997 = vmatpush.msra.mxu0 0.0
          %998 = vmatpush.msra.mxu0 0.0
          %999 = vmatpush.msra.mxu0 0.0
          %1000 = vmatpush.msra.mxu0 0.0
          %1001 = vmatpush.msra.mxu0 0.0
          %1002 = vmatpush.msra.mxu0 0.0
          %1003 = vmatpush.msra.mxu0 0.0
          %1004 = vmatpush.msra.mxu0 0.0
          %1005 = vmatpush.msra.mxu0 0.0
          %1006 = vmatpush.msra.mxu0 0.0
          %1007 = vmatpush.msra.mxu0 0.0
          %1008 = vmatpush.msra.mxu0 0.0
          %1009 = vmatpush.msra.mxu0 %v415
          %1010 = vmatmul.f32.gmra.mxu0 %v679
          %v1011 = vpop.f32.mrf.mxu0
          %v1012 = vadd.f32 0.0, %v1011
          %1013 = vmatmul.f32.gmra.mxu0 %v682
          %v1014 = vpop.f32.mrf.mxu0
          %v1015 = vadd.f32 0.0, %v1014
          %1016 = vmatmul.f32.gmra.mxu0 %v685
          %v1017 = vpop.f32.mrf.mxu0
          %v1018 = vadd.f32 0.0, %v1017
          %1019 = vmatmul.f32.gmra.mxu0 %v688
          %v1020 = vpop.f32.mrf.mxu0
          %v1021 = vadd.f32 0.0, %v1020
          %1022 = vmatmul.f32.gmra.mxu0 %v691
          %v1023 = vpop.f32.mrf.mxu0
          %v1024 = vadd.f32 0.0, %v1023
          %1025 = vmatmul.f32.gmra.mxu0 %v694
          %v1026 = vpop.f32.mrf.mxu0
          %v1027 = vadd.f32 0.0, %v1026
          %1028 = vmatmul.f32.gmra.mxu0 %v697
          %v1029 = vpop.f32.mrf.mxu0
          %v1030 = vadd.f32 0.0, %v1029
          %1031 = vmatmul.f32.gmra.mxu0 %v700
          %v1032 = vpop.f32.mrf.mxu0
          %v1033 = vadd.f32 0.0, %v1032
          %1034 = vmatmul.f32.gmra.mxu0 %v703
          %v1035 = vpop.f32.mrf.mxu0
          %v1036 = vadd.f32 0.0, %v1035
          %1037 = vmatmul.f32.gmra.mxu0 %v706
          %v1038 = vpop.f32.mrf.mxu0
          %v1039 = vadd.f32 0.0, %v1038
          %1040 = vmatmul.f32.gmra.mxu0 %v709
          %v1041 = vpop.f32.mrf.mxu0
          %v1042 = vadd.f32 0.0, %v1041
          %1043 = vmatmul.f32.gmra.mxu0 %v712
          %v1044 = vpop.f32.mrf.mxu0
          %v1045 = vadd.f32 0.0, %v1044
          %1046 = vmatmul.f32.gmra.mxu0 %v715
          %v1047 = vpop.f32.mrf.mxu0
          %v1048 = vadd.f32 0.0, %v1047
          %1049 = vmatmul.f32.gmra.mxu0 %v718
          %v1050 = vpop.f32.mrf.mxu0
          %v1051 = vadd.f32 0.0, %v1050
          %1052 = vmatmul.f32.gmra.mxu0 %v721
          %v1053 = vpop.f32.mrf.mxu0
          %v1054 = vadd.f32 0.0, %v1053
          %1055 = vmatmul.f32.gmra.mxu0 %v724
          %v1056 = vpop.f32.mrf.mxu0
          %v1057 = vadd.f32 0.0, %v1056
          %1058 = vdwg.mxu0
          %1059 = vmatpush.msra.mxu0 0.0
          %1060 = vmatpush.msra.mxu0 0.0
          %1061 = vmatpush.msra.mxu0 0.0
          %1062 = vmatpush.msra.mxu0 0.0
          %1063 = vmatpush.msra.mxu0 0.0
          %1064 = vmatpush.msra.mxu0 0.0
          %1065 = vmatpush.msra.mxu0 0.0
          %1066 = vmatpush.msra.mxu0 0.0
          %1067 = vmatpush.msra.mxu0 0.0
          %1068 = vmatpush.msra.mxu0 0.0
          %1069 = vmatpush.msra.mxu0 0.0
          %1070 = vmatpush.msra.mxu0 0.0
          %1071 = vmatpush.msra.mxu0 0.0
          %1072 = vmatpush.msra.mxu0 0.0
          %1073 = vmatpush.msra.mxu0 0.0
          %1074 = vmatpush.msra.mxu0 %v863
          %1075 = vmatmul.f32.gmra.mxu0 %v483
          %v1076 = vpop.f32.mrf.mxu0
          %v1077 = vadd.f32 %v1012, %v1076
          %1078 = vmatmul.f32.gmra.mxu0 %v486
          %v1079 = vpop.f32.mrf.mxu0
          %v1080 = vadd.f32 %v1015, %v1079
          %1081 = vmatmul.f32.gmra.mxu0 %v489
          %v1082 = vpop.f32.mrf.mxu0
          %v1083 = vadd.f32 %v1018, %v1082
          %1084 = vmatmul.f32.gmra.mxu0 %v492
          %v1085 = vpop.f32.mrf.mxu0
          %v1086 = vadd.f32 %v1021, %v1085
          %1087 = vmatmul.f32.gmra.mxu0 %v495
          %v1088 = vpop.f32.mrf.mxu0
          %v1089 = vadd.f32 %v1024, %v1088
          %1090 = vmatmul.f32.gmra.mxu0 %v498
          %v1091 = vpop.f32.mrf.mxu0
          %v1092 = vadd.f32 %v1027, %v1091
          %1093 = vmatmul.f32.gmra.mxu0 %v501
          %v1094 = vpop.f32.mrf.mxu0
          %v1095 = vadd.f32 %v1030, %v1094
          %1096 = vmatmul.f32.gmra.mxu0 %v504
          %v1097 = vpop.f32.mrf.mxu0
          %v1098 = vadd.f32 %v1033, %v1097
          %1099 = vmatmul.f32.gmra.mxu0 %v507
          %v1100 = vpop.f32.mrf.mxu0
          %v1101 = vadd.f32 %v1036, %v1100
          %1102 = vmatmul.f32.gmra.mxu0 %v510
          %v1103 = vpop.f32.mrf.mxu0
          %v1104 = vadd.f32 %v1039, %v1103
          %1105 = vmatmul.f32.gmra.mxu0 %v513
          %v1106 = vpop.f32.mrf.mxu0
          %v1107 = vadd.f32 %v1042, %v1106
          %1108 = vmatmul.f32.gmra.mxu0 %v516
          %v1109 = vpop.f32.mrf.mxu0
          %v1110 = vadd.f32 %v1045, %v1109
          %1111 = vmatmul.f32.gmra.mxu0 %v519
          %v1112 = vpop.f32.mrf.mxu0
          %v1113 = vadd.f32 %v1048, %v1112
          %1114 = vmatmul.f32.gmra.mxu0 %v522
          %v1115 = vpop.f32.mrf.mxu0
          %v1116 = vadd.f32 %v1051, %v1115
          %1117 = vmatmul.f32.gmra.mxu0 %v525
          %v1118 = vpop.f32.mrf.mxu0
          %v1119 = vadd.f32 %v1054, %v1118
          %1120 = vmatmul.f32.gmra.mxu0 %v528
          %v1121 = vpop.f32.mrf.mxu0
          %v1122 = vadd.f32 %v1057, %v1121
          %1123 = vdwg.mxu0
          %s1124 = sadd.s32 %s320, 384
          %s1125 = sshra.s32 %s1124, 7
          %s1126 = sand.u32 %s1124, 127
          %s1127 = smul.addr %s1125, 8
          %s1128 = scalar_lea.vmem %s265, %s1127 [#allocation2]
          %v1129 = vld [vmem:[%s1128] sm:$0xf]
          %v1131 = vsel %vm413, %v1129, 0
          %1133 = vmatpush.msra.mxu0 0.0
          %1134 = vmatpush.msra.mxu0 0.0
          %1135 = vmatpush.msra.mxu0 0.0
          %1136 = vmatpush.msra.mxu0 0.0
          %1137 = vmatpush.msra.mxu0 0.0
          %1138 = vmatpush.msra.mxu0 0.0
          %1139 = vmatpush.msra.mxu0 0.0
          %1140 = vmatpush.msra.mxu0 0.0
          %1141 = vmatpush.msra.mxu0 0.0
          %1142 = vmatpush.msra.mxu0 0.0
          %1143 = vmatpush.msra.mxu0 0.0
          %1144 = vmatpush.msra.mxu0 0.0
          %1145 = vmatpush.msra.mxu0 0.0
          %1146 = vmatpush.msra.mxu0 0.0
          %1147 = vmatpush.msra.mxu0 0.0
          %1148 = vmatpush.msra.mxu0 %v1131
          %1149 = vmatmul.f32.gmra.mxu0 %v366
          %v1150 = vpop.f32.mrf.mxu0
          %v1151 = vadd.f32 0.0, %v1150
          %1152 = vmatmul.f32.gmra.mxu0 %v369
          %v1153 = vpop.f32.mrf.mxu0
          %v1154 = vadd.f32 0.0, %v1153
          %1155 = vmatmul.f32.gmra.mxu0 %v372
          %v1156 = vpop.f32.mrf.mxu0
          %v1157 = vadd.f32 0.0, %v1156
          %1158 = vmatmul.f32.gmra.mxu0 %v375
          %v1159 = vpop.f32.mrf.mxu0
          %v1160 = vadd.f32 0.0, %v1159
          %1161 = vmatmul.f32.gmra.mxu0 %v378
          %v1162 = vpop.f32.mrf.mxu0
          %v1163 = vadd.f32 0.0, %v1162
          %1164 = vmatmul.f32.gmra.mxu0 %v381
          %v1165 = vpop.f32.mrf.mxu0
          %v1166 = vadd.f32 0.0, %v1165
          %1167 = vmatmul.f32.gmra.mxu0 %v384
          %v1168 = vpop.f32.mrf.mxu0
          %v1169 = vadd.f32 0.0, %v1168
          %1170 = vmatmul.f32.gmra.mxu0 %v387
          %v1171 = vpop.f32.mrf.mxu0
          %v1172 = vadd.f32 0.0, %v1171
          %1173 = vmatmul.f32.gmra.mxu0 %v390
          %v1174 = vpop.f32.mrf.mxu0
          %v1175 = vadd.f32 0.0, %v1174
          %1176 = vmatmul.f32.gmra.mxu0 %v393
          %v1177 = vpop.f32.mrf.mxu0
          %v1178 = vadd.f32 0.0, %v1177
          %1179 = vmatmul.f32.gmra.mxu0 %v396
          %v1180 = vpop.f32.mrf.mxu0
          %v1181 = vadd.f32 0.0, %v1180
          %1182 = vmatmul.f32.gmra.mxu0 %v399
          %v1183 = vpop.f32.mrf.mxu0
          %v1184 = vadd.f32 0.0, %v1183
          %1185 = vmatmul.f32.gmra.mxu0 %v402
          %v1186 = vpop.f32.mrf.mxu0
          %v1187 = vadd.f32 0.0, %v1186
          %1188 = vmatmul.f32.gmra.mxu0 %v405
          %v1189 = vpop.f32.mrf.mxu0
          %v1190 = vadd.f32 0.0, %v1189
          %1191 = vmatmul.f32.gmra.mxu0 %v408
          %v1192 = vpop.f32.mrf.mxu0
          %v1193 = vadd.f32 0.0, %v1192
          %1194 = vmatmul.f32.gmra.mxu0 %v411
          %v1195 = vpop.f32.mrf.mxu0
          %v1196 = vadd.f32 0.0, %v1195
          %1197 = vdwg.mxu0
          %v1198 = vadd.f32 %v1077, %v1151
          %v1199 = vadd.f32 %v1080, %v1154
          %v1200 = vadd.f32 %v1083, %v1157
          %v1201 = vadd.f32 %v1086, %v1160
          %v1202 = vadd.f32 %v1089, %v1163
          %v1203 = vadd.f32 %v1092, %v1166
          %v1204 = vadd.f32 %v1095, %v1169
          %v1205 = vadd.f32 %v1098, %v1172
          %v1206 = vadd.f32 %v1101, %v1175
          %v1207 = vadd.f32 %v1104, %v1178
          %v1208 = vadd.f32 %v1107, %v1181
          %v1209 = vadd.f32 %v1110, %v1184
          %v1210 = vadd.f32 %v1113, %v1187
          %v1211 = vadd.f32 %v1116, %v1190
          %v1212 = vadd.f32 %v1119, %v1193
          %v1213 = vadd.f32 %v1122, %v1196
          %v1214 = vadd.f32 %v1198, %v598
          %v1215 = vadd.f32 %v1199, %v599
          %v1216 = vadd.f32 %v1200, %v600
          %v1217 = vadd.f32 %v1201, %v601
          %v1218 = vadd.f32 %v1202, %v602
          %v1219 = vadd.f32 %v1203, %v603
          %v1220 = vadd.f32 %v1204, %v604
          %v1221 = vadd.f32 %v1205, %v605
          %v1222 = vadd.f32 %v1206, %v606
          %v1223 = vadd.f32 %v1207, %v607
          %v1224 = vadd.f32 %v1208, %v608
          %v1225 = vadd.f32 %v1209, %v609
          %v1226 = vadd.f32 %v1210, %v610
          %v1227 = vadd.f32 %v1211, %v611
          %v1228 = vadd.f32 %v1212, %v612
          %v1229 = vadd.f32 %v1213, %v613
          %v1230 = vmax.f32 %v1214, 0.0
          %v1231 = vmax.f32 %v1215, 0.0
          %v1232 = vmax.f32 %v1216, 0.0
          %v1233 = vmax.f32 %v1217, 0.0
          %v1234 = vmax.f32 %v1218, 0.0
          %v1235 = vmax.f32 %v1219, 0.0
          %v1236 = vmax.f32 %v1220, 0.0
          %v1237 = vmax.f32 %v1221, 0.0
          %v1238 = vmax.f32 %v1222, 0.0
          %v1239 = vmax.f32 %v1223, 0.0
          %v1240 = vmax.f32 %v1224, 0.0
          %v1241 = vmax.f32 %v1225, 0.0
          %v1242 = vmax.f32 %v1226, 0.0
          %v1243 = vmax.f32 %v1227, 0.0
          %v1244 = vmax.f32 %v1228, 0.0
          %v1245 = vmax.f32 %v1229, 0.0
          %v1246 = vadd.f32 %v978, %v1230
          %v1247 = vadd.f32 %v979, %v1231
          %v1248 = vadd.f32 %v980, %v1232
          %v1249 = vadd.f32 %v981, %v1233
          %v1250 = vadd.f32 %v982, %v1234
          %v1251 = vadd.f32 %v983, %v1235
          %v1252 = vadd.f32 %v984, %v1236
          %v1253 = vadd.f32 %v985, %v1237
          %v1254 = vadd.f32 %v986, %v1238
          %v1255 = vadd.f32 %v987, %v1239
          %v1256 = vadd.f32 %v988, %v1240
          %v1257 = vadd.f32 %v989, %v1241
          %v1258 = vadd.f32 %v990, %v1242
          %v1259 = vadd.f32 %v991, %v1243
          %v1260 = vadd.f32 %v992, %v1244
          %v1261 = vadd.f32 %v993, %v1245
          %1262 = vmatpush.msra.mxu0 0.0
          %1263 = vmatpush.msra.mxu0 0.0
          %1264 = vmatpush.msra.mxu0 0.0
          %1265 = vmatpush.msra.mxu0 0.0
          %1266 = vmatpush.msra.mxu0 0.0
          %1267 = vmatpush.msra.mxu0 0.0
          %1268 = vmatpush.msra.mxu0 0.0
          %1269 = vmatpush.msra.mxu0 0.0
          %1270 = vmatpush.msra.mxu0 0.0
          %1271 = vmatpush.msra.mxu0 0.0
          %1272 = vmatpush.msra.mxu0 0.0
          %1273 = vmatpush.msra.mxu0 0.0
          %1274 = vmatpush.msra.mxu0 0.0
          %1275 = vmatpush.msra.mxu0 0.0
          %1276 = vmatpush.msra.mxu0 0.0
          %1277 = vmatpush.msra.mxu0 %v863
          %1278 = vmatmul.f32.gmra.mxu0 %v679
          %v1279 = vpop.f32.mrf.mxu0
          %v1280 = vadd.f32 0.0, %v1279
          %1281 = vmatmul.f32.gmra.mxu0 %v682
          %v1282 = vpop.f32.mrf.mxu0
          %v1283 = vadd.f32 0.0, %v1282
          %1284 = vmatmul.f32.gmra.mxu0 %v685
          %v1285 = vpop.f32.mrf.mxu0
          %v1286 = vadd.f32 0.0, %v1285
          %1287 = vmatmul.f32.gmra.mxu0 %v688
          %v1288 = vpop.f32.mrf.mxu0
          %v1289 = vadd.f32 0.0, %v1288
          %1290 = vmatmul.f32.gmra.mxu0 %v691
          %v1291 = vpop.f32.mrf.mxu0
          %v1292 = vadd.f32 0.0, %v1291
          %1293 = vmatmul.f32.gmra.mxu0 %v694
          %v1294 = vpop.f32.mrf.mxu0
          %v1295 = vadd.f32 0.0, %v1294
          %1296 = vmatmul.f32.gmra.mxu0 %v697
          %v1297 = vpop.f32.mrf.mxu0
          %v1298 = vadd.f32 0.0, %v1297
          %1299 = vmatmul.f32.gmra.mxu0 %v700
          %v1300 = vpop.f32.mrf.mxu0
          %v1301 = vadd.f32 0.0, %v1300
          %1302 = vmatmul.f32.gmra.mxu0 %v703
          %v1303 = vpop.f32.mrf.mxu0
          %v1304 = vadd.f32 0.0, %v1303
          %1305 = vmatmul.f32.gmra.mxu0 %v706
          %v1306 = vpop.f32.mrf.mxu0
          %v1307 = vadd.f32 0.0, %v1306
          %1308 = vmatmul.f32.gmra.mxu0 %v709
          %v1309 = vpop.f32.mrf.mxu0
          %v1310 = vadd.f32 0.0, %v1309
          %1311 = vmatmul.f32.gmra.mxu0 %v712
          %v1312 = vpop.f32.mrf.mxu0
          %v1313 = vadd.f32 0.0, %v1312
          %1314 = vmatmul.f32.gmra.mxu0 %v715
          %v1315 = vpop.f32.mrf.mxu0
          %v1316 = vadd.f32 0.0, %v1315
          %1317 = vmatmul.f32.gmra.mxu0 %v718
          %v1318 = vpop.f32.mrf.mxu0
          %v1319 = vadd.f32 0.0, %v1318
          %1320 = vmatmul.f32.gmra.mxu0 %v721
          %v1321 = vpop.f32.mrf.mxu0
          %v1322 = vadd.f32 0.0, %v1321
          %1323 = vmatmul.f32.gmra.mxu0 %v724
          %v1324 = vpop.f32.mrf.mxu0
          %v1325 = vadd.f32 0.0, %v1324
          %1326 = vdwg.mxu0
          %1327 = vmatpush.msra.mxu0 0.0
          %1328 = vmatpush.msra.mxu0 0.0
          %1329 = vmatpush.msra.mxu0 0.0
          %1330 = vmatpush.msra.mxu0 0.0
          %1331 = vmatpush.msra.mxu0 0.0
          %1332 = vmatpush.msra.mxu0 0.0
          %1333 = vmatpush.msra.mxu0 0.0
          %1334 = vmatpush.msra.mxu0 0.0
          %1335 = vmatpush.msra.mxu0 0.0
          %1336 = vmatpush.msra.mxu0 0.0
          %1337 = vmatpush.msra.mxu0 0.0
          %1338 = vmatpush.msra.mxu0 0.0
          %1339 = vmatpush.msra.mxu0 0.0
          %1340 = vmatpush.msra.mxu0 0.0
          %1341 = vmatpush.msra.mxu0 0.0
          %1342 = vmatpush.msra.mxu0 %v1131
          %1343 = vmatmul.f32.gmra.mxu0 %v483
          %v1344 = vpop.f32.mrf.mxu0
          %v1345 = vadd.f32 %v1280, %v1344
          %1346 = vmatmul.f32.gmra.mxu0 %v486
          %v1347 = vpop.f32.mrf.mxu0
          %v1348 = vadd.f32 %v1283, %v1347
          %1349 = vmatmul.f32.gmra.mxu0 %v489
          %v1350 = vpop.f32.mrf.mxu0
          %v1351 = vadd.f32 %v1286, %v1350
          %1352 = vmatmul.f32.gmra.mxu0 %v492
          %v1353 = vpop.f32.mrf.mxu0
          %v1354 = vadd.f32 %v1289, %v1353
          %1355 = vmatmul.f32.gmra.mxu0 %v495
          %v1356 = vpop.f32.mrf.mxu0
          %v1357 = vadd.f32 %v1292, %v1356
          %1358 = vmatmul.f32.gmra.mxu0 %v498
          %v1359 = vpop.f32.mrf.mxu0
          %v1360 = vadd.f32 %v1295, %v1359
          %1361 = vmatmul.f32.gmra.mxu0 %v501
          %v1362 = vpop.f32.mrf.mxu0
          %v1363 = vadd.f32 %v1298, %v1362
          %1364 = vmatmul.f32.gmra.mxu0 %v504
          %v1365 = vpop.f32.mrf.mxu0
          %v1366 = vadd.f32 %v1301, %v1365
          %1367 = vmatmul.f32.gmra.mxu0 %v507
          %v1368 = vpop.f32.mrf.mxu0
          %v1369 = vadd.f32 %v1304, %v1368
          %1370 = vmatmul.f32.gmra.mxu0 %v510
          %v1371 = vpop.f32.mrf.mxu0
          %v1372 = vadd.f32 %v1307, %v1371
          %1373 = vmatmul.f32.gmra.mxu0 %v513
          %v1374 = vpop.f32.mrf.mxu0
          %v1375 = vadd.f32 %v1310, %v1374
          %1376 = vmatmul.f32.gmra.mxu0 %v516
          %v1377 = vpop.f32.mrf.mxu0
          %v1378 = vadd.f32 %v1313, %v1377
          %1379 = vmatmul.f32.gmra.mxu0 %v519
          %v1380 = vpop.f32.mrf.mxu0
          %v1381 = vadd.f32 %v1316, %v1380
          %1382 = vmatmul.f32.gmra.mxu0 %v522
          %v1383 = vpop.f32.mrf.mxu0
          %v1384 = vadd.f32 %v1319, %v1383
          %1385 = vmatmul.f32.gmra.mxu0 %v525
          %v1386 = vpop.f32.mrf.mxu0
          %v1387 = vadd.f32 %v1322, %v1386
          %1388 = vmatmul.f32.gmra.mxu0 %v528
          %v1389 = vpop.f32.mrf.mxu0
          %v1390 = vadd.f32 %v1325, %v1389
          %1391 = vdwg.mxu0
          %s1392 = sadd.s32 %s320, 512
          %s1393 = sshra.s32 %s1392, 7
          %s1394 = sand.u32 %s1392, 127
          %s1395 = smul.addr %s1393, 8
          %s1396 = scalar_lea.vmem %s265, %s1395 [#allocation2]
          %v1397 = vld [vmem:[%s1396] sm:$0xf]
          %v1399 = vsel %vm413, %v1397, 0
          %1401 = vmatpush.msra.mxu0 0.0
          %1402 = vmatpush.msra.mxu0 0.0
          %1403 = vmatpush.msra.mxu0 0.0
          %1404 = vmatpush.msra.mxu0 0.0
          %1405 = vmatpush.msra.mxu0 0.0
          %1406 = vmatpush.msra.mxu0 0.0
          %1407 = vmatpush.msra.mxu0 0.0
          %1408 = vmatpush.msra.mxu0 0.0
          %1409 = vmatpush.msra.mxu0 0.0
          %1410 = vmatpush.msra.mxu0 0.0
          %1411 = vmatpush.msra.mxu0 0.0
          %1412 = vmatpush.msra.mxu0 0.0
          %1413 = vmatpush.msra.mxu0 0.0
          %1414 = vmatpush.msra.mxu0 0.0
          %1415 = vmatpush.msra.mxu0 0.0
          %1416 = vmatpush.msra.mxu0 %v1399
          %1417 = vmatmul.f32.gmra.mxu0 %v366
          %v1418 = vpop.f32.mrf.mxu0
          %v1419 = vadd.f32 0.0, %v1418
          %1420 = vmatmul.f32.gmra.mxu0 %v369
          %v1421 = vpop.f32.mrf.mxu0
          %v1422 = vadd.f32 0.0, %v1421
          %1423 = vmatmul.f32.gmra.mxu0 %v372
          %v1424 = vpop.f32.mrf.mxu0
          %v1425 = vadd.f32 0.0, %v1424
          %1426 = vmatmul.f32.gmra.mxu0 %v375
          %v1427 = vpop.f32.mrf.mxu0
          %v1428 = vadd.f32 0.0, %v1427
          %1429 = vmatmul.f32.gmra.mxu0 %v378
          %v1430 = vpop.f32.mrf.mxu0
          %v1431 = vadd.f32 0.0, %v1430
          %1432 = vmatmul.f32.gmra.mxu0 %v381
          %v1433 = vpop.f32.mrf.mxu0
          %v1434 = vadd.f32 0.0, %v1433
          %1435 = vmatmul.f32.gmra.mxu0 %v384
          %v1436 = vpop.f32.mrf.mxu0
          %v1437 = vadd.f32 0.0, %v1436
          %1438 = vmatmul.f32.gmra.mxu0 %v387
          %v1439 = vpop.f32.mrf.mxu0
          %v1440 = vadd.f32 0.0, %v1439
          %1441 = vmatmul.f32.gmra.mxu0 %v390
          %v1442 = vpop.f32.mrf.mxu0
          %v1443 = vadd.f32 0.0, %v1442
          %1444 = vmatmul.f32.gmra.mxu0 %v393
          %v1445 = vpop.f32.mrf.mxu0
          %v1446 = vadd.f32 0.0, %v1445
          %1447 = vmatmul.f32.gmra.mxu0 %v396
          %v1448 = vpop.f32.mrf.mxu0
          %v1449 = vadd.f32 0.0, %v1448
          %1450 = vmatmul.f32.gmra.mxu0 %v399
          %v1451 = vpop.f32.mrf.mxu0
          %v1452 = vadd.f32 0.0, %v1451
          %1453 = vmatmul.f32.gmra.mxu0 %v402
          %v1454 = vpop.f32.mrf.mxu0
          %v1455 = vadd.f32 0.0, %v1454
          %1456 = vmatmul.f32.gmra.mxu0 %v405
          %v1457 = vpop.f32.mrf.mxu0
          %v1458 = vadd.f32 0.0, %v1457
          %1459 = vmatmul.f32.gmra.mxu0 %v408
          %v1460 = vpop.f32.mrf.mxu0
          %v1461 = vadd.f32 0.0, %v1460
          %1462 = vmatmul.f32.gmra.mxu0 %v411
          %v1463 = vpop.f32.mrf.mxu0
          %v1464 = vadd.f32 0.0, %v1463
          %1465 = vdwg.mxu0
          %v1466 = vadd.f32 %v1345, %v1419
          %v1467 = vadd.f32 %v1348, %v1422
          %v1468 = vadd.f32 %v1351, %v1425
          %v1469 = vadd.f32 %v1354, %v1428
          %v1470 = vadd.f32 %v1357, %v1431
          %v1471 = vadd.f32 %v1360, %v1434
          %v1472 = vadd.f32 %v1363, %v1437
          %v1473 = vadd.f32 %v1366, %v1440
          %v1474 = vadd.f32 %v1369, %v1443
          %v1475 = vadd.f32 %v1372, %v1446
          %v1476 = vadd.f32 %v1375, %v1449
          %v1477 = vadd.f32 %v1378, %v1452
          %v1478 = vadd.f32 %v1381, %v1455
          %v1479 = vadd.f32 %v1384, %v1458
          %v1480 = vadd.f32 %v1387, %v1461
          %v1481 = vadd.f32 %v1390, %v1464
          %v1482 = vadd.f32 %v1466, %v598
          %v1483 = vadd.f32 %v1467, %v599
          %v1484 = vadd.f32 %v1468, %v600
          %v1485 = vadd.f32 %v1469, %v601
          %v1486 = vadd.f32 %v1470, %v602
          %v1487 = vadd.f32 %v1471, %v603
          %v1488 = vadd.f32 %v1472, %v604
          %v1489 = vadd.f32 %v1473, %v605
          %v1490 = vadd.f32 %v1474, %v606
          %v1491 = vadd.f32 %v1475, %v607
          %v1492 = vadd.f32 %v1476, %v608
          %v1493 = vadd.f32 %v1477, %v609
          %v1494 = vadd.f32 %v1478, %v610
          %v1495 = vadd.f32 %v1479, %v611
          %v1496 = vadd.f32 %v1480, %v612
          %v1497 = vadd.f32 %v1481, %v613
          %v1498 = vmax.f32 %v1482, 0.0
          %v1499 = vmax.f32 %v1483, 0.0
          %v1500 = vmax.f32 %v1484, 0.0
          %v1501 = vmax.f32 %v1485, 0.0
          %v1502 = vmax.f32 %v1486, 0.0
          %v1503 = vmax.f32 %v1487, 0.0
          %v1504 = vmax.f32 %v1488, 0.0
          %v1505 = vmax.f32 %v1489, 0.0
          %v1506 = vmax.f32 %v1490, 0.0
          %v1507 = vmax.f32 %v1491, 0.0
          %v1508 = vmax.f32 %v1492, 0.0
          %v1509 = vmax.f32 %v1493, 0.0
          %v1510 = vmax.f32 %v1494, 0.0
          %v1511 = vmax.f32 %v1495, 0.0
          %v1512 = vmax.f32 %v1496, 0.0
          %v1513 = vmax.f32 %v1497, 0.0
          %v1514 = vadd.f32 %v1246, %v1498
          %v1515 = vadd.f32 %v1247, %v1499
          %v1516 = vadd.f32 %v1248, %v1500
          %v1517 = vadd.f32 %v1249, %v1501
          %v1518 = vadd.f32 %v1250, %v1502
          %v1519 = vadd.f32 %v1251, %v1503
          %v1520 = vadd.f32 %v1252, %v1504
          %v1521 = vadd.f32 %v1253, %v1505
          %v1522 = vadd.f32 %v1254, %v1506
          %v1523 = vadd.f32 %v1255, %v1507
          %v1524 = vadd.f32 %v1256, %v1508
          %v1525 = vadd.f32 %v1257, %v1509
          %v1526 = vadd.f32 %v1258, %v1510
          %v1527 = vadd.f32 %v1259, %v1511
          %v1528 = vadd.f32 %v1260, %v1512
          %v1529 = vadd.f32 %v1261, %v1513
          %1530 = vmatpush.msra.mxu0 0.0
          %1531 = vmatpush.msra.mxu0 0.0
          %1532 = vmatpush.msra.mxu0 0.0
          %1533 = vmatpush.msra.mxu0 0.0
          %1534 = vmatpush.msra.mxu0 0.0
          %1535 = vmatpush.msra.mxu0 0.0
          %1536 = vmatpush.msra.mxu0 0.0
          %1537 = vmatpush.msra.mxu0 0.0
          %1538 = vmatpush.msra.mxu0 0.0
          %1539 = vmatpush.msra.mxu0 0.0
          %1540 = vmatpush.msra.mxu0 0.0
          %1541 = vmatpush.msra.mxu0 0.0
          %1542 = vmatpush.msra.mxu0 0.0
          %1543 = vmatpush.msra.mxu0 0.0
          %1544 = vmatpush.msra.mxu0 0.0
          %1545 = vmatpush.msra.mxu0 %v1131
          %1546 = vmatmul.f32.gmra.mxu0 %v679
          %v1547 = vpop.f32.mrf.mxu0
          %v1548 = vadd.f32 0.0, %v1547
          %1549 = vmatmul.f32.gmra.mxu0 %v682
          %v1550 = vpop.f32.mrf.mxu0
          %v1551 = vadd.f32 0.0, %v1550
          %1552 = vmatmul.f32.gmra.mxu0 %v685
          %v1553 = vpop.f32.mrf.mxu0
          %v1554 = vadd.f32 0.0, %v1553
          %1555 = vmatmul.f32.gmra.mxu0 %v688
          %v1556 = vpop.f32.mrf.mxu0
          %v1557 = vadd.f32 0.0, %v1556
          %1558 = vmatmul.f32.gmra.mxu0 %v691
          %v1559 = vpop.f32.mrf.mxu0
          %v1560 = vadd.f32 0.0, %v1559
          %1561 = vmatmul.f32.gmra.mxu0 %v694
          %v1562 = vpop.f32.mrf.mxu0
          %v1563 = vadd.f32 0.0, %v1562
          %1564 = vmatmul.f32.gmra.mxu0 %v697
          %v1565 = vpop.f32.mrf.mxu0
          %v1566 = vadd.f32 0.0, %v1565
          %1567 = vmatmul.f32.gmra.mxu0 %v700
          %v1568 = vpop.f32.mrf.mxu0
          %v1569 = vadd.f32 0.0, %v1568
          %1570 = vmatmul.f32.gmra.mxu0 %v703
          %v1571 = vpop.f32.mrf.mxu0
          %v1572 = vadd.f32 0.0, %v1571
          %1573 = vmatmul.f32.gmra.mxu0 %v706
          %v1574 = vpop.f32.mrf.mxu0
          %v1575 = vadd.f32 0.0, %v1574
          %1576 = vmatmul.f32.gmra.mxu0 %v709
          %v1577 = vpop.f32.mrf.mxu0
          %v1578 = vadd.f32 0.0, %v1577
          %1579 = vmatmul.f32.gmra.mxu0 %v712
          %v1580 = vpop.f32.mrf.mxu0
          %v1581 = vadd.f32 0.0, %v1580
          %1582 = vmatmul.f32.gmra.mxu0 %v715
          %v1583 = vpop.f32.mrf.mxu0
          %v1584 = vadd.f32 0.0, %v1583
          %1585 = vmatmul.f32.gmra.mxu0 %v718
          %v1586 = vpop.f32.mrf.mxu0
          %v1587 = vadd.f32 0.0, %v1586
          %1588 = vmatmul.f32.gmra.mxu0 %v721
          %v1589 = vpop.f32.mrf.mxu0
          %v1590 = vadd.f32 0.0, %v1589
          %1591 = vmatmul.f32.gmra.mxu0 %v724
          %v1592 = vpop.f32.mrf.mxu0
          %v1593 = vadd.f32 0.0, %v1592
          %1594 = vdwg.mxu0
          %1595 = vmatpush.msra.mxu0 0.0
          %1596 = vmatpush.msra.mxu0 0.0
          %1597 = vmatpush.msra.mxu0 0.0
          %1598 = vmatpush.msra.mxu0 0.0
          %1599 = vmatpush.msra.mxu0 0.0
          %1600 = vmatpush.msra.mxu0 0.0
          %1601 = vmatpush.msra.mxu0 0.0
          %1602 = vmatpush.msra.mxu0 0.0
          %1603 = vmatpush.msra.mxu0 0.0
          %1604 = vmatpush.msra.mxu0 0.0
          %1605 = vmatpush.msra.mxu0 0.0
          %1606 = vmatpush.msra.mxu0 0.0
          %1607 = vmatpush.msra.mxu0 0.0
          %1608 = vmatpush.msra.mxu0 0.0
          %1609 = vmatpush.msra.mxu0 0.0
          %1610 = vmatpush.msra.mxu0 %v1399
          %1611 = vmatmul.f32.gmra.mxu0 %v483
          %v1612 = vpop.f32.mrf.mxu0
          %v1613 = vadd.f32 %v1548, %v1612
          %1614 = vmatmul.f32.gmra.mxu0 %v486
          %v1615 = vpop.f32.mrf.mxu0
          %v1616 = vadd.f32 %v1551, %v1615
          %1617 = vmatmul.f32.gmra.mxu0 %v489
          %v1618 = vpop.f32.mrf.mxu0
          %v1619 = vadd.f32 %v1554, %v1618
          %1620 = vmatmul.f32.gmra.mxu0 %v492
          %v1621 = vpop.f32.mrf.mxu0
          %v1622 = vadd.f32 %v1557, %v1621
          %1623 = vmatmul.f32.gmra.mxu0 %v495
          %v1624 = vpop.f32.mrf.mxu0
          %v1625 = vadd.f32 %v1560, %v1624
          %1626 = vmatmul.f32.gmra.mxu0 %v498
          %v1627 = vpop.f32.mrf.mxu0
          %v1628 = vadd.f32 %v1563, %v1627
          %1629 = vmatmul.f32.gmra.mxu0 %v501
          %v1630 = vpop.f32.mrf.mxu0
          %v1631 = vadd.f32 %v1566, %v1630
          %1632 = vmatmul.f32.gmra.mxu0 %v504
          %v1633 = vpop.f32.mrf.mxu0
          %v1634 = vadd.f32 %v1569, %v1633
          %1635 = vmatmul.f32.gmra.mxu0 %v507
          %v1636 = vpop.f32.mrf.mxu0
          %v1637 = vadd.f32 %v1572, %v1636
          %1638 = vmatmul.f32.gmra.mxu0 %v510
          %v1639 = vpop.f32.mrf.mxu0
          %v1640 = vadd.f32 %v1575, %v1639
          %1641 = vmatmul.f32.gmra.mxu0 %v513
          %v1642 = vpop.f32.mrf.mxu0
          %v1643 = vadd.f32 %v1578, %v1642
          %1644 = vmatmul.f32.gmra.mxu0 %v516
          %v1645 = vpop.f32.mrf.mxu0
          %v1646 = vadd.f32 %v1581, %v1645
          %1647 = vmatmul.f32.gmra.mxu0 %v519
          %v1648 = vpop.f32.mrf.mxu0
          %v1649 = vadd.f32 %v1584, %v1648
          %1650 = vmatmul.f32.gmra.mxu0 %v522
          %v1651 = vpop.f32.mrf.mxu0
          %v1652 = vadd.f32 %v1587, %v1651
          %1653 = vmatmul.f32.gmra.mxu0 %v525
          %v1654 = vpop.f32.mrf.mxu0
          %v1655 = vadd.f32 %v1590, %v1654
          %1656 = vmatmul.f32.gmra.mxu0 %v528
          %v1657 = vpop.f32.mrf.mxu0
          %v1658 = vadd.f32 %v1593, %v1657
          %1659 = vdwg.mxu0
          %s1660 = sadd.s32 %s320, 640
          %s1661 = sshra.s32 %s1660, 7
          %s1662 = sand.u32 %s1660, 127
          %s1663 = smul.addr %s1661, 8
          %s1664 = scalar_lea.vmem %s265, %s1663 [#allocation2]
          %v1665 = vld [vmem:[%s1664] sm:$0xf]
          %v1667 = vsel %vm413, %v1665, 0
          %1669 = vmatpush.msra.mxu0 0.0
          %1670 = vmatpush.msra.mxu0 0.0
          %1671 = vmatpush.msra.mxu0 0.0
          %1672 = vmatpush.msra.mxu0 0.0
          %1673 = vmatpush.msra.mxu0 0.0
          %1674 = vmatpush.msra.mxu0 0.0
          %1675 = vmatpush.msra.mxu0 0.0
          %1676 = vmatpush.msra.mxu0 0.0
          %1677 = vmatpush.msra.mxu0 0.0
          %1678 = vmatpush.msra.mxu0 0.0
          %1679 = vmatpush.msra.mxu0 0.0
          %1680 = vmatpush.msra.mxu0 0.0
          %1681 = vmatpush.msra.mxu0 0.0
          %1682 = vmatpush.msra.mxu0 0.0
          %1683 = vmatpush.msra.mxu0 0.0
          %1684 = vmatpush.msra.mxu0 %v1667
          %1685 = vmatmul.f32.gmra.mxu0 %v366
          %v1686 = vpop.f32.mrf.mxu0
          %v1687 = vadd.f32 0.0, %v1686
          %1688 = vmatmul.f32.gmra.mxu0 %v369
          %v1689 = vpop.f32.mrf.mxu0
          %v1690 = vadd.f32 0.0, %v1689
          %1691 = vmatmul.f32.gmra.mxu0 %v372
          %v1692 = vpop.f32.mrf.mxu0
          %v1693 = vadd.f32 0.0, %v1692
          %1694 = vmatmul.f32.gmra.mxu0 %v375
          %v1695 = vpop.f32.mrf.mxu0
          %v1696 = vadd.f32 0.0, %v1695
          %1697 = vmatmul.f32.gmra.mxu0 %v378
          %v1698 = vpop.f32.mrf.mxu0
          %v1699 = vadd.f32 0.0, %v1698
          %1700 = vmatmul.f32.gmra.mxu0 %v381
          %v1701 = vpop.f32.mrf.mxu0
          %v1702 = vadd.f32 0.0, %v1701
          %1703 = vmatmul.f32.gmra.mxu0 %v384
          %v1704 = vpop.f32.mrf.mxu0
          %v1705 = vadd.f32 0.0, %v1704
          %1706 = vmatmul.f32.gmra.mxu0 %v387
          %v1707 = vpop.f32.mrf.mxu0
          %v1708 = vadd.f32 0.0, %v1707
          %1709 = vmatmul.f32.gmra.mxu0 %v390
          %v1710 = vpop.f32.mrf.mxu0
          %v1711 = vadd.f32 0.0, %v1710
          %1712 = vmatmul.f32.gmra.mxu0 %v393
          %v1713 = vpop.f32.mrf.mxu0
          %v1714 = vadd.f32 0.0, %v1713
          %1715 = vmatmul.f32.gmra.mxu0 %v396
          %v1716 = vpop.f32.mrf.mxu0
          %v1717 = vadd.f32 0.0, %v1716
          %1718 = vmatmul.f32.gmra.mxu0 %v399
          %v1719 = vpop.f32.mrf.mxu0
          %v1720 = vadd.f32 0.0, %v1719
          %1721 = vmatmul.f32.gmra.mxu0 %v402
          %v1722 = vpop.f32.mrf.mxu0
          %v1723 = vadd.f32 0.0, %v1722
          %1724 = vmatmul.f32.gmra.mxu0 %v405
          %v1725 = vpop.f32.mrf.mxu0
          %v1726 = vadd.f32 0.0, %v1725
          %1727 = vmatmul.f32.gmra.mxu0 %v408
          %v1728 = vpop.f32.mrf.mxu0
          %v1729 = vadd.f32 0.0, %v1728
          %1730 = vmatmul.f32.gmra.mxu0 %v411
          %v1731 = vpop.f32.mrf.mxu0
          %v1732 = vadd.f32 0.0, %v1731
          %1733 = vdwg.mxu0
          %v1734 = vadd.f32 %v1613, %v1687
          %v1735 = vadd.f32 %v1616, %v1690
          %v1736 = vadd.f32 %v1619, %v1693
          %v1737 = vadd.f32 %v1622, %v1696
          %v1738 = vadd.f32 %v1625, %v1699
          %v1739 = vadd.f32 %v1628, %v1702
          %v1740 = vadd.f32 %v1631, %v1705
          %v1741 = vadd.f32 %v1634, %v1708
          %v1742 = vadd.f32 %v1637, %v1711
          %v1743 = vadd.f32 %v1640, %v1714
          %v1744 = vadd.f32 %v1643, %v1717
          %v1745 = vadd.f32 %v1646, %v1720
          %v1746 = vadd.f32 %v1649, %v1723
          %v1747 = vadd.f32 %v1652, %v1726
          %v1748 = vadd.f32 %v1655, %v1729
          %v1749 = vadd.f32 %v1658, %v1732
          %v1750 = vadd.f32 %v1734, %v598
          %v1751 = vadd.f32 %v1735, %v599
          %v1752 = vadd.f32 %v1736, %v600
          %v1753 = vadd.f32 %v1737, %v601
          %v1754 = vadd.f32 %v1738, %v602
          %v1755 = vadd.f32 %v1739, %v603
          %v1756 = vadd.f32 %v1740, %v604
          %v1757 = vadd.f32 %v1741, %v605
          %v1758 = vadd.f32 %v1742, %v606
          %v1759 = vadd.f32 %v1743, %v607
          %v1760 = vadd.f32 %v1744, %v608
          %v1761 = vadd.f32 %v1745, %v609
          %v1762 = vadd.f32 %v1746, %v610
          %v1763 = vadd.f32 %v1747, %v611
          %v1764 = vadd.f32 %v1748, %v612
          %v1765 = vadd.f32 %v1749, %v613
          %v1766 = vmax.f32 %v1750, 0.0
          %v1767 = vmax.f32 %v1751, 0.0
          %v1768 = vmax.f32 %v1752, 0.0
          %v1769 = vmax.f32 %v1753, 0.0
          %v1770 = vmax.f32 %v1754, 0.0
          %v1771 = vmax.f32 %v1755, 0.0
          %v1772 = vmax.f32 %v1756, 0.0
          %v1773 = vmax.f32 %v1757, 0.0
          %v1774 = vmax.f32 %v1758, 0.0
          %v1775 = vmax.f32 %v1759, 0.0
          %v1776 = vmax.f32 %v1760, 0.0
          %v1777 = vmax.f32 %v1761, 0.0
          %v1778 = vmax.f32 %v1762, 0.0
          %v1779 = vmax.f32 %v1763, 0.0
          %v1780 = vmax.f32 %v1764, 0.0
          %v1781 = vmax.f32 %v1765, 0.0
          %v1782 = vadd.f32 %v1514, %v1766
          %v1783 = vadd.f32 %v1515, %v1767
          %v1784 = vadd.f32 %v1516, %v1768
          %v1785 = vadd.f32 %v1517, %v1769
          %v1786 = vadd.f32 %v1518, %v1770
          %v1787 = vadd.f32 %v1519, %v1771
          %v1788 = vadd.f32 %v1520, %v1772
          %v1789 = vadd.f32 %v1521, %v1773
          %v1790 = vadd.f32 %v1522, %v1774
          %v1791 = vadd.f32 %v1523, %v1775
          %v1792 = vadd.f32 %v1524, %v1776
          %v1793 = vadd.f32 %v1525, %v1777
          %v1794 = vadd.f32 %v1526, %v1778
          %v1795 = vadd.f32 %v1527, %v1779
          %v1796 = vadd.f32 %v1528, %v1780
          %v1797 = vadd.f32 %v1529, %v1781
          %1798 = vmatpush.msra.mxu0 0.0
          %1799 = vmatpush.msra.mxu0 0.0
          %1800 = vmatpush.msra.mxu0 0.0
          %1801 = vmatpush.msra.mxu0 0.0
          %1802 = vmatpush.msra.mxu0 0.0
          %1803 = vmatpush.msra.mxu0 0.0
          %1804 = vmatpush.msra.mxu0 0.0
          %1805 = vmatpush.msra.mxu0 0.0
          %1806 = vmatpush.msra.mxu0 0.0
          %1807 = vmatpush.msra.mxu0 0.0
          %1808 = vmatpush.msra.mxu0 0.0
          %1809 = vmatpush.msra.mxu0 0.0
          %1810 = vmatpush.msra.mxu0 0.0
          %1811 = vmatpush.msra.mxu0 0.0
          %1812 = vmatpush.msra.mxu0 0.0
          %1813 = vmatpush.msra.mxu0 %v1399
          %1814 = vmatmul.f32.gmra.mxu0 %v679
          %v1815 = vpop.f32.mrf.mxu0
          %v1816 = vadd.f32 0.0, %v1815
          %1817 = vmatmul.f32.gmra.mxu0 %v682
          %v1818 = vpop.f32.mrf.mxu0
          %v1819 = vadd.f32 0.0, %v1818
          %1820 = vmatmul.f32.gmra.mxu0 %v685
          %v1821 = vpop.f32.mrf.mxu0
          %v1822 = vadd.f32 0.0, %v1821
          %1823 = vmatmul.f32.gmra.mxu0 %v688
          %v1824 = vpop.f32.mrf.mxu0
          %v1825 = vadd.f32 0.0, %v1824
          %1826 = vmatmul.f32.gmra.mxu0 %v691
          %v1827 = vpop.f32.mrf.mxu0
          %v1828 = vadd.f32 0.0, %v1827
          %1829 = vmatmul.f32.gmra.mxu0 %v694
          %v1830 = vpop.f32.mrf.mxu0
          %v1831 = vadd.f32 0.0, %v1830
          %1832 = vmatmul.f32.gmra.mxu0 %v697
          %v1833 = vpop.f32.mrf.mxu0
          %v1834 = vadd.f32 0.0, %v1833
          %1835 = vmatmul.f32.gmra.mxu0 %v700
          %v1836 = vpop.f32.mrf.mxu0
          %v1837 = vadd.f32 0.0, %v1836
          %1838 = vmatmul.f32.gmra.mxu0 %v703
          %v1839 = vpop.f32.mrf.mxu0
          %v1840 = vadd.f32 0.0, %v1839
          %1841 = vmatmul.f32.gmra.mxu0 %v706
          %v1842 = vpop.f32.mrf.mxu0
          %v1843 = vadd.f32 0.0, %v1842
          %1844 = vmatmul.f32.gmra.mxu0 %v709
          %v1845 = vpop.f32.mrf.mxu0
          %v1846 = vadd.f32 0.0, %v1845
          %1847 = vmatmul.f32.gmra.mxu0 %v712
          %v1848 = vpop.f32.mrf.mxu0
          %v1849 = vadd.f32 0.0, %v1848
          %1850 = vmatmul.f32.gmra.mxu0 %v715
          %v1851 = vpop.f32.mrf.mxu0
          %v1852 = vadd.f32 0.0, %v1851
          %1853 = vmatmul.f32.gmra.mxu0 %v718
          %v1854 = vpop.f32.mrf.mxu0
          %v1855 = vadd.f32 0.0, %v1854
          %1856 = vmatmul.f32.gmra.mxu0 %v721
          %v1857 = vpop.f32.mrf.mxu0
          %v1858 = vadd.f32 0.0, %v1857
          %1859 = vmatmul.f32.gmra.mxu0 %v724
          %v1860 = vpop.f32.mrf.mxu0
          %v1861 = vadd.f32 0.0, %v1860
          %1862 = vdwg.mxu0
          %1863 = vmatpush.msra.mxu0 0.0
          %1864 = vmatpush.msra.mxu0 0.0
          %1865 = vmatpush.msra.mxu0 0.0
          %1866 = vmatpush.msra.mxu0 0.0
          %1867 = vmatpush.msra.mxu0 0.0
          %1868 = vmatpush.msra.mxu0 0.0
          %1869 = vmatpush.msra.mxu0 0.0
          %1870 = vmatpush.msra.mxu0 0.0
          %1871 = vmatpush.msra.mxu0 0.0
          %1872 = vmatpush.msra.mxu0 0.0
          %1873 = vmatpush.msra.mxu0 0.0
          %1874 = vmatpush.msra.mxu0 0.0
          %1875 = vmatpush.msra.mxu0 0.0
          %1876 = vmatpush.msra.mxu0 0.0
          %1877 = vmatpush.msra.mxu0 0.0
          %1878 = vmatpush.msra.mxu0 %v1667
          %1879 = vmatmul.f32.gmra.mxu0 %v483
          %v1880 = vpop.f32.mrf.mxu0
          %v1881 = vadd.f32 %v1816, %v1880
          %1882 = vmatmul.f32.gmra.mxu0 %v486
          %v1883 = vpop.f32.mrf.mxu0
          %v1884 = vadd.f32 %v1819, %v1883
          %1885 = vmatmul.f32.gmra.mxu0 %v489
          %v1886 = vpop.f32.mrf.mxu0
          %v1887 = vadd.f32 %v1822, %v1886
          %1888 = vmatmul.f32.gmra.mxu0 %v492
          %v1889 = vpop.f32.mrf.mxu0
          %v1890 = vadd.f32 %v1825, %v1889
          %1891 = vmatmul.f32.gmra.mxu0 %v495
          %v1892 = vpop.f32.mrf.mxu0
          %v1893 = vadd.f32 %v1828, %v1892
          %1894 = vmatmul.f32.gmra.mxu0 %v498
          %v1895 = vpop.f32.mrf.mxu0
          %v1896 = vadd.f32 %v1831, %v1895
          %1897 = vmatmul.f32.gmra.mxu0 %v501
          %v1898 = vpop.f32.mrf.mxu0
          %v1899 = vadd.f32 %v1834, %v1898
          %1900 = vmatmul.f32.gmra.mxu0 %v504
          %v1901 = vpop.f32.mrf.mxu0
          %v1902 = vadd.f32 %v1837, %v1901
          %1903 = vmatmul.f32.gmra.mxu0 %v507
          %v1904 = vpop.f32.mrf.mxu0
          %v1905 = vadd.f32 %v1840, %v1904
          %1906 = vmatmul.f32.gmra.mxu0 %v510
          %v1907 = vpop.f32.mrf.mxu0
          %v1908 = vadd.f32 %v1843, %v1907
          %1909 = vmatmul.f32.gmra.mxu0 %v513
          %v1910 = vpop.f32.mrf.mxu0
          %v1911 = vadd.f32 %v1846, %v1910
          %1912 = vmatmul.f32.gmra.mxu0 %v516
          %v1913 = vpop.f32.mrf.mxu0
          %v1914 = vadd.f32 %v1849, %v1913
          %1915 = vmatmul.f32.gmra.mxu0 %v519
          %v1916 = vpop.f32.mrf.mxu0
          %v1917 = vadd.f32 %v1852, %v1916
          %1918 = vmatmul.f32.gmra.mxu0 %v522
          %v1919 = vpop.f32.mrf.mxu0
          %v1920 = vadd.f32 %v1855, %v1919
          %1921 = vmatmul.f32.gmra.mxu0 %v525
          %v1922 = vpop.f32.mrf.mxu0
          %v1923 = vadd.f32 %v1858, %v1922
          %1924 = vmatmul.f32.gmra.mxu0 %v528
          %v1925 = vpop.f32.mrf.mxu0
          %v1926 = vadd.f32 %v1861, %v1925
          %1927 = vdwg.mxu0
          %s1928 = sadd.s32 %s320, 768
          %s1929 = sshra.s32 %s1928, 7
          %s1930 = sand.u32 %s1928, 127
          %s1931 = smul.addr %s1929, 8
          %s1932 = scalar_lea.vmem %s265, %s1931 [#allocation2]
          %v1933 = vld [vmem:[%s1932] sm:$0xf]
          %v1935 = vsel %vm413, %v1933, 0
          %1937 = vmatpush.msra.mxu0 0.0
          %1938 = vmatpush.msra.mxu0 0.0
          %1939 = vmatpush.msra.mxu0 0.0
          %1940 = vmatpush.msra.mxu0 0.0
          %1941 = vmatpush.msra.mxu0 0.0
          %1942 = vmatpush.msra.mxu0 0.0
          %1943 = vmatpush.msra.mxu0 0.0
          %1944 = vmatpush.msra.mxu0 0.0
          %1945 = vmatpush.msra.mxu0 0.0
          %1946 = vmatpush.msra.mxu0 0.0
          %1947 = vmatpush.msra.mxu0 0.0
          %1948 = vmatpush.msra.mxu0 0.0
          %1949 = vmatpush.msra.mxu0 0.0
          %1950 = vmatpush.msra.mxu0 0.0
          %1951 = vmatpush.msra.mxu0 0.0
          %1952 = vmatpush.msra.mxu0 %v1935
          %1953 = vmatmul.f32.gmra.mxu0 %v366
          %v1954 = vpop.f32.mrf.mxu0
          %v1955 = vadd.f32 0.0, %v1954
          %1956 = vmatmul.f32.gmra.mxu0 %v369
          %v1957 = vpop.f32.mrf.mxu0
          %v1958 = vadd.f32 0.0, %v1957
          %1959 = vmatmul.f32.gmra.mxu0 %v372
          %v1960 = vpop.f32.mrf.mxu0
          %v1961 = vadd.f32 0.0, %v1960
          %1962 = vmatmul.f32.gmra.mxu0 %v375
          %v1963 = vpop.f32.mrf.mxu0
          %v1964 = vadd.f32 0.0, %v1963
          %1965 = vmatmul.f32.gmra.mxu0 %v378
          %v1966 = vpop.f32.mrf.mxu0
          %v1967 = vadd.f32 0.0, %v1966
          %1968 = vmatmul.f32.gmra.mxu0 %v381
          %v1969 = vpop.f32.mrf.mxu0
          %v1970 = vadd.f32 0.0, %v1969
          %1971 = vmatmul.f32.gmra.mxu0 %v384
          %v1972 = vpop.f32.mrf.mxu0
          %v1973 = vadd.f32 0.0, %v1972
          %1974 = vmatmul.f32.gmra.mxu0 %v387
          %v1975 = vpop.f32.mrf.mxu0
          %v1976 = vadd.f32 0.0, %v1975
          %1977 = vmatmul.f32.gmra.mxu0 %v390
          %v1978 = vpop.f32.mrf.mxu0
          %v1979 = vadd.f32 0.0, %v1978
          %1980 = vmatmul.f32.gmra.mxu0 %v393
          %v1981 = vpop.f32.mrf.mxu0
          %v1982 = vadd.f32 0.0, %v1981
          %1983 = vmatmul.f32.gmra.mxu0 %v396
          %v1984 = vpop.f32.mrf.mxu0
          %v1985 = vadd.f32 0.0, %v1984
          %1986 = vmatmul.f32.gmra.mxu0 %v399
          %v1987 = vpop.f32.mrf.mxu0
          %v1988 = vadd.f32 0.0, %v1987
          %1989 = vmatmul.f32.gmra.mxu0 %v402
          %v1990 = vpop.f32.mrf.mxu0
          %v1991 = vadd.f32 0.0, %v1990
          %1992 = vmatmul.f32.gmra.mxu0 %v405
          %v1993 = vpop.f32.mrf.mxu0
          %v1994 = vadd.f32 0.0, %v1993
          %1995 = vmatmul.f32.gmra.mxu0 %v408
          %v1996 = vpop.f32.mrf.mxu0
          %v1997 = vadd.f32 0.0, %v1996
          %1998 = vmatmul.f32.gmra.mxu0 %v411
          %v1999 = vpop.f32.mrf.mxu0
          %v2000 = vadd.f32 0.0, %v1999
          %2001 = vdwg.mxu0
          %v2002 = vadd.f32 %v1881, %v1955
          %v2003 = vadd.f32 %v1884, %v1958
          %v2004 = vadd.f32 %v1887, %v1961
          %v2005 = vadd.f32 %v1890, %v1964
          %v2006 = vadd.f32 %v1893, %v1967
          %v2007 = vadd.f32 %v1896, %v1970
          %v2008 = vadd.f32 %v1899, %v1973
          %v2009 = vadd.f32 %v1902, %v1976
          %v2010 = vadd.f32 %v1905, %v1979
          %v2011 = vadd.f32 %v1908, %v1982
          %v2012 = vadd.f32 %v1911, %v1985
          %v2013 = vadd.f32 %v1914, %v1988
          %v2014 = vadd.f32 %v1917, %v1991
          %v2015 = vadd.f32 %v1920, %v1994
          %v2016 = vadd.f32 %v1923, %v1997
          %v2017 = vadd.f32 %v1926, %v2000
          %v2018 = vadd.f32 %v2002, %v598
          %v2019 = vadd.f32 %v2003, %v599
          %v2020 = vadd.f32 %v2004, %v600
          %v2021 = vadd.f32 %v2005, %v601
          %v2022 = vadd.f32 %v2006, %v602
          %v2023 = vadd.f32 %v2007, %v603
          %v2024 = vadd.f32 %v2008, %v604
          %v2025 = vadd.f32 %v2009, %v605
          %v2026 = vadd.f32 %v2010, %v606
          %v2027 = vadd.f32 %v2011, %v607
          %v2028 = vadd.f32 %v2012, %v608
          %v2029 = vadd.f32 %v2013, %v609
          %v2030 = vadd.f32 %v2014, %v610
          %v2031 = vadd.f32 %v2015, %v611
          %v2032 = vadd.f32 %v2016, %v612
          %v2033 = vadd.f32 %v2017, %v613
          %v2034 = vmax.f32 %v2018, 0.0
          %v2035 = vmax.f32 %v2019, 0.0
          %v2036 = vmax.f32 %v2020, 0.0
          %v2037 = vmax.f32 %v2021, 0.0
          %v2038 = vmax.f32 %v2022, 0.0
          %v2039 = vmax.f32 %v2023, 0.0
          %v2040 = vmax.f32 %v2024, 0.0
          %v2041 = vmax.f32 %v2025, 0.0
          %v2042 = vmax.f32 %v2026, 0.0
          %v2043 = vmax.f32 %v2027, 0.0
          %v2044 = vmax.f32 %v2028, 0.0
          %v2045 = vmax.f32 %v2029, 0.0
          %v2046 = vmax.f32 %v2030, 0.0
          %v2047 = vmax.f32 %v2031, 0.0
          %v2048 = vmax.f32 %v2032, 0.0
          %v2049 = vmax.f32 %v2033, 0.0
          %v2050 = vadd.f32 %v1782, %v2034
          %v2051 = vadd.f32 %v1783, %v2035
          %v2052 = vadd.f32 %v1784, %v2036
          %v2053 = vadd.f32 %v1785, %v2037
          %v2054 = vadd.f32 %v1786, %v2038
          %v2055 = vadd.f32 %v1787, %v2039
          %v2056 = vadd.f32 %v1788, %v2040
          %v2057 = vadd.f32 %v1789, %v2041
          %v2058 = vadd.f32 %v1790, %v2042
          %v2059 = vadd.f32 %v1791, %v2043
          %v2060 = vadd.f32 %v1792, %v2044
          %v2061 = vadd.f32 %v1793, %v2045
          %v2062 = vadd.f32 %v1794, %v2046
          %v2063 = vadd.f32 %v1795, %v2047
          %v2064 = vadd.f32 %v1796, %v2048
          %v2065 = vadd.f32 %v1797, %v2049
          %2066 = vmatpush.msra.mxu0 0.0
          %2067 = vmatpush.msra.mxu0 0.0
          %2068 = vmatpush.msra.mxu0 0.0
          %2069 = vmatpush.msra.mxu0 0.0
          %2070 = vmatpush.msra.mxu0 0.0
          %2071 = vmatpush.msra.mxu0 0.0
          %2072 = vmatpush.msra.mxu0 0.0
          %2073 = vmatpush.msra.mxu0 0.0
          %2074 = vmatpush.msra.mxu0 0.0
          %2075 = vmatpush.msra.mxu0 0.0
          %2076 = vmatpush.msra.mxu0 0.0
          %2077 = vmatpush.msra.mxu0 0.0
          %2078 = vmatpush.msra.mxu0 0.0
          %2079 = vmatpush.msra.mxu0 0.0
          %2080 = vmatpush.msra.mxu0 0.0
          %2081 = vmatpush.msra.mxu0 %v1667
          %2082 = vmatmul.f32.gmra.mxu0 %v679
          %v2083 = vpop.f32.mrf.mxu0
          %v2084 = vadd.f32 0.0, %v2083
          %2085 = vmatmul.f32.gmra.mxu0 %v682
          %v2086 = vpop.f32.mrf.mxu0
          %v2087 = vadd.f32 0.0, %v2086
          %2088 = vmatmul.f32.gmra.mxu0 %v685
          %v2089 = vpop.f32.mrf.mxu0
          %v2090 = vadd.f32 0.0, %v2089
          %2091 = vmatmul.f32.gmra.mxu0 %v688
          %v2092 = vpop.f32.mrf.mxu0
          %v2093 = vadd.f32 0.0, %v2092
          %2094 = vmatmul.f32.gmra.mxu0 %v691
          %v2095 = vpop.f32.mrf.mxu0
          %v2096 = vadd.f32 0.0, %v2095
          %2097 = vmatmul.f32.gmra.mxu0 %v694
          %v2098 = vpop.f32.mrf.mxu0
          %v2099 = vadd.f32 0.0, %v2098
          %2100 = vmatmul.f32.gmra.mxu0 %v697
          %v2101 = vpop.f32.mrf.mxu0
          %v2102 = vadd.f32 0.0, %v2101
          %2103 = vmatmul.f32.gmra.mxu0 %v700
          %v2104 = vpop.f32.mrf.mxu0
          %v2105 = vadd.f32 0.0, %v2104
          %2106 = vmatmul.f32.gmra.mxu0 %v703
          %v2107 = vpop.f32.mrf.mxu0
          %v2108 = vadd.f32 0.0, %v2107
          %2109 = vmatmul.f32.gmra.mxu0 %v706
          %v2110 = vpop.f32.mrf.mxu0
          %v2111 = vadd.f32 0.0, %v2110
          %2112 = vmatmul.f32.gmra.mxu0 %v709
          %v2113 = vpop.f32.mrf.mxu0
          %v2114 = vadd.f32 0.0, %v2113
          %2115 = vmatmul.f32.gmra.mxu0 %v712
          %v2116 = vpop.f32.mrf.mxu0
          %v2117 = vadd.f32 0.0, %v2116
          %2118 = vmatmul.f32.gmra.mxu0 %v715
          %v2119 = vpop.f32.mrf.mxu0
          %v2120 = vadd.f32 0.0, %v2119
          %2121 = vmatmul.f32.gmra.mxu0 %v718
          %v2122 = vpop.f32.mrf.mxu0
          %v2123 = vadd.f32 0.0, %v2122
          %2124 = vmatmul.f32.gmra.mxu0 %v721
          %v2125 = vpop.f32.mrf.mxu0
          %v2126 = vadd.f32 0.0, %v2125
          %2127 = vmatmul.f32.gmra.mxu0 %v724
          %v2128 = vpop.f32.mrf.mxu0
          %v2129 = vadd.f32 0.0, %v2128
          %2130 = vdwg.mxu0
          %2131 = vmatpush.msra.mxu0 0.0
          %2132 = vmatpush.msra.mxu0 0.0
          %2133 = vmatpush.msra.mxu0 0.0
          %2134 = vmatpush.msra.mxu0 0.0
          %2135 = vmatpush.msra.mxu0 0.0
          %2136 = vmatpush.msra.mxu0 0.0
          %2137 = vmatpush.msra.mxu0 0.0
          %2138 = vmatpush.msra.mxu0 0.0
          %2139 = vmatpush.msra.mxu0 0.0
          %2140 = vmatpush.msra.mxu0 0.0
          %2141 = vmatpush.msra.mxu0 0.0
          %2142 = vmatpush.msra.mxu0 0.0
          %2143 = vmatpush.msra.mxu0 0.0
          %2144 = vmatpush.msra.mxu0 0.0
          %2145 = vmatpush.msra.mxu0 0.0
          %2146 = vmatpush.msra.mxu0 %v1935
          %2147 = vmatmul.f32.gmra.mxu0 %v483
          %v2148 = vpop.f32.mrf.mxu0
          %v2149 = vadd.f32 %v2084, %v2148
          %2150 = vmatmul.f32.gmra.mxu0 %v486
          %v2151 = vpop.f32.mrf.mxu0
          %v2152 = vadd.f32 %v2087, %v2151
          %2153 = vmatmul.f32.gmra.mxu0 %v489
          %v2154 = vpop.f32.mrf.mxu0
          %v2155 = vadd.f32 %v2090, %v2154
          %2156 = vmatmul.f32.gmra.mxu0 %v492
          %v2157 = vpop.f32.mrf.mxu0
          %v2158 = vadd.f32 %v2093, %v2157
          %2159 = vmatmul.f32.gmra.mxu0 %v495
          %v2160 = vpop.f32.mrf.mxu0
          %v2161 = vadd.f32 %v2096, %v2160
          %2162 = vmatmul.f32.gmra.mxu0 %v498
          %v2163 = vpop.f32.mrf.mxu0
          %v2164 = vadd.f32 %v2099, %v2163
          %2165 = vmatmul.f32.gmra.mxu0 %v501
          %v2166 = vpop.f32.mrf.mxu0
          %v2167 = vadd.f32 %v2102, %v2166
          %2168 = vmatmul.f32.gmra.mxu0 %v504
          %v2169 = vpop.f32.mrf.mxu0
          %v2170 = vadd.f32 %v2105, %v2169
          %2171 = vmatmul.f32.gmra.mxu0 %v507
          %v2172 = vpop.f32.mrf.mxu0
          %v2173 = vadd.f32 %v2108, %v2172
          %2174 = vmatmul.f32.gmra.mxu0 %v510
          %v2175 = vpop.f32.mrf.mxu0
          %v2176 = vadd.f32 %v2111, %v2175
          %2177 = vmatmul.f32.gmra.mxu0 %v513
          %v2178 = vpop.f32.mrf.mxu0
          %v2179 = vadd.f32 %v2114, %v2178
          %2180 = vmatmul.f32.gmra.mxu0 %v516
          %v2181 = vpop.f32.mrf.mxu0
          %v2182 = vadd.f32 %v2117, %v2181
          %2183 = vmatmul.f32.gmra.mxu0 %v519
          %v2184 = vpop.f32.mrf.mxu0
          %v2185 = vadd.f32 %v2120, %v2184
          %2186 = vmatmul.f32.gmra.mxu0 %v522
          %v2187 = vpop.f32.mrf.mxu0
          %v2188 = vadd.f32 %v2123, %v2187
          %2189 = vmatmul.f32.gmra.mxu0 %v525
          %v2190 = vpop.f32.mrf.mxu0
          %v2191 = vadd.f32 %v2126, %v2190
          %2192 = vmatmul.f32.gmra.mxu0 %v528
          %v2193 = vpop.f32.mrf.mxu0
          %v2194 = vadd.f32 %v2129, %v2193
          %2195 = vdwg.mxu0
          %s2196 = sadd.s32 %s320, 896
          %s2197 = sshra.s32 %s2196, 7
          %s2198 = sand.u32 %s2196, 127
          %s2199 = smul.addr %s2197, 8
          %s2200 = scalar_lea.vmem %s265, %s2199 [#allocation2]
          %v2201 = vld [vmem:[%s2200] sm:$0xf]
          %v2203 = vsel %vm413, %v2201, 0
          %2205 = vmatpush.msra.mxu0 0.0
          %2206 = vmatpush.msra.mxu0 0.0
          %2207 = vmatpush.msra.mxu0 0.0
          %2208 = vmatpush.msra.mxu0 0.0
          %2209 = vmatpush.msra.mxu0 0.0
          %2210 = vmatpush.msra.mxu0 0.0
          %2211 = vmatpush.msra.mxu0 0.0
          %2212 = vmatpush.msra.mxu0 0.0
          %2213 = vmatpush.msra.mxu0 0.0
          %2214 = vmatpush.msra.mxu0 0.0
          %2215 = vmatpush.msra.mxu0 0.0
          %2216 = vmatpush.msra.mxu0 0.0
          %2217 = vmatpush.msra.mxu0 0.0
          %2218 = vmatpush.msra.mxu0 0.0
          %2219 = vmatpush.msra.mxu0 0.0
          %2220 = vmatpush.msra.mxu0 %v2203
          %2221 = vmatmul.f32.gmra.mxu0 %v366
          %v2222 = vpop.f32.mrf.mxu0
          %v2223 = vadd.f32 0.0, %v2222
          %2224 = vmatmul.f32.gmra.mxu0 %v369
          %v2225 = vpop.f32.mrf.mxu0
          %v2226 = vadd.f32 0.0, %v2225
          %2227 = vmatmul.f32.gmra.mxu0 %v372
          %v2228 = vpop.f32.mrf.mxu0
          %v2229 = vadd.f32 0.0, %v2228
          %2230 = vmatmul.f32.gmra.mxu0 %v375
          %v2231 = vpop.f32.mrf.mxu0
          %v2232 = vadd.f32 0.0, %v2231
          %2233 = vmatmul.f32.gmra.mxu0 %v378
          %v2234 = vpop.f32.mrf.mxu0
          %v2235 = vadd.f32 0.0, %v2234
          %2236 = vmatmul.f32.gmra.mxu0 %v381
          %v2237 = vpop.f32.mrf.mxu0
          %v2238 = vadd.f32 0.0, %v2237
          %2239 = vmatmul.f32.gmra.mxu0 %v384
          %v2240 = vpop.f32.mrf.mxu0
          %v2241 = vadd.f32 0.0, %v2240
          %2242 = vmatmul.f32.gmra.mxu0 %v387
          %v2243 = vpop.f32.mrf.mxu0
          %v2244 = vadd.f32 0.0, %v2243
          %2245 = vmatmul.f32.gmra.mxu0 %v390
          %v2246 = vpop.f32.mrf.mxu0
          %v2247 = vadd.f32 0.0, %v2246
          %2248 = vmatmul.f32.gmra.mxu0 %v393
          %v2249 = vpop.f32.mrf.mxu0
          %v2250 = vadd.f32 0.0, %v2249
          %2251 = vmatmul.f32.gmra.mxu0 %v396
          %v2252 = vpop.f32.mrf.mxu0
          %v2253 = vadd.f32 0.0, %v2252
          %2254 = vmatmul.f32.gmra.mxu0 %v399
          %v2255 = vpop.f32.mrf.mxu0
          %v2256 = vadd.f32 0.0, %v2255
          %2257 = vmatmul.f32.gmra.mxu0 %v402
          %v2258 = vpop.f32.mrf.mxu0
          %v2259 = vadd.f32 0.0, %v2258
          %2260 = vmatmul.f32.gmra.mxu0 %v405
          %v2261 = vpop.f32.mrf.mxu0
          %v2262 = vadd.f32 0.0, %v2261
          %2263 = vmatmul.f32.gmra.mxu0 %v408
          %v2264 = vpop.f32.mrf.mxu0
          %v2265 = vadd.f32 0.0, %v2264
          %2266 = vmatmul.f32.gmra.mxu0 %v411
          %v2267 = vpop.f32.mrf.mxu0
          %v2268 = vadd.f32 0.0, %v2267
          %2269 = vdwg.mxu0
          %v2270 = vadd.f32 %v2149, %v2223
          %v2271 = vadd.f32 %v2152, %v2226
          %v2272 = vadd.f32 %v2155, %v2229
          %v2273 = vadd.f32 %v2158, %v2232
          %v2274 = vadd.f32 %v2161, %v2235
          %v2275 = vadd.f32 %v2164, %v2238
          %v2276 = vadd.f32 %v2167, %v2241
          %v2277 = vadd.f32 %v2170, %v2244
          %v2278 = vadd.f32 %v2173, %v2247
          %v2279 = vadd.f32 %v2176, %v2250
          %v2280 = vadd.f32 %v2179, %v2253
          %v2281 = vadd.f32 %v2182, %v2256
          %v2282 = vadd.f32 %v2185, %v2259
          %v2283 = vadd.f32 %v2188, %v2262
          %v2284 = vadd.f32 %v2191, %v2265
          %v2285 = vadd.f32 %v2194, %v2268
          %v2286 = vadd.f32 %v2270, %v598
          %v2287 = vadd.f32 %v2271, %v599
          %v2288 = vadd.f32 %v2272, %v600
          %v2289 = vadd.f32 %v2273, %v601
          %v2290 = vadd.f32 %v2274, %v602
          %v2291 = vadd.f32 %v2275, %v603
          %v2292 = vadd.f32 %v2276, %v604
          %v2293 = vadd.f32 %v2277, %v605
          %v2294 = vadd.f32 %v2278, %v606
          %v2295 = vadd.f32 %v2279, %v607
          %v2296 = vadd.f32 %v2280, %v608
          %v2297 = vadd.f32 %v2281, %v609
          %v2298 = vadd.f32 %v2282, %v610
          %v2299 = vadd.f32 %v2283, %v611
          %v2300 = vadd.f32 %v2284, %v612
          %v2301 = vadd.f32 %v2285, %v613
          %v2302 = vmax.f32 %v2286, 0.0
          %v2303 = vmax.f32 %v2287, 0.0
          %v2304 = vmax.f32 %v2288, 0.0
          %v2305 = vmax.f32 %v2289, 0.0
          %v2306 = vmax.f32 %v2290, 0.0
          %v2307 = vmax.f32 %v2291, 0.0
          %v2308 = vmax.f32 %v2292, 0.0
          %v2309 = vmax.f32 %v2293, 0.0
          %v2310 = vmax.f32 %v2294, 0.0
          %v2311 = vmax.f32 %v2295, 0.0
          %v2312 = vmax.f32 %v2296, 0.0
          %v2313 = vmax.f32 %v2297, 0.0
          %v2314 = vmax.f32 %v2298, 0.0
          %v2315 = vmax.f32 %v2299, 0.0
          %v2316 = vmax.f32 %v2300, 0.0
          %v2317 = vmax.f32 %v2301, 0.0
          %v2318 = vadd.f32 %v2050, %v2302
          %v2319 = vadd.f32 %v2051, %v2303
          %v2320 = vadd.f32 %v2052, %v2304
          %v2321 = vadd.f32 %v2053, %v2305
          %v2322 = vadd.f32 %v2054, %v2306
          %v2323 = vadd.f32 %v2055, %v2307
          %v2324 = vadd.f32 %v2056, %v2308
          %v2325 = vadd.f32 %v2057, %v2309
          %v2326 = vadd.f32 %v2058, %v2310
          %v2327 = vadd.f32 %v2059, %v2311
          %v2328 = vadd.f32 %v2060, %v2312
          %v2329 = vadd.f32 %v2061, %v2313
          %v2330 = vadd.f32 %v2062, %v2314
          %v2331 = vadd.f32 %v2063, %v2315
          %v2332 = vadd.f32 %v2064, %v2316
          %v2333 = vadd.f32 %v2065, %v2317
          %2334 = vmatpush.msra.mxu0 0.0
          %2335 = vmatpush.msra.mxu0 0.0
          %2336 = vmatpush.msra.mxu0 0.0
          %2337 = vmatpush.msra.mxu0 0.0
          %2338 = vmatpush.msra.mxu0 0.0
          %2339 = vmatpush.msra.mxu0 0.0
          %2340 = vmatpush.msra.mxu0 0.0
          %2341 = vmatpush.msra.mxu0 0.0
          %2342 = vmatpush.msra.mxu0 0.0
          %2343 = vmatpush.msra.mxu0 0.0
          %2344 = vmatpush.msra.mxu0 0.0
          %2345 = vmatpush.msra.mxu0 0.0
          %2346 = vmatpush.msra.mxu0 0.0
          %2347 = vmatpush.msra.mxu0 0.0
          %2348 = vmatpush.msra.mxu0 0.0
          %2349 = vmatpush.msra.mxu0 %v1935
          %2350 = vmatmul.f32.gmra.mxu0 %v679
          %v2351 = vpop.f32.mrf.mxu0
          %v2352 = vadd.f32 0.0, %v2351
          %2353 = vmatmul.f32.gmra.mxu0 %v682
          %v2354 = vpop.f32.mrf.mxu0
          %v2355 = vadd.f32 0.0, %v2354
          %2356 = vmatmul.f32.gmra.mxu0 %v685
          %v2357 = vpop.f32.mrf.mxu0
          %v2358 = vadd.f32 0.0, %v2357
          %2359 = vmatmul.f32.gmra.mxu0 %v688
          %v2360 = vpop.f32.mrf.mxu0
          %v2361 = vadd.f32 0.0, %v2360
          %2362 = vmatmul.f32.gmra.mxu0 %v691
          %v2363 = vpop.f32.mrf.mxu0
          %v2364 = vadd.f32 0.0, %v2363
          %2365 = vmatmul.f32.gmra.mxu0 %v694
          %v2366 = vpop.f32.mrf.mxu0
          %v2367 = vadd.f32 0.0, %v2366
          %2368 = vmatmul.f32.gmra.mxu0 %v697
          %v2369 = vpop.f32.mrf.mxu0
          %v2370 = vadd.f32 0.0, %v2369
          %2371 = vmatmul.f32.gmra.mxu0 %v700
          %v2372 = vpop.f32.mrf.mxu0
          %v2373 = vadd.f32 0.0, %v2372
          %2374 = vmatmul.f32.gmra.mxu0 %v703
          %v2375 = vpop.f32.mrf.mxu0
          %v2376 = vadd.f32 0.0, %v2375
          %2377 = vmatmul.f32.gmra.mxu0 %v706
          %v2378 = vpop.f32.mrf.mxu0
          %v2379 = vadd.f32 0.0, %v2378
          %2380 = vmatmul.f32.gmra.mxu0 %v709
          %v2381 = vpop.f32.mrf.mxu0
          %v2382 = vadd.f32 0.0, %v2381
          %2383 = vmatmul.f32.gmra.mxu0 %v712
          %v2384 = vpop.f32.mrf.mxu0
          %v2385 = vadd.f32 0.0, %v2384
          %2386 = vmatmul.f32.gmra.mxu0 %v715
          %v2387 = vpop.f32.mrf.mxu0
          %v2388 = vadd.f32 0.0, %v2387
          %2389 = vmatmul.f32.gmra.mxu0 %v718
          %v2390 = vpop.f32.mrf.mxu0
          %v2391 = vadd.f32 0.0, %v2390
          %2392 = vmatmul.f32.gmra.mxu0 %v721
          %v2393 = vpop.f32.mrf.mxu0
          %v2394 = vadd.f32 0.0, %v2393
          %2395 = vmatmul.f32.gmra.mxu0 %v724
          %v2396 = vpop.f32.mrf.mxu0
          %v2397 = vadd.f32 0.0, %v2396
          %2398 = vdwg.mxu0
          %2399 = vmatpush.msra.mxu0 0.0
          %2400 = vmatpush.msra.mxu0 0.0
          %2401 = vmatpush.msra.mxu0 0.0
          %2402 = vmatpush.msra.mxu0 0.0
          %2403 = vmatpush.msra.mxu0 0.0
          %2404 = vmatpush.msra.mxu0 0.0
          %2405 = vmatpush.msra.mxu0 0.0
          %2406 = vmatpush.msra.mxu0 0.0
          %2407 = vmatpush.msra.mxu0 0.0
          %2408 = vmatpush.msra.mxu0 0.0
          %2409 = vmatpush.msra.mxu0 0.0
          %2410 = vmatpush.msra.mxu0 0.0
          %2411 = vmatpush.msra.mxu0 0.0
          %2412 = vmatpush.msra.mxu0 0.0
          %2413 = vmatpush.msra.mxu0 0.0
          %2414 = vmatpush.msra.mxu0 %v2203
          %2415 = vmatmul.f32.gmra.mxu0 %v483
          %v2416 = vpop.f32.mrf.mxu0
          %v2417 = vadd.f32 %v2352, %v2416
          %2418 = vmatmul.f32.gmra.mxu0 %v486
          %v2419 = vpop.f32.mrf.mxu0
          %v2420 = vadd.f32 %v2355, %v2419
          %2421 = vmatmul.f32.gmra.mxu0 %v489
          %v2422 = vpop.f32.mrf.mxu0
          %v2423 = vadd.f32 %v2358, %v2422
          %2424 = vmatmul.f32.gmra.mxu0 %v492
          %v2425 = vpop.f32.mrf.mxu0
          %v2426 = vadd.f32 %v2361, %v2425
          %2427 = vmatmul.f32.gmra.mxu0 %v495
          %v2428 = vpop.f32.mrf.mxu0
          %v2429 = vadd.f32 %v2364, %v2428
          %2430 = vmatmul.f32.gmra.mxu0 %v498
          %v2431 = vpop.f32.mrf.mxu0
          %v2432 = vadd.f32 %v2367, %v2431
          %2433 = vmatmul.f32.gmra.mxu0 %v501
          %v2434 = vpop.f32.mrf.mxu0
          %v2435 = vadd.f32 %v2370, %v2434
          %2436 = vmatmul.f32.gmra.mxu0 %v504
          %v2437 = vpop.f32.mrf.mxu0
          %v2438 = vadd.f32 %v2373, %v2437
          %2439 = vmatmul.f32.gmra.mxu0 %v507
          %v2440 = vpop.f32.mrf.mxu0
          %v2441 = vadd.f32 %v2376, %v2440
          %2442 = vmatmul.f32.gmra.mxu0 %v510
          %v2443 = vpop.f32.mrf.mxu0
          %v2444 = vadd.f32 %v2379, %v2443
          %2445 = vmatmul.f32.gmra.mxu0 %v513
          %v2446 = vpop.f32.mrf.mxu0
          %v2447 = vadd.f32 %v2382, %v2446
          %2448 = vmatmul.f32.gmra.mxu0 %v516
          %v2449 = vpop.f32.mrf.mxu0
          %v2450 = vadd.f32 %v2385, %v2449
          %2451 = vmatmul.f32.gmra.mxu0 %v519
          %v2452 = vpop.f32.mrf.mxu0
          %v2453 = vadd.f32 %v2388, %v2452
          %2454 = vmatmul.f32.gmra.mxu0 %v522
          %v2455 = vpop.f32.mrf.mxu0
          %v2456 = vadd.f32 %v2391, %v2455
          %2457 = vmatmul.f32.gmra.mxu0 %v525
          %v2458 = vpop.f32.mrf.mxu0
          %v2459 = vadd.f32 %v2394, %v2458
          %2460 = vmatmul.f32.gmra.mxu0 %v528
          %v2461 = vpop.f32.mrf.mxu0
          %v2462 = vadd.f32 %v2397, %v2461
          %2463 = vdwg.mxu0
          %v2464 = vadd.f32 %v2417, %v598
          %v2465 = vadd.f32 %v2420, %v599
          %v2466 = vadd.f32 %v2423, %v600
          %v2467 = vadd.f32 %v2426, %v601
          %v2468 = vadd.f32 %v2429, %v602
          %v2469 = vadd.f32 %v2432, %v603
          %v2470 = vadd.f32 %v2435, %v604
          %v2471 = vadd.f32 %v2438, %v605
          %v2472 = vadd.f32 %v2441, %v606
          %v2473 = vadd.f32 %v2444, %v607
          %v2474 = vadd.f32 %v2447, %v608
          %v2475 = vadd.f32 %v2450, %v609
          %v2476 = vadd.f32 %v2453, %v610
          %v2477 = vadd.f32 %v2456, %v611
          %v2478 = vadd.f32 %v2459, %v612
          %v2479 = vadd.f32 %v2462, %v613
          %v2480 = vmax.f32 %v2464, 0.0
          %v2481 = vmax.f32 %v2465, 0.0
          %v2482 = vmax.f32 %v2466, 0.0
          %v2483 = vmax.f32 %v2467, 0.0
          %v2484 = vmax.f32 %v2468, 0.0
          %v2485 = vmax.f32 %v2469, 0.0
          %v2486 = vmax.f32 %v2470, 0.0
          %v2487 = vmax.f32 %v2471, 0.0
          %v2488 = vmax.f32 %v2472, 0.0
          %v2489 = vmax.f32 %v2473, 0.0
          %v2490 = vmax.f32 %v2474, 0.0
          %v2491 = vmax.f32 %v2475, 0.0
          %v2492 = vmax.f32 %v2476, 0.0
          %v2493 = vmax.f32 %v2477, 0.0
          %v2494 = vmax.f32 %v2478, 0.0
          %v2495 = vmax.f32 %v2479, 0.0
          %v2496 = vadd.f32 %v2318, %v2480
          %v2497 = vadd.f32 %v2319, %v2481
          %v2498 = vadd.f32 %v2320, %v2482
          %v2499 = vadd.f32 %v2321, %v2483
          %v2500 = vadd.f32 %v2322, %v2484
          %v2501 = vadd.f32 %v2323, %v2485
          %v2502 = vadd.f32 %v2324, %v2486
          %v2503 = vadd.f32 %v2325, %v2487
          %v2504 = vadd.f32 %v2326, %v2488
          %v2505 = vadd.f32 %v2327, %v2489
          %v2506 = vadd.f32 %v2328, %v2490
          %v2507 = vadd.f32 %v2329, %v2491
          %v2508 = vadd.f32 %v2330, %v2492
          %v2509 = vadd.f32 %v2331, %v2493
          %v2510 = vadd.f32 %v2332, %v2494
          %v2511 = vadd.f32 %v2333, %v2495
          %v2512 = vld [vmem:[%s324] sm:$0xf0]
          %v2513 = vld [vmem:[%s346] sm:$0xf0]
          %v2515 = vrot.slane %v2513, 4
          %v2516 = vsel %vm413, %v2515, 0
          %2518 = vmatpush.msra.mxu0 0.0
          %2519 = vmatpush.msra.mxu0 0.0
          %2520 = vmatpush.msra.mxu0 0.0
          %2521 = vmatpush.msra.mxu0 0.0
          %2522 = vmatpush.msra.mxu0 0.0
          %2523 = vmatpush.msra.mxu0 0.0
          %2524 = vmatpush.msra.mxu0 0.0
          %2525 = vmatpush.msra.mxu0 0.0
          %2526 = vmatpush.msra.mxu0 0.0
          %2527 = vmatpush.msra.mxu0 0.0
          %2528 = vmatpush.msra.mxu0 0.0
          %2529 = vmatpush.msra.mxu0 0.0
          %2530 = vmatpush.msra.mxu0 0.0
          %2531 = vmatpush.msra.mxu0 0.0
          %2532 = vmatpush.msra.mxu0 0.0
          %2533 = vmatpush.msra.mxu0 %v2516
          %2534 = vmatmul.f32.gmra.mxu0 %v366
          %v2535 = vpop.f32.mrf.mxu0
          %v2536 = vadd.f32 0.0, %v2535
          %2537 = vmatmul.f32.gmra.mxu0 %v369
          %v2538 = vpop.f32.mrf.mxu0
          %v2539 = vadd.f32 0.0, %v2538
          %2540 = vmatmul.f32.gmra.mxu0 %v372
          %v2541 = vpop.f32.mrf.mxu0
          %v2542 = vadd.f32 0.0, %v2541
          %2543 = vmatmul.f32.gmra.mxu0 %v375
          %v2544 = vpop.f32.mrf.mxu0
          %v2545 = vadd.f32 0.0, %v2544
          %2546 = vmatmul.f32.gmra.mxu0 %v378
          %v2547 = vpop.f32.mrf.mxu0
          %v2548 = vadd.f32 0.0, %v2547
          %2549 = vmatmul.f32.gmra.mxu0 %v381
          %v2550 = vpop.f32.mrf.mxu0
          %v2551 = vadd.f32 0.0, %v2550
          %2552 = vmatmul.f32.gmra.mxu0 %v384
          %v2553 = vpop.f32.mrf.mxu0
          %v2554 = vadd.f32 0.0, %v2553
          %2555 = vmatmul.f32.gmra.mxu0 %v387
          %v2556 = vpop.f32.mrf.mxu0
          %v2557 = vadd.f32 0.0, %v2556
          %2558 = vmatmul.f32.gmra.mxu0 %v390
          %v2559 = vpop.f32.mrf.mxu0
          %v2560 = vadd.f32 0.0, %v2559
          %2561 = vmatmul.f32.gmra.mxu0 %v393
          %v2562 = vpop.f32.mrf.mxu0
          %v2563 = vadd.f32 0.0, %v2562
          %2564 = vmatmul.f32.gmra.mxu0 %v396
          %v2565 = vpop.f32.mrf.mxu0
          %v2566 = vadd.f32 0.0, %v2565
          %2567 = vmatmul.f32.gmra.mxu0 %v399
          %v2568 = vpop.f32.mrf.mxu0
          %v2569 = vadd.f32 0.0, %v2568
          %2570 = vmatmul.f32.gmra.mxu0 %v402
          %v2571 = vpop.f32.mrf.mxu0
          %v2572 = vadd.f32 0.0, %v2571
          %2573 = vmatmul.f32.gmra.mxu0 %v405
          %v2574 = vpop.f32.mrf.mxu0
          %v2575 = vadd.f32 0.0, %v2574
          %2576 = vmatmul.f32.gmra.mxu0 %v408
          %v2577 = vpop.f32.mrf.mxu0
          %v2578 = vadd.f32 0.0, %v2577
          %2579 = vmatmul.f32.gmra.mxu0 %v411
          %v2580 = vpop.f32.mrf.mxu0
          %v2581 = vadd.f32 0.0, %v2580
          %2582 = vdwg.mxu0
          %v2584 = vrot.slane %v2512, 4
          %v2585 = vsel %vm413, %v2584, 0
          %2587 = vmatpush.msra.mxu0 0.0
          %2588 = vmatpush.msra.mxu0 0.0
          %2589 = vmatpush.msra.mxu0 0.0
          %2590 = vmatpush.msra.mxu0 0.0
          %2591 = vmatpush.msra.mxu0 0.0
          %2592 = vmatpush.msra.mxu0 0.0
          %2593 = vmatpush.msra.mxu0 0.0
          %2594 = vmatpush.msra.mxu0 0.0
          %2595 = vmatpush.msra.mxu0 0.0
          %2596 = vmatpush.msra.mxu0 0.0
          %2597 = vmatpush.msra.mxu0 0.0
          %2598 = vmatpush.msra.mxu0 0.0
          %2599 = vmatpush.msra.mxu0 0.0
          %2600 = vmatpush.msra.mxu0 0.0
          %2601 = vmatpush.msra.mxu0 0.0
          %2602 = vmatpush.msra.mxu0 %v2585
          %2603 = vmatmul.f32.gmra.mxu0 %v483
          %v2604 = vpop.f32.mrf.mxu0
          %v2605 = vadd.f32 %v2536, %v2604
          %2606 = vmatmul.f32.gmra.mxu0 %v486
          %v2607 = vpop.f32.mrf.mxu0
          %v2608 = vadd.f32 %v2539, %v2607
          %2609 = vmatmul.f32.gmra.mxu0 %v489
          %v2610 = vpop.f32.mrf.mxu0
          %v2611 = vadd.f32 %v2542, %v2610
          %2612 = vmatmul.f32.gmra.mxu0 %v492
          %v2613 = vpop.f32.mrf.mxu0
          %v2614 = vadd.f32 %v2545, %v2613
          %2615 = vmatmul.f32.gmra.mxu0 %v495
          %v2616 = vpop.f32.mrf.mxu0
          %v2617 = vadd.f32 %v2548, %v2616
          %2618 = vmatmul.f32.gmra.mxu0 %v498
          %v2619 = vpop.f32.mrf.mxu0
          %v2620 = vadd.f32 %v2551, %v2619
          %2621 = vmatmul.f32.gmra.mxu0 %v501
          %v2622 = vpop.f32.mrf.mxu0
          %v2623 = vadd.f32 %v2554, %v2622
          %2624 = vmatmul.f32.gmra.mxu0 %v504
          %v2625 = vpop.f32.mrf.mxu0
          %v2626 = vadd.f32 %v2557, %v2625
          %2627 = vmatmul.f32.gmra.mxu0 %v507
          %v2628 = vpop.f32.mrf.mxu0
          %v2629 = vadd.f32 %v2560, %v2628
          %2630 = vmatmul.f32.gmra.mxu0 %v510
          %v2631 = vpop.f32.mrf.mxu0
          %v2632 = vadd.f32 %v2563, %v2631
          %2633 = vmatmul.f32.gmra.mxu0 %v513
          %v2634 = vpop.f32.mrf.mxu0
          %v2635 = vadd.f32 %v2566, %v2634
          %2636 = vmatmul.f32.gmra.mxu0 %v516
          %v2637 = vpop.f32.mrf.mxu0
          %v2638 = vadd.f32 %v2569, %v2637
          %2639 = vmatmul.f32.gmra.mxu0 %v519
          %v2640 = vpop.f32.mrf.mxu0
          %v2641 = vadd.f32 %v2572, %v2640
          %2642 = vmatmul.f32.gmra.mxu0 %v522
          %v2643 = vpop.f32.mrf.mxu0
          %v2644 = vadd.f32 %v2575, %v2643
          %2645 = vmatmul.f32.gmra.mxu0 %v525
          %v2646 = vpop.f32.mrf.mxu0
          %v2647 = vadd.f32 %v2578, %v2646
          %2648 = vmatmul.f32.gmra.mxu0 %v528
          %v2649 = vpop.f32.mrf.mxu0
          %v2650 = vadd.f32 %v2581, %v2649
          %2651 = vdwg.mxu0
          %v2652 = vadd.f32 %v2605, %v598
          %v2653 = vadd.f32 %v2608, %v599
          %v2654 = vadd.f32 %v2611, %v600
          %v2655 = vadd.f32 %v2614, %v601
          %v2656 = vadd.f32 %v2617, %v602
          %v2657 = vadd.f32 %v2620, %v603
          %v2658 = vadd.f32 %v2623, %v604
          %v2659 = vadd.f32 %v2626, %v605
          %v2660 = vadd.f32 %v2629, %v606
          %v2661 = vadd.f32 %v2632, %v607
          %v2662 = vadd.f32 %v2635, %v608
          %v2663 = vadd.f32 %v2638, %v609
          %v2664 = vadd.f32 %v2641, %v610
          %v2665 = vadd.f32 %v2644, %v611
          %v2666 = vadd.f32 %v2647, %v612
          %v2667 = vadd.f32 %v2650, %v613
          %v2668 = vmax.f32 %v2652, 0.0
          %v2669 = vmax.f32 %v2653, 0.0
          %v2670 = vmax.f32 %v2654, 0.0
          %v2671 = vmax.f32 %v2655, 0.0
          %v2672 = vmax.f32 %v2656, 0.0
          %v2673 = vmax.f32 %v2657, 0.0
          %v2674 = vmax.f32 %v2658, 0.0
          %v2675 = vmax.f32 %v2659, 0.0
          %v2676 = vmax.f32 %v2660, 0.0
          %v2677 = vmax.f32 %v2661, 0.0
          %v2678 = vmax.f32 %v2662, 0.0
          %v2679 = vmax.f32 %v2663, 0.0
          %v2680 = vmax.f32 %v2664, 0.0
          %v2681 = vmax.f32 %v2665, 0.0
          %v2682 = vmax.f32 %v2666, 0.0
          %v2683 = vmax.f32 %v2667, 0.0
          %v2684 = vadd.f32 %v2496, %v2668
          %v2685 = vadd.f32 %v2497, %v2669
          %v2686 = vadd.f32 %v2498, %v2670
          %v2687 = vadd.f32 %v2499, %v2671
          %v2688 = vadd.f32 %v2500, %v2672
          %v2689 = vadd.f32 %v2501, %v2673
          %v2690 = vadd.f32 %v2502, %v2674
          %v2691 = vadd.f32 %v2503, %v2675
          %v2692 = vadd.f32 %v2504, %v2676
          %v2693 = vadd.f32 %v2505, %v2677
          %v2694 = vadd.f32 %v2506, %v2678
          %v2695 = vadd.f32 %v2507, %v2679
          %v2696 = vadd.f32 %v2508, %v2680
          %v2697 = vadd.f32 %v2509, %v2681
          %v2698 = vadd.f32 %v2510, %v2682
          %v2699 = vadd.f32 %v2511, %v2683
          %2700 = vmatpush.msra.mxu0 0.0
          %2701 = vmatpush.msra.mxu0 0.0
          %2702 = vmatpush.msra.mxu0 0.0
          %2703 = vmatpush.msra.mxu0 0.0
          %2704 = vmatpush.msra.mxu0 0.0
          %2705 = vmatpush.msra.mxu0 0.0
          %2706 = vmatpush.msra.mxu0 0.0
          %2707 = vmatpush.msra.mxu0 0.0
          %2708 = vmatpush.msra.mxu0 0.0
          %2709 = vmatpush.msra.mxu0 0.0
          %2710 = vmatpush.msra.mxu0 0.0
          %2711 = vmatpush.msra.mxu0 0.0
          %2712 = vmatpush.msra.mxu0 0.0
          %2713 = vmatpush.msra.mxu0 0.0
          %2714 = vmatpush.msra.mxu0 0.0
          %2715 = vmatpush.msra.mxu0 %v2585
          %2716 = vmatmul.f32.gmra.mxu0 %v679
          %v2717 = vpop.f32.mrf.mxu0
          %v2718 = vadd.f32 0.0, %v2717
          %2719 = vmatmul.f32.gmra.mxu0 %v682
          %v2720 = vpop.f32.mrf.mxu0
          %v2721 = vadd.f32 0.0, %v2720
          %2722 = vmatmul.f32.gmra.mxu0 %v685
          %v2723 = vpop.f32.mrf.mxu0
          %v2724 = vadd.f32 0.0, %v2723
          %2725 = vmatmul.f32.gmra.mxu0 %v688
          %v2726 = vpop.f32.mrf.mxu0
          %v2727 = vadd.f32 0.0, %v2726
          %2728 = vmatmul.f32.gmra.mxu0 %v691
          %v2729 = vpop.f32.mrf.mxu0
          %v2730 = vadd.f32 0.0, %v2729
          %2731 = vmatmul.f32.gmra.mxu0 %v694
          %v2732 = vpop.f32.mrf.mxu0
          %v2733 = vadd.f32 0.0, %v2732
          %2734 = vmatmul.f32.gmra.mxu0 %v697
          %v2735 = vpop.f32.mrf.mxu0
          %v2736 = vadd.f32 0.0, %v2735
          %2737 = vmatmul.f32.gmra.mxu0 %v700
          %v2738 = vpop.f32.mrf.mxu0
          %v2739 = vadd.f32 0.0, %v2738
          %2740 = vmatmul.f32.gmra.mxu0 %v703
          %v2741 = vpop.f32.mrf.mxu0
          %v2742 = vadd.f32 0.0, %v2741
          %2743 = vmatmul.f32.gmra.mxu0 %v706
          %v2744 = vpop.f32.mrf.mxu0
          %v2745 = vadd.f32 0.0, %v2744
          %2746 = vmatmul.f32.gmra.mxu0 %v709
          %v2747 = vpop.f32.mrf.mxu0
          %v2748 = vadd.f32 0.0, %v2747
          %2749 = vmatmul.f32.gmra.mxu0 %v712
          %v2750 = vpop.f32.mrf.mxu0
          %v2751 = vadd.f32 0.0, %v2750
          %2752 = vmatmul.f32.gmra.mxu0 %v715
          %v2753 = vpop.f32.mrf.mxu0
          %v2754 = vadd.f32 0.0, %v2753
          %2755 = vmatmul.f32.gmra.mxu0 %v718
          %v2756 = vpop.f32.mrf.mxu0
          %v2757 = vadd.f32 0.0, %v2756
          %2758 = vmatmul.f32.gmra.mxu0 %v721
          %v2759 = vpop.f32.mrf.mxu0
          %v2760 = vadd.f32 0.0, %v2759
          %2761 = vmatmul.f32.gmra.mxu0 %v724
          %v2762 = vpop.f32.mrf.mxu0
          %v2763 = vadd.f32 0.0, %v2762
          %2764 = vdwg.mxu0
          %2765 = vmatpush.msra.mxu0 0.0
          %2766 = vmatpush.msra.mxu0 0.0
          %2767 = vmatpush.msra.mxu0 0.0
          %2768 = vmatpush.msra.mxu0 0.0
          %2769 = vmatpush.msra.mxu0 0.0
          %2770 = vmatpush.msra.mxu0 0.0
          %2771 = vmatpush.msra.mxu0 0.0
          %2772 = vmatpush.msra.mxu0 0.0
          %2773 = vmatpush.msra.mxu0 0.0
          %2774 = vmatpush.msra.mxu0 0.0
          %2775 = vmatpush.msra.mxu0 0.0
          %2776 = vmatpush.msra.mxu0 0.0
          %2777 = vmatpush.msra.mxu0 0.0
          %2778 = vmatpush.msra.mxu0 0.0
          %2779 = vmatpush.msra.mxu0 0.0
          %2780 = vmatpush.msra.mxu0 %v2516
          %2781 = vmatmul.f32.gmra.mxu0 %v483
          %v2782 = vpop.f32.mrf.mxu0
          %v2783 = vadd.f32 %v2718, %v2782
          %2784 = vmatmul.f32.gmra.mxu0 %v486
          %v2785 = vpop.f32.mrf.mxu0
          %v2786 = vadd.f32 %v2721, %v2785
          %2787 = vmatmul.f32.gmra.mxu0 %v489
          %v2788 = vpop.f32.mrf.mxu0
          %v2789 = vadd.f32 %v2724, %v2788
          %2790 = vmatmul.f32.gmra.mxu0 %v492
          %v2791 = vpop.f32.mrf.mxu0
          %v2792 = vadd.f32 %v2727, %v2791
          %2793 = vmatmul.f32.gmra.mxu0 %v495
          %v2794 = vpop.f32.mrf.mxu0
          %v2795 = vadd.f32 %v2730, %v2794
          %2796 = vmatmul.f32.gmra.mxu0 %v498
          %v2797 = vpop.f32.mrf.mxu0
          %v2798 = vadd.f32 %v2733, %v2797
          %2799 = vmatmul.f32.gmra.mxu0 %v501
          %v2800 = vpop.f32.mrf.mxu0
          %v2801 = vadd.f32 %v2736, %v2800
          %2802 = vmatmul.f32.gmra.mxu0 %v504
          %v2803 = vpop.f32.mrf.mxu0
          %v2804 = vadd.f32 %v2739, %v2803
          %2805 = vmatmul.f32.gmra.mxu0 %v507
          %v2806 = vpop.f32.mrf.mxu0
          %v2807 = vadd.f32 %v2742, %v2806
          %2808 = vmatmul.f32.gmra.mxu0 %v510
          %v2809 = vpop.f32.mrf.mxu0
          %v2810 = vadd.f32 %v2745, %v2809
          %2811 = vmatmul.f32.gmra.mxu0 %v513
          %v2812 = vpop.f32.mrf.mxu0
          %v2813 = vadd.f32 %v2748, %v2812
          %2814 = vmatmul.f32.gmra.mxu0 %v516
          %v2815 = vpop.f32.mrf.mxu0
          %v2816 = vadd.f32 %v2751, %v2815
          %2817 = vmatmul.f32.gmra.mxu0 %v519
          %v2818 = vpop.f32.mrf.mxu0
          %v2819 = vadd.f32 %v2754, %v2818
          %2820 = vmatmul.f32.gmra.mxu0 %v522
          %v2821 = vpop.f32.mrf.mxu0
          %v2822 = vadd.f32 %v2757, %v2821
          %2823 = vmatmul.f32.gmra.mxu0 %v525
          %v2824 = vpop.f32.mrf.mxu0
          %v2825 = vadd.f32 %v2760, %v2824
          %2826 = vmatmul.f32.gmra.mxu0 %v528
          %v2827 = vpop.f32.mrf.mxu0
          %v2828 = vadd.f32 %v2763, %v2827
          %2829 = vdwg.mxu0
          %v2830 = vld [vmem:[%s860] sm:$0xf0]
          %v2832 = vrot.slane %v2830, 4
          %v2833 = vsel %vm413, %v2832, 0
          %2835 = vmatpush.msra.mxu0 0.0
          %2836 = vmatpush.msra.mxu0 0.0
          %2837 = vmatpush.msra.mxu0 0.0
          %2838 = vmatpush.msra.mxu0 0.0
          %2839 = vmatpush.msra.mxu0 0.0
          %2840 = vmatpush.msra.mxu0 0.0
          %2841 = vmatpush.msra.mxu0 0.0
          %2842 = vmatpush.msra.mxu0 0.0
          %2843 = vmatpush.msra.mxu0 0.0
          %2844 = vmatpush.msra.mxu0 0.0
          %2845 = vmatpush.msra.mxu0 0.0
          %2846 = vmatpush.msra.mxu0 0.0
          %2847 = vmatpush.msra.mxu0 0.0
          %2848 = vmatpush.msra.mxu0 0.0
          %2849 = vmatpush.msra.mxu0 0.0
          %2850 = vmatpush.msra.mxu0 %v2833
          %2851 = vmatmul.f32.gmra.mxu0 %v366
          %v2852 = vpop.f32.mrf.mxu0
          %v2853 = vadd.f32 0.0, %v2852
          %2854 = vmatmul.f32.gmra.mxu0 %v369
          %v2855 = vpop.f32.mrf.mxu0
          %v2856 = vadd.f32 0.0, %v2855
          %2857 = vmatmul.f32.gmra.mxu0 %v372
          %v2858 = vpop.f32.mrf.mxu0
          %v2859 = vadd.f32 0.0, %v2858
          %2860 = vmatmul.f32.gmra.mxu0 %v375
          %v2861 = vpop.f32.mrf.mxu0
          %v2862 = vadd.f32 0.0, %v2861
          %2863 = vmatmul.f32.gmra.mxu0 %v378
          %v2864 = vpop.f32.mrf.mxu0
          %v2865 = vadd.f32 0.0, %v2864
          %2866 = vmatmul.f32.gmra.mxu0 %v381
          %v2867 = vpop.f32.mrf.mxu0
          %v2868 = vadd.f32 0.0, %v2867
          %2869 = vmatmul.f32.gmra.mxu0 %v384
          %v2870 = vpop.f32.mrf.mxu0
          %v2871 = vadd.f32 0.0, %v2870
          %2872 = vmatmul.f32.gmra.mxu0 %v387
          %v2873 = vpop.f32.mrf.mxu0
          %v2874 = vadd.f32 0.0, %v2873
          %2875 = vmatmul.f32.gmra.mxu0 %v390
          %v2876 = vpop.f32.mrf.mxu0
          %v2877 = vadd.f32 0.0, %v2876
          %2878 = vmatmul.f32.gmra.mxu0 %v393
          %v2879 = vpop.f32.mrf.mxu0
          %v2880 = vadd.f32 0.0, %v2879
          %2881 = vmatmul.f32.gmra.mxu0 %v396
          %v2882 = vpop.f32.mrf.mxu0
          %v2883 = vadd.f32 0.0, %v2882
          %2884 = vmatmul.f32.gmra.mxu0 %v399
          %v2885 = vpop.f32.mrf.mxu0
          %v2886 = vadd.f32 0.0, %v2885
          %2887 = vmatmul.f32.gmra.mxu0 %v402
          %v2888 = vpop.f32.mrf.mxu0
          %v2889 = vadd.f32 0.0, %v2888
          %2890 = vmatmul.f32.gmra.mxu0 %v405
          %v2891 = vpop.f32.mrf.mxu0
          %v2892 = vadd.f32 0.0, %v2891
          %2893 = vmatmul.f32.gmra.mxu0 %v408
          %v2894 = vpop.f32.mrf.mxu0
          %v2895 = vadd.f32 0.0, %v2894
          %2896 = vmatmul.f32.gmra.mxu0 %v411
          %v2897 = vpop.f32.mrf.mxu0
          %v2898 = vadd.f32 0.0, %v2897
          %2899 = vdwg.mxu0
          %v2900 = vadd.f32 %v2783, %v2853
          %v2901 = vadd.f32 %v2786, %v2856
          %v2902 = vadd.f32 %v2789, %v2859
          %v2903 = vadd.f32 %v2792, %v2862
          %v2904 = vadd.f32 %v2795, %v2865
          %v2905 = vadd.f32 %v2798, %v2868
          %v2906 = vadd.f32 %v2801, %v2871
          %v2907 = vadd.f32 %v2804, %v2874
          %v2908 = vadd.f32 %v2807, %v2877
          %v2909 = vadd.f32 %v2810, %v2880
          %v2910 = vadd.f32 %v2813, %v2883
          %v2911 = vadd.f32 %v2816, %v2886
          %v2912 = vadd.f32 %v2819, %v2889
          %v2913 = vadd.f32 %v2822, %v2892
          %v2914 = vadd.f32 %v2825, %v2895
          %v2915 = vadd.f32 %v2828, %v2898
          %v2916 = vadd.f32 %v2900, %v598
          %v2917 = vadd.f32 %v2901, %v599
          %v2918 = vadd.f32 %v2902, %v600
          %v2919 = vadd.f32 %v2903, %v601
          %v2920 = vadd.f32 %v2904, %v602
          %v2921 = vadd.f32 %v2905, %v603
          %v2922 = vadd.f32 %v2906, %v604
          %v2923 = vadd.f32 %v2907, %v605
          %v2924 = vadd.f32 %v2908, %v606
          %v2925 = vadd.f32 %v2909, %v607
          %v2926 = vadd.f32 %v2910, %v608
          %v2927 = vadd.f32 %v2911, %v609
          %v2928 = vadd.f32 %v2912, %v610
          %v2929 = vadd.f32 %v2913, %v611
          %v2930 = vadd.f32 %v2914, %v612
          %v2931 = vadd.f32 %v2915, %v613
          %v2932 = vmax.f32 %v2916, 0.0
          %v2933 = vmax.f32 %v2917, 0.0
          %v2934 = vmax.f32 %v2918, 0.0
          %v2935 = vmax.f32 %v2919, 0.0
          %v2936 = vmax.f32 %v2920, 0.0
          %v2937 = vmax.f32 %v2921, 0.0
          %v2938 = vmax.f32 %v2922, 0.0
          %v2939 = vmax.f32 %v2923, 0.0
          %v2940 = vmax.f32 %v2924, 0.0
          %v2941 = vmax.f32 %v2925, 0.0
          %v2942 = vmax.f32 %v2926, 0.0
          %v2943 = vmax.f32 %v2927, 0.0
          %v2944 = vmax.f32 %v2928, 0.0
          %v2945 = vmax.f32 %v2929, 0.0
          %v2946 = vmax.f32 %v2930, 0.0
          %v2947 = vmax.f32 %v2931, 0.0
          %v2948 = vadd.f32 %v2684, %v2932
          %v2949 = vadd.f32 %v2685, %v2933
          %v2950 = vadd.f32 %v2686, %v2934
          %v2951 = vadd.f32 %v2687, %v2935
          %v2952 = vadd.f32 %v2688, %v2936
          %v2953 = vadd.f32 %v2689, %v2937
          %v2954 = vadd.f32 %v2690, %v2938
          %v2955 = vadd.f32 %v2691, %v2939
          %v2956 = vadd.f32 %v2692, %v2940
          %v2957 = vadd.f32 %v2693, %v2941
          %v2958 = vadd.f32 %v2694, %v2942
          %v2959 = vadd.f32 %v2695, %v2943
          %v2960 = vadd.f32 %v2696, %v2944
          %v2961 = vadd.f32 %v2697, %v2945
          %v2962 = vadd.f32 %v2698, %v2946
          %v2963 = vadd.f32 %v2699, %v2947
          %2964 = vmatpush.msra.mxu0 0.0
          %2965 = vmatpush.msra.mxu0 0.0
          %2966 = vmatpush.msra.mxu0 0.0
          %2967 = vmatpush.msra.mxu0 0.0
          %2968 = vmatpush.msra.mxu0 0.0
          %2969 = vmatpush.msra.mxu0 0.0
          %2970 = vmatpush.msra.mxu0 0.0
          %2971 = vmatpush.msra.mxu0 0.0
          %2972 = vmatpush.msra.mxu0 0.0
          %2973 = vmatpush.msra.mxu0 0.0
          %2974 = vmatpush.msra.mxu0 0.0
          %2975 = vmatpush.msra.mxu0 0.0
          %2976 = vmatpush.msra.mxu0 0.0
          %2977 = vmatpush.msra.mxu0 0.0
          %2978 = vmatpush.msra.mxu0 0.0
          %2979 = vmatpush.msra.mxu0 %v2516
          %2980 = vmatmul.f32.gmra.mxu0 %v679
          %v2981 = vpop.f32.mrf.mxu0
          %v2982 = vadd.f32 0.0, %v2981
          %2983 = vmatmul.f32.gmra.mxu0 %v682
          %v2984 = vpop.f32.mrf.mxu0
          %v2985 = vadd.f32 0.0, %v2984
          %2986 = vmatmul.f32.gmra.mxu0 %v685
          %v2987 = vpop.f32.mrf.mxu0
          %v2988 = vadd.f32 0.0, %v2987
          %2989 = vmatmul.f32.gmra.mxu0 %v688
          %v2990 = vpop.f32.mrf.mxu0
          %v2991 = vadd.f32 0.0, %v2990
          %2992 = vmatmul.f32.gmra.mxu0 %v691
          %v2993 = vpop.f32.mrf.mxu0
          %v2994 = vadd.f32 0.0, %v2993
          %2995 = vmatmul.f32.gmra.mxu0 %v694
          %v2996 = vpop.f32.mrf.mxu0
          %v2997 = vadd.f32 0.0, %v2996
          %2998 = vmatmul.f32.gmra.mxu0 %v697
          %v2999 = vpop.f32.mrf.mxu0
          %v3000 = vadd.f32 0.0, %v2999
          %3001 = vmatmul.f32.gmra.mxu0 %v700
          %v3002 = vpop.f32.mrf.mxu0
          %v3003 = vadd.f32 0.0, %v3002
          %3004 = vmatmul.f32.gmra.mxu0 %v703
          %v3005 = vpop.f32.mrf.mxu0
          %v3006 = vadd.f32 0.0, %v3005
          %3007 = vmatmul.f32.gmra.mxu0 %v706
          %v3008 = vpop.f32.mrf.mxu0
          %v3009 = vadd.f32 0.0, %v3008
          %3010 = vmatmul.f32.gmra.mxu0 %v709
          %v3011 = vpop.f32.mrf.mxu0
          %v3012 = vadd.f32 0.0, %v3011
          %3013 = vmatmul.f32.gmra.mxu0 %v712
          %v3014 = vpop.f32.mrf.mxu0
          %v3015 = vadd.f32 0.0, %v3014
          %3016 = vmatmul.f32.gmra.mxu0 %v715
          %v3017 = vpop.f32.mrf.mxu0
          %v3018 = vadd.f32 0.0, %v3017
          %3019 = vmatmul.f32.gmra.mxu0 %v718
          %v3020 = vpop.f32.mrf.mxu0
          %v3021 = vadd.f32 0.0, %v3020
          %3022 = vmatmul.f32.gmra.mxu0 %v721
          %v3023 = vpop.f32.mrf.mxu0
          %v3024 = vadd.f32 0.0, %v3023
          %3025 = vmatmul.f32.gmra.mxu0 %v724
          %v3026 = vpop.f32.mrf.mxu0
          %v3027 = vadd.f32 0.0, %v3026
          %3028 = vdwg.mxu0
          %3029 = vmatpush.msra.mxu0 0.0
          %3030 = vmatpush.msra.mxu0 0.0
          %3031 = vmatpush.msra.mxu0 0.0
          %3032 = vmatpush.msra.mxu0 0.0
          %3033 = vmatpush.msra.mxu0 0.0
          %3034 = vmatpush.msra.mxu0 0.0
          %3035 = vmatpush.msra.mxu0 0.0
          %3036 = vmatpush.msra.mxu0 0.0
          %3037 = vmatpush.msra.mxu0 0.0
          %3038 = vmatpush.msra.mxu0 0.0
          %3039 = vmatpush.msra.mxu0 0.0
          %3040 = vmatpush.msra.mxu0 0.0
          %3041 = vmatpush.msra.mxu0 0.0
          %3042 = vmatpush.msra.mxu0 0.0
          %3043 = vmatpush.msra.mxu0 0.0
          %3044 = vmatpush.msra.mxu0 %v2833
          %3045 = vmatmul.f32.gmra.mxu0 %v483
          %v3046 = vpop.f32.mrf.mxu0
          %v3047 = vadd.f32 %v2982, %v3046
          %3048 = vmatmul.f32.gmra.mxu0 %v486
          %v3049 = vpop.f32.mrf.mxu0
          %v3050 = vadd.f32 %v2985, %v3049
          %3051 = vmatmul.f32.gmra.mxu0 %v489
          %v3052 = vpop.f32.mrf.mxu0
          %v3053 = vadd.f32 %v2988, %v3052
          %3054 = vmatmul.f32.gmra.mxu0 %v492
          %v3055 = vpop.f32.mrf.mxu0
          %v3056 = vadd.f32 %v2991, %v3055
          %3057 = vmatmul.f32.gmra.mxu0 %v495
          %v3058 = vpop.f32.mrf.mxu0
          %v3059 = vadd.f32 %v2994, %v3058
          %3060 = vmatmul.f32.gmra.mxu0 %v498
          %v3061 = vpop.f32.mrf.mxu0
          %v3062 = vadd.f32 %v2997, %v3061
          %3063 = vmatmul.f32.gmra.mxu0 %v501
          %v3064 = vpop.f32.mrf.mxu0
          %v3065 = vadd.f32 %v3000, %v3064
          %3066 = vmatmul.f32.gmra.mxu0 %v504
          %v3067 = vpop.f32.mrf.mxu0
          %v3068 = vadd.f32 %v3003, %v3067
          %3069 = vmatmul.f32.gmra.mxu0 %v507
          %v3070 = vpop.f32.mrf.mxu0
          %v3071 = vadd.f32 %v3006, %v3070
          %3072 = vmatmul.f32.gmra.mxu0 %v510
          %v3073 = vpop.f32.mrf.mxu0
          %v3074 = vadd.f32 %v3009, %v3073
          %3075 = vmatmul.f32.gmra.mxu0 %v513
          %v3076 = vpop.f32.mrf.mxu0
          %v3077 = vadd.f32 %v3012, %v3076
          %3078 = vmatmul.f32.gmra.mxu0 %v516
          %v3079 = vpop.f32.mrf.mxu0
          %v3080 = vadd.f32 %v3015, %v3079
          %3081 = vmatmul.f32.gmra.mxu0 %v519
          %v3082 = vpop.f32.mrf.mxu0
          %v3083 = vadd.f32 %v3018, %v3082
          %3084 = vmatmul.f32.gmra.mxu0 %v522
          %v3085 = vpop.f32.mrf.mxu0
          %v3086 = vadd.f32 %v3021, %v3085
          %3087 = vmatmul.f32.gmra.mxu0 %v525
          %v3088 = vpop.f32.mrf.mxu0
          %v3089 = vadd.f32 %v3024, %v3088
          %3090 = vmatmul.f32.gmra.mxu0 %v528
          %v3091 = vpop.f32.mrf.mxu0
          %v3092 = vadd.f32 %v3027, %v3091
          %3093 = vdwg.mxu0
          %v3094 = vld [vmem:[%s1128] sm:$0xf0]
          %v3096 = vrot.slane %v3094, 4
          %v3097 = vsel %vm413, %v3096, 0
          %3099 = vmatpush.msra.mxu0 0.0
          %3100 = vmatpush.msra.mxu0 0.0
          %3101 = vmatpush.msra.mxu0 0.0
          %3102 = vmatpush.msra.mxu0 0.0
          %3103 = vmatpush.msra.mxu0 0.0
          %3104 = vmatpush.msra.mxu0 0.0
          %3105 = vmatpush.msra.mxu0 0.0
          %3106 = vmatpush.msra.mxu0 0.0
          %3107 = vmatpush.msra.mxu0 0.0
          %3108 = vmatpush.msra.mxu0 0.0
          %3109 = vmatpush.msra.mxu0 0.0
          %3110 = vmatpush.msra.mxu0 0.0
          %3111 = vmatpush.msra.mxu0 0.0
          %3112 = vmatpush.msra.mxu0 0.0
          %3113 = vmatpush.msra.mxu0 0.0
          %3114 = vmatpush.msra.mxu0 %v3097
          %3115 = vmatmul.f32.gmra.mxu0 %v366
          %v3116 = vpop.f32.mrf.mxu0
          %v3117 = vadd.f32 0.0, %v3116
          %3118 = vmatmul.f32.gmra.mxu0 %v369
          %v3119 = vpop.f32.mrf.mxu0
          %v3120 = vadd.f32 0.0, %v3119
          %3121 = vmatmul.f32.gmra.mxu0 %v372
          %v3122 = vpop.f32.mrf.mxu0
          %v3123 = vadd.f32 0.0, %v3122
          %3124 = vmatmul.f32.gmra.mxu0 %v375
          %v3125 = vpop.f32.mrf.mxu0
          %v3126 = vadd.f32 0.0, %v3125
          %3127 = vmatmul.f32.gmra.mxu0 %v378
          %v3128 = vpop.f32.mrf.mxu0
          %v3129 = vadd.f32 0.0, %v3128
          %3130 = vmatmul.f32.gmra.mxu0 %v381
          %v3131 = vpop.f32.mrf.mxu0
          %v3132 = vadd.f32 0.0, %v3131
          %3133 = vmatmul.f32.gmra.mxu0 %v384
          %v3134 = vpop.f32.mrf.mxu0
          %v3135 = vadd.f32 0.0, %v3134
          %3136 = vmatmul.f32.gmra.mxu0 %v387
          %v3137 = vpop.f32.mrf.mxu0
          %v3138 = vadd.f32 0.0, %v3137
          %3139 = vmatmul.f32.gmra.mxu0 %v390
          %v3140 = vpop.f32.mrf.mxu0
          %v3141 = vadd.f32 0.0, %v3140
          %3142 = vmatmul.f32.gmra.mxu0 %v393
          %v3143 = vpop.f32.mrf.mxu0
          %v3144 = vadd.f32 0.0, %v3143
          %3145 = vmatmul.f32.gmra.mxu0 %v396
          %v3146 = vpop.f32.mrf.mxu0
          %v3147 = vadd.f32 0.0, %v3146
          %3148 = vmatmul.f32.gmra.mxu0 %v399
          %v3149 = vpop.f32.mrf.mxu0
          %v3150 = vadd.f32 0.0, %v3149
          %3151 = vmatmul.f32.gmra.mxu0 %v402
          %v3152 = vpop.f32.mrf.mxu0
          %v3153 = vadd.f32 0.0, %v3152
          %3154 = vmatmul.f32.gmra.mxu0 %v405
          %v3155 = vpop.f32.mrf.mxu0
          %v3156 = vadd.f32 0.0, %v3155
          %3157 = vmatmul.f32.gmra.mxu0 %v408
          %v3158 = vpop.f32.mrf.mxu0
          %v3159 = vadd.f32 0.0, %v3158
          %3160 = vmatmul.f32.gmra.mxu0 %v411
          %v3161 = vpop.f32.mrf.mxu0
          %v3162 = vadd.f32 0.0, %v3161
          %3163 = vdwg.mxu0
          %v3164 = vadd.f32 %v3047, %v3117
          %v3165 = vadd.f32 %v3050, %v3120
          %v3166 = vadd.f32 %v3053, %v3123
          %v3167 = vadd.f32 %v3056, %v3126
          %v3168 = vadd.f32 %v3059, %v3129
          %v3169 = vadd.f32 %v3062, %v3132
          %v3170 = vadd.f32 %v3065, %v3135
          %v3171 = vadd.f32 %v3068, %v3138
          %v3172 = vadd.f32 %v3071, %v3141
          %v3173 = vadd.f32 %v3074, %v3144
          %v3174 = vadd.f32 %v3077, %v3147
          %v3175 = vadd.f32 %v3080, %v3150
          %v3176 = vadd.f32 %v3083, %v3153
          %v3177 = vadd.f32 %v3086, %v3156
          %v3178 = vadd.f32 %v3089, %v3159
          %v3179 = vadd.f32 %v3092, %v3162
          %v3180 = vadd.f32 %v3164, %v598
          %v3181 = vadd.f32 %v3165, %v599
          %v3182 = vadd.f32 %v3166, %v600
          %v3183 = vadd.f32 %v3167, %v601
          %v3184 = vadd.f32 %v3168, %v602
          %v3185 = vadd.f32 %v3169, %v603
          %v3186 = vadd.f32 %v3170, %v604
          %v3187 = vadd.f32 %v3171, %v605
          %v3188 = vadd.f32 %v3172, %v606
          %v3189 = vadd.f32 %v3173, %v607
          %v3190 = vadd.f32 %v3174, %v608
          %v3191 = vadd.f32 %v3175, %v609
          %v3192 = vadd.f32 %v3176, %v610
          %v3193 = vadd.f32 %v3177, %v611
          %v3194 = vadd.f32 %v3178, %v612
          %v3195 = vadd.f32 %v3179, %v613
          %v3196 = vmax.f32 %v3180, 0.0
          %v3197 = vmax.f32 %v3181, 0.0
          %v3198 = vmax.f32 %v3182, 0.0
          %v3199 = vmax.f32 %v3183, 0.0
          %v3200 = vmax.f32 %v3184, 0.0
          %v3201 = vmax.f32 %v3185, 0.0
          %v3202 = vmax.f32 %v3186, 0.0
          %v3203 = vmax.f32 %v3187, 0.0
          %v3204 = vmax.f32 %v3188, 0.0
          %v3205 = vmax.f32 %v3189, 0.0
          %v3206 = vmax.f32 %v3190, 0.0
          %v3207 = vmax.f32 %v3191, 0.0
          %v3208 = vmax.f32 %v3192, 0.0
          %v3209 = vmax.f32 %v3193, 0.0
          %v3210 = vmax.f32 %v3194, 0.0
          %v3211 = vmax.f32 %v3195, 0.0
          %v3212 = vadd.f32 %v2948, %v3196
          %v3213 = vadd.f32 %v2949, %v3197
          %v3214 = vadd.f32 %v2950, %v3198
          %v3215 = vadd.f32 %v2951, %v3199
          %v3216 = vadd.f32 %v2952, %v3200
          %v3217 = vadd.f32 %v2953, %v3201
          %v3218 = vadd.f32 %v2954, %v3202
          %v3219 = vadd.f32 %v2955, %v3203
          %v3220 = vadd.f32 %v2956, %v3204
          %v3221 = vadd.f32 %v2957, %v3205
          %v3222 = vadd.f32 %v2958, %v3206
          %v3223 = vadd.f32 %v2959, %v3207
          %v3224 = vadd.f32 %v2960, %v3208
          %v3225 = vadd.f32 %v2961, %v3209
          %v3226 = vadd.f32 %v2962, %v3210
          %v3227 = vadd.f32 %v2963, %v3211
          %3228 = vmatpush.msra.mxu0 0.0
          %3229 = vmatpush.msra.mxu0 0.0
          %3230 = vmatpush.msra.mxu0 0.0
          %3231 = vmatpush.msra.mxu0 0.0
          %3232 = vmatpush.msra.mxu0 0.0
          %3233 = vmatpush.msra.mxu0 0.0
          %3234 = vmatpush.msra.mxu0 0.0
          %3235 = vmatpush.msra.mxu0 0.0
          %3236 = vmatpush.msra.mxu0 0.0
          %3237 = vmatpush.msra.mxu0 0.0
          %3238 = vmatpush.msra.mxu0 0.0
          %3239 = vmatpush.msra.mxu0 0.0
          %3240 = vmatpush.msra.mxu0 0.0
          %3241 = vmatpush.msra.mxu0 0.0
          %3242 = vmatpush.msra.mxu0 0.0
          %3243 = vmatpush.msra.mxu0 %v2833
          %3244 = vmatmul.f32.gmra.mxu0 %v679
          %v3245 = vpop.f32.mrf.mxu0
          %v3246 = vadd.f32 0.0, %v3245
          %3247 = vmatmul.f32.gmra.mxu0 %v682
          %v3248 = vpop.f32.mrf.mxu0
          %v3249 = vadd.f32 0.0, %v3248
          %3250 = vmatmul.f32.gmra.mxu0 %v685
          %v3251 = vpop.f32.mrf.mxu0
          %v3252 = vadd.f32 0.0, %v3251
          %3253 = vmatmul.f32.gmra.mxu0 %v688
          %v3254 = vpop.f32.mrf.mxu0
          %v3255 = vadd.f32 0.0, %v3254
          %3256 = vmatmul.f32.gmra.mxu0 %v691
          %v3257 = vpop.f32.mrf.mxu0
          %v3258 = vadd.f32 0.0, %v3257
          %3259 = vmatmul.f32.gmra.mxu0 %v694
          %v3260 = vpop.f32.mrf.mxu0
          %v3261 = vadd.f32 0.0, %v3260
          %3262 = vmatmul.f32.gmra.mxu0 %v697
          %v3263 = vpop.f32.mrf.mxu0
          %v3264 = vadd.f32 0.0, %v3263
          %3265 = vmatmul.f32.gmra.mxu0 %v700
          %v3266 = vpop.f32.mrf.mxu0
          %v3267 = vadd.f32 0.0, %v3266
          %3268 = vmatmul.f32.gmra.mxu0 %v703
          %v3269 = vpop.f32.mrf.mxu0
          %v3270 = vadd.f32 0.0, %v3269
          %3271 = vmatmul.f32.gmra.mxu0 %v706
          %v3272 = vpop.f32.mrf.mxu0
          %v3273 = vadd.f32 0.0, %v3272
          %3274 = vmatmul.f32.gmra.mxu0 %v709
          %v3275 = vpop.f32.mrf.mxu0
          %v3276 = vadd.f32 0.0, %v3275
          %3277 = vmatmul.f32.gmra.mxu0 %v712
          %v3278 = vpop.f32.mrf.mxu0
          %v3279 = vadd.f32 0.0, %v3278
          %3280 = vmatmul.f32.gmra.mxu0 %v715
          %v3281 = vpop.f32.mrf.mxu0
          %v3282 = vadd.f32 0.0, %v3281
          %3283 = vmatmul.f32.gmra.mxu0 %v718
          %v3284 = vpop.f32.mrf.mxu0
          %v3285 = vadd.f32 0.0, %v3284
          %3286 = vmatmul.f32.gmra.mxu0 %v721
          %v3287 = vpop.f32.mrf.mxu0
          %v3288 = vadd.f32 0.0, %v3287
          %3289 = vmatmul.f32.gmra.mxu0 %v724
          %v3290 = vpop.f32.mrf.mxu0
          %v3291 = vadd.f32 0.0, %v3290
          %3292 = vdwg.mxu0
          %3293 = vmatpush.msra.mxu0 0.0
          %3294 = vmatpush.msra.mxu0 0.0
          %3295 = vmatpush.msra.mxu0 0.0
          %3296 = vmatpush.msra.mxu0 0.0
          %3297 = vmatpush.msra.mxu0 0.0
          %3298 = vmatpush.msra.mxu0 0.0
          %3299 = vmatpush.msra.mxu0 0.0
          %3300 = vmatpush.msra.mxu0 0.0
          %3301 = vmatpush.msra.mxu0 0.0
          %3302 = vmatpush.msra.mxu0 0.0
          %3303 = vmatpush.msra.mxu0 0.0
          %3304 = vmatpush.msra.mxu0 0.0
          %3305 = vmatpush.msra.mxu0 0.0
          %3306 = vmatpush.msra.mxu0 0.0
          %3307 = vmatpush.msra.mxu0 0.0
          %3308 = vmatpush.msra.mxu0 %v3097
          %3309 = vmatmul.f32.gmra.mxu0 %v483
          %v3310 = vpop.f32.mrf.mxu0
          %v3311 = vadd.f32 %v3246, %v3310
          %3312 = vmatmul.f32.gmra.mxu0 %v486
          %v3313 = vpop.f32.mrf.mxu0
          %v3314 = vadd.f32 %v3249, %v3313
          %3315 = vmatmul.f32.gmra.mxu0 %v489
          %v3316 = vpop.f32.mrf.mxu0
          %v3317 = vadd.f32 %v3252, %v3316
          %3318 = vmatmul.f32.gmra.mxu0 %v492
          %v3319 = vpop.f32.mrf.mxu0
          %v3320 = vadd.f32 %v3255, %v3319
          %3321 = vmatmul.f32.gmra.mxu0 %v495
          %v3322 = vpop.f32.mrf.mxu0
          %v3323 = vadd.f32 %v3258, %v3322
          %3324 = vmatmul.f32.gmra.mxu0 %v498
          %v3325 = vpop.f32.mrf.mxu0
          %v3326 = vadd.f32 %v3261, %v3325
          %3327 = vmatmul.f32.gmra.mxu0 %v501
          %v3328 = vpop.f32.mrf.mxu0
          %v3329 = vadd.f32 %v3264, %v3328
          %3330 = vmatmul.f32.gmra.mxu0 %v504
          %v3331 = vpop.f32.mrf.mxu0
          %v3332 = vadd.f32 %v3267, %v3331
          %3333 = vmatmul.f32.gmra.mxu0 %v507
          %v3334 = vpop.f32.mrf.mxu0
          %v3335 = vadd.f32 %v3270, %v3334
          %3336 = vmatmul.f32.gmra.mxu0 %v510
          %v3337 = vpop.f32.mrf.mxu0
          %v3338 = vadd.f32 %v3273, %v3337
          %3339 = vmatmul.f32.gmra.mxu0 %v513
          %v3340 = vpop.f32.mrf.mxu0
          %v3341 = vadd.f32 %v3276, %v3340
          %3342 = vmatmul.f32.gmra.mxu0 %v516
          %v3343 = vpop.f32.mrf.mxu0
          %v3344 = vadd.f32 %v3279, %v3343
          %3345 = vmatmul.f32.gmra.mxu0 %v519
          %v3346 = vpop.f32.mrf.mxu0
          %v3347 = vadd.f32 %v3282, %v3346
          %3348 = vmatmul.f32.gmra.mxu0 %v522
          %v3349 = vpop.f32.mrf.mxu0
          %v3350 = vadd.f32 %v3285, %v3349
          %3351 = vmatmul.f32.gmra.mxu0 %v525
          %v3352 = vpop.f32.mrf.mxu0
          %v3353 = vadd.f32 %v3288, %v3352
          %3354 = vmatmul.f32.gmra.mxu0 %v528
          %v3355 = vpop.f32.mrf.mxu0
          %v3356 = vadd.f32 %v3291, %v3355
          %3357 = vdwg.mxu0
          %v3358 = vld [vmem:[%s1396] sm:$0xf0]
          %v3360 = vrot.slane %v3358, 4
          %v3361 = vsel %vm413, %v3360, 0
          %3363 = vmatpush.msra.mxu0 0.0
          %3364 = vmatpush.msra.mxu0 0.0
          %3365 = vmatpush.msra.mxu0 0.0
          %3366 = vmatpush.msra.mxu0 0.0
          %3367 = vmatpush.msra.mxu0 0.0
          %3368 = vmatpush.msra.mxu0 0.0
          %3369 = vmatpush.msra.mxu0 0.0
          %3370 = vmatpush.msra.mxu0 0.0
          %3371 = vmatpush.msra.mxu0 0.0
          %3372 = vmatpush.msra.mxu0 0.0
          %3373 = vmatpush.msra.mxu0 0.0
          %3374 = vmatpush.msra.mxu0 0.0
          %3375 = vmatpush.msra.mxu0 0.0
          %3376 = vmatpush.msra.mxu0 0.0
          %3377 = vmatpush.msra.mxu0 0.0
          %3378 = vmatpush.msra.mxu0 %v3361
          %3379 = vmatmul.f32.gmra.mxu0 %v366
          %v3380 = vpop.f32.mrf.mxu0
          %v3381 = vadd.f32 0.0, %v3380
          %3382 = vmatmul.f32.gmra.mxu0 %v369
          %v3383 = vpop.f32.mrf.mxu0
          %v3384 = vadd.f32 0.0, %v3383
          %3385 = vmatmul.f32.gmra.mxu0 %v372
          %v3386 = vpop.f32.mrf.mxu0
          %v3387 = vadd.f32 0.0, %v3386
          %3388 = vmatmul.f32.gmra.mxu0 %v375
          %v3389 = vpop.f32.mrf.mxu0
          %v3390 = vadd.f32 0.0, %v3389
          %3391 = vmatmul.f32.gmra.mxu0 %v378
          %v3392 = vpop.f32.mrf.mxu0
          %v3393 = vadd.f32 0.0, %v3392
          %3394 = vmatmul.f32.gmra.mxu0 %v381
          %v3395 = vpop.f32.mrf.mxu0
          %v3396 = vadd.f32 0.0, %v3395
          %3397 = vmatmul.f32.gmra.mxu0 %v384
          %v3398 = vpop.f32.mrf.mxu0
          %v3399 = vadd.f32 0.0, %v3398
          %3400 = vmatmul.f32.gmra.mxu0 %v387
          %v3401 = vpop.f32.mrf.mxu0
          %v3402 = vadd.f32 0.0, %v3401
          %3403 = vmatmul.f32.gmra.mxu0 %v390
          %v3404 = vpop.f32.mrf.mxu0
          %v3405 = vadd.f32 0.0, %v3404
          %3406 = vmatmul.f32.gmra.mxu0 %v393
          %v3407 = vpop.f32.mrf.mxu0
          %v3408 = vadd.f32 0.0, %v3407
          %3409 = vmatmul.f32.gmra.mxu0 %v396
          %v3410 = vpop.f32.mrf.mxu0
          %v3411 = vadd.f32 0.0, %v3410
          %3412 = vmatmul.f32.gmra.mxu0 %v399
          %v3413 = vpop.f32.mrf.mxu0
          %v3414 = vadd.f32 0.0, %v3413
          %3415 = vmatmul.f32.gmra.mxu0 %v402
          %v3416 = vpop.f32.mrf.mxu0
          %v3417 = vadd.f32 0.0, %v3416
          %3418 = vmatmul.f32.gmra.mxu0 %v405
          %v3419 = vpop.f32.mrf.mxu0
          %v3420 = vadd.f32 0.0, %v3419
          %3421 = vmatmul.f32.gmra.mxu0 %v408
          %v3422 = vpop.f32.mrf.mxu0
          %v3423 = vadd.f32 0.0, %v3422
          %3424 = vmatmul.f32.gmra.mxu0 %v411
          %v3425 = vpop.f32.mrf.mxu0
          %v3426 = vadd.f32 0.0, %v3425
          %3427 = vdwg.mxu0
          %v3428 = vadd.f32 %v3311, %v3381
          %v3429 = vadd.f32 %v3314, %v3384
          %v3430 = vadd.f32 %v3317, %v3387
          %v3431 = vadd.f32 %v3320, %v3390
          %v3432 = vadd.f32 %v3323, %v3393
          %v3433 = vadd.f32 %v3326, %v3396
          %v3434 = vadd.f32 %v3329, %v3399
          %v3435 = vadd.f32 %v3332, %v3402
          %v3436 = vadd.f32 %v3335, %v3405
          %v3437 = vadd.f32 %v3338, %v3408
          %v3438 = vadd.f32 %v3341, %v3411
          %v3439 = vadd.f32 %v3344, %v3414
          %v3440 = vadd.f32 %v3347, %v3417
          %v3441 = vadd.f32 %v3350, %v3420
          %v3442 = vadd.f32 %v3353, %v3423
          %v3443 = vadd.f32 %v3356, %v3426
          %v3444 = vadd.f32 %v3428, %v598
          %v3445 = vadd.f32 %v3429, %v599
          %v3446 = vadd.f32 %v3430, %v600
          %v3447 = vadd.f32 %v3431, %v601
          %v3448 = vadd.f32 %v3432, %v602
          %v3449 = vadd.f32 %v3433, %v603
          %v3450 = vadd.f32 %v3434, %v604
          %v3451 = vadd.f32 %v3435, %v605
          %v3452 = vadd.f32 %v3436, %v606
          %v3453 = vadd.f32 %v3437, %v607
          %v3454 = vadd.f32 %v3438, %v608
          %v3455 = vadd.f32 %v3439, %v609
          %v3456 = vadd.f32 %v3440, %v610
          %v3457 = vadd.f32 %v3441, %v611
          %v3458 = vadd.f32 %v3442, %v612
          %v3459 = vadd.f32 %v3443, %v613
          %v3460 = vmax.f32 %v3444, 0.0
          %v3461 = vmax.f32 %v3445, 0.0
          %v3462 = vmax.f32 %v3446, 0.0
          %v3463 = vmax.f32 %v3447, 0.0
          %v3464 = vmax.f32 %v3448, 0.0
          %v3465 = vmax.f32 %v3449, 0.0
          %v3466 = vmax.f32 %v3450, 0.0
          %v3467 = vmax.f32 %v3451, 0.0
          %v3468 = vmax.f32 %v3452, 0.0
          %v3469 = vmax.f32 %v3453, 0.0
          %v3470 = vmax.f32 %v3454, 0.0
          %v3471 = vmax.f32 %v3455, 0.0
          %v3472 = vmax.f32 %v3456, 0.0
          %v3473 = vmax.f32 %v3457, 0.0
          %v3474 = vmax.f32 %v3458, 0.0
          %v3475 = vmax.f32 %v3459, 0.0
          %v3476 = vadd.f32 %v3212, %v3460
          %v3477 = vadd.f32 %v3213, %v3461
          %v3478 = vadd.f32 %v3214, %v3462
          %v3479 = vadd.f32 %v3215, %v3463
          %v3480 = vadd.f32 %v3216, %v3464
          %v3481 = vadd.f32 %v3217, %v3465
          %v3482 = vadd.f32 %v3218, %v3466
          %v3483 = vadd.f32 %v3219, %v3467
          %v3484 = vadd.f32 %v3220, %v3468
          %v3485 = vadd.f32 %v3221, %v3469
          %v3486 = vadd.f32 %v3222, %v3470
          %v3487 = vadd.f32 %v3223, %v3471
          %v3488 = vadd.f32 %v3224, %v3472
          %v3489 = vadd.f32 %v3225, %v3473
          %v3490 = vadd.f32 %v3226, %v3474
          %v3491 = vadd.f32 %v3227, %v3475
          %3492 = vmatpush.msra.mxu0 0.0
          %3493 = vmatpush.msra.mxu0 0.0
          %3494 = vmatpush.msra.mxu0 0.0
          %3495 = vmatpush.msra.mxu0 0.0
          %3496 = vmatpush.msra.mxu0 0.0
          %3497 = vmatpush.msra.mxu0 0.0
          %3498 = vmatpush.msra.mxu0 0.0
          %3499 = vmatpush.msra.mxu0 0.0
          %3500 = vmatpush.msra.mxu0 0.0
          %3501 = vmatpush.msra.mxu0 0.0
          %3502 = vmatpush.msra.mxu0 0.0
          %3503 = vmatpush.msra.mxu0 0.0
          %3504 = vmatpush.msra.mxu0 0.0
          %3505 = vmatpush.msra.mxu0 0.0
          %3506 = vmatpush.msra.mxu0 0.0
          %3507 = vmatpush.msra.mxu0 %v3097
          %3508 = vmatmul.f32.gmra.mxu0 %v679
          %v3509 = vpop.f32.mrf.mxu0
          %v3510 = vadd.f32 0.0, %v3509
          %3511 = vmatmul.f32.gmra.mxu0 %v682
          %v3512 = vpop.f32.mrf.mxu0
          %v3513 = vadd.f32 0.0, %v3512
          %3514 = vmatmul.f32.gmra.mxu0 %v685
          %v3515 = vpop.f32.mrf.mxu0
          %v3516 = vadd.f32 0.0, %v3515
          %3517 = vmatmul.f32.gmra.mxu0 %v688
          %v3518 = vpop.f32.mrf.mxu0
          %v3519 = vadd.f32 0.0, %v3518
          %3520 = vmatmul.f32.gmra.mxu0 %v691
          %v3521 = vpop.f32.mrf.mxu0
          %v3522 = vadd.f32 0.0, %v3521
          %3523 = vmatmul.f32.gmra.mxu0 %v694
          %v3524 = vpop.f32.mrf.mxu0
          %v3525 = vadd.f32 0.0, %v3524
          %3526 = vmatmul.f32.gmra.mxu0 %v697
          %v3527 = vpop.f32.mrf.mxu0
          %v3528 = vadd.f32 0.0, %v3527
          %3529 = vmatmul.f32.gmra.mxu0 %v700
          %v3530 = vpop.f32.mrf.mxu0
          %v3531 = vadd.f32 0.0, %v3530
          %3532 = vmatmul.f32.gmra.mxu0 %v703
          %v3533 = vpop.f32.mrf.mxu0
          %v3534 = vadd.f32 0.0, %v3533
          %3535 = vmatmul.f32.gmra.mxu0 %v706
          %v3536 = vpop.f32.mrf.mxu0
          %v3537 = vadd.f32 0.0, %v3536
          %3538 = vmatmul.f32.gmra.mxu0 %v709
          %v3539 = vpop.f32.mrf.mxu0
          %v3540 = vadd.f32 0.0, %v3539
          %3541 = vmatmul.f32.gmra.mxu0 %v712
          %v3542 = vpop.f32.mrf.mxu0
          %v3543 = vadd.f32 0.0, %v3542
          %3544 = vmatmul.f32.gmra.mxu0 %v715
          %v3545 = vpop.f32.mrf.mxu0
          %v3546 = vadd.f32 0.0, %v3545
          %3547 = vmatmul.f32.gmra.mxu0 %v718
          %v3548 = vpop.f32.mrf.mxu0
          %v3549 = vadd.f32 0.0, %v3548
          %3550 = vmatmul.f32.gmra.mxu0 %v721
          %v3551 = vpop.f32.mrf.mxu0
          %v3552 = vadd.f32 0.0, %v3551
          %3553 = vmatmul.f32.gmra.mxu0 %v724
          %v3554 = vpop.f32.mrf.mxu0
          %v3555 = vadd.f32 0.0, %v3554
          %3556 = vdwg.mxu0
          %3557 = vmatpush.msra.mxu0 0.0
          %3558 = vmatpush.msra.mxu0 0.0
          %3559 = vmatpush.msra.mxu0 0.0
          %3560 = vmatpush.msra.mxu0 0.0
          %3561 = vmatpush.msra.mxu0 0.0
          %3562 = vmatpush.msra.mxu0 0.0
          %3563 = vmatpush.msra.mxu0 0.0
          %3564 = vmatpush.msra.mxu0 0.0
          %3565 = vmatpush.msra.mxu0 0.0
          %3566 = vmatpush.msra.mxu0 0.0
          %3567 = vmatpush.msra.mxu0 0.0
          %3568 = vmatpush.msra.mxu0 0.0
          %3569 = vmatpush.msra.mxu0 0.0
          %3570 = vmatpush.msra.mxu0 0.0
          %3571 = vmatpush.msra.mxu0 0.0
          %3572 = vmatpush.msra.mxu0 %v3361
          %3573 = vmatmul.f32.gmra.mxu0 %v483
          %v3574 = vpop.f32.mrf.mxu0
          %v3575 = vadd.f32 %v3510, %v3574
          %3576 = vmatmul.f32.gmra.mxu0 %v486
          %v3577 = vpop.f32.mrf.mxu0
          %v3578 = vadd.f32 %v3513, %v3577
          %3579 = vmatmul.f32.gmra.mxu0 %v489
          %v3580 = vpop.f32.mrf.mxu0
          %v3581 = vadd.f32 %v3516, %v3580
          %3582 = vmatmul.f32.gmra.mxu0 %v492
          %v3583 = vpop.f32.mrf.mxu0
          %v3584 = vadd.f32 %v3519, %v3583
          %3585 = vmatmul.f32.gmra.mxu0 %v495
          %v3586 = vpop.f32.mrf.mxu0
          %v3587 = vadd.f32 %v3522, %v3586
          %3588 = vmatmul.f32.gmra.mxu0 %v498
          %v3589 = vpop.f32.mrf.mxu0
          %v3590 = vadd.f32 %v3525, %v3589
          %3591 = vmatmul.f32.gmra.mxu0 %v501
          %v3592 = vpop.f32.mrf.mxu0
          %v3593 = vadd.f32 %v3528, %v3592
          %3594 = vmatmul.f32.gmra.mxu0 %v504
          %v3595 = vpop.f32.mrf.mxu0
          %v3596 = vadd.f32 %v3531, %v3595
          %3597 = vmatmul.f32.gmra.mxu0 %v507
          %v3598 = vpop.f32.mrf.mxu0
          %v3599 = vadd.f32 %v3534, %v3598
          %3600 = vmatmul.f32.gmra.mxu0 %v510
          %v3601 = vpop.f32.mrf.mxu0
          %v3602 = vadd.f32 %v3537, %v3601
          %3603 = vmatmul.f32.gmra.mxu0 %v513
          %v3604 = vpop.f32.mrf.mxu0
          %v3605 = vadd.f32 %v3540, %v3604
          %3606 = vmatmul.f32.gmra.mxu0 %v516
          %v3607 = vpop.f32.mrf.mxu0
          %v3608 = vadd.f32 %v3543, %v3607
          %3609 = vmatmul.f32.gmra.mxu0 %v519
          %v3610 = vpop.f32.mrf.mxu0
          %v3611 = vadd.f32 %v3546, %v3610
          %3612 = vmatmul.f32.gmra.mxu0 %v522
          %v3613 = vpop.f32.mrf.mxu0
          %v3614 = vadd.f32 %v3549, %v3613
          %3615 = vmatmul.f32.gmra.mxu0 %v525
          %v3616 = vpop.f32.mrf.mxu0
          %v3617 = vadd.f32 %v3552, %v3616
          %3618 = vmatmul.f32.gmra.mxu0 %v528
          %v3619 = vpop.f32.mrf.mxu0
          %v3620 = vadd.f32 %v3555, %v3619
          %3621 = vdwg.mxu0
          %v3622 = vld [vmem:[%s1664] sm:$0xf0]
          %v3624 = vrot.slane %v3622, 4
          %v3625 = vsel %vm413, %v3624, 0
          %3627 = vmatpush.msra.mxu0 0.0
          %3628 = vmatpush.msra.mxu0 0.0
          %3629 = vmatpush.msra.mxu0 0.0
          %3630 = vmatpush.msra.mxu0 0.0
          %3631 = vmatpush.msra.mxu0 0.0
          %3632 = vmatpush.msra.mxu0 0.0
          %3633 = vmatpush.msra.mxu0 0.0
          %3634 = vmatpush.msra.mxu0 0.0
          %3635 = vmatpush.msra.mxu0 0.0
          %3636 = vmatpush.msra.mxu0 0.0
          %3637 = vmatpush.msra.mxu0 0.0
          %3638 = vmatpush.msra.mxu0 0.0
          %3639 = vmatpush.msra.mxu0 0.0
          %3640 = vmatpush.msra.mxu0 0.0
          %3641 = vmatpush.msra.mxu0 0.0
          %3642 = vmatpush.msra.mxu0 %v3625
          %3643 = vmatmul.f32.gmra.mxu0 %v366
          %v3644 = vpop.f32.mrf.mxu0
          %v3645 = vadd.f32 0.0, %v3644
          %3646 = vmatmul.f32.gmra.mxu0 %v369
          %v3647 = vpop.f32.mrf.mxu0
          %v3648 = vadd.f32 0.0, %v3647
          %3649 = vmatmul.f32.gmra.mxu0 %v372
          %v3650 = vpop.f32.mrf.mxu0
          %v3651 = vadd.f32 0.0, %v3650
          %3652 = vmatmul.f32.gmra.mxu0 %v375
          %v3653 = vpop.f32.mrf.mxu0
          %v3654 = vadd.f32 0.0, %v3653
          %3655 = vmatmul.f32.gmra.mxu0 %v378
          %v3656 = vpop.f32.mrf.mxu0
          %v3657 = vadd.f32 0.0, %v3656
          %3658 = vmatmul.f32.gmra.mxu0 %v381
          %v3659 = vpop.f32.mrf.mxu0
          %v3660 = vadd.f32 0.0, %v3659
          %3661 = vmatmul.f32.gmra.mxu0 %v384
          %v3662 = vpop.f32.mrf.mxu0
          %v3663 = vadd.f32 0.0, %v3662
          %3664 = vmatmul.f32.gmra.mxu0 %v387
          %v3665 = vpop.f32.mrf.mxu0
          %v3666 = vadd.f32 0.0, %v3665
          %3667 = vmatmul.f32.gmra.mxu0 %v390
          %v3668 = vpop.f32.mrf.mxu0
          %v3669 = vadd.f32 0.0, %v3668
          %3670 = vmatmul.f32.gmra.mxu0 %v393
          %v3671 = vpop.f32.mrf.mxu0
          %v3672 = vadd.f32 0.0, %v3671
          %3673 = vmatmul.f32.gmra.mxu0 %v396
          %v3674 = vpop.f32.mrf.mxu0
          %v3675 = vadd.f32 0.0, %v3674
          %3676 = vmatmul.f32.gmra.mxu0 %v399
          %v3677 = vpop.f32.mrf.mxu0
          %v3678 = vadd.f32 0.0, %v3677
          %3679 = vmatmul.f32.gmra.mxu0 %v402
          %v3680 = vpop.f32.mrf.mxu0
          %v3681 = vadd.f32 0.0, %v3680
          %3682 = vmatmul.f32.gmra.mxu0 %v405
          %v3683 = vpop.f32.mrf.mxu0
          %v3684 = vadd.f32 0.0, %v3683
          %3685 = vmatmul.f32.gmra.mxu0 %v408
          %v3686 = vpop.f32.mrf.mxu0
          %v3687 = vadd.f32 0.0, %v3686
          %3688 = vmatmul.f32.gmra.mxu0 %v411
          %v3689 = vpop.f32.mrf.mxu0
          %v3690 = vadd.f32 0.0, %v3689
          %3691 = vdwg.mxu0
          %v3692 = vadd.f32 %v3575, %v3645
          %v3693 = vadd.f32 %v3578, %v3648
          %v3694 = vadd.f32 %v3581, %v3651
          %v3695 = vadd.f32 %v3584, %v3654
          %v3696 = vadd.f32 %v3587, %v3657
          %v3697 = vadd.f32 %v3590, %v3660
          %v3698 = vadd.f32 %v3593, %v3663
          %v3699 = vadd.f32 %v3596, %v3666
          %v3700 = vadd.f32 %v3599, %v3669
          %v3701 = vadd.f32 %v3602, %v3672
          %v3702 = vadd.f32 %v3605, %v3675
          %v3703 = vadd.f32 %v3608, %v3678
          %v3704 = vadd.f32 %v3611, %v3681
          %v3705 = vadd.f32 %v3614, %v3684
          %v3706 = vadd.f32 %v3617, %v3687
          %v3707 = vadd.f32 %v3620, %v3690
          %v3708 = vadd.f32 %v3692, %v598
          %v3709 = vadd.f32 %v3693, %v599
          %v3710 = vadd.f32 %v3694, %v600
          %v3711 = vadd.f32 %v3695, %v601
          %v3712 = vadd.f32 %v3696, %v602
          %v3713 = vadd.f32 %v3697, %v603
          %v3714 = vadd.f32 %v3698, %v604
          %v3715 = vadd.f32 %v3699, %v605
          %v3716 = vadd.f32 %v3700, %v606
          %v3717 = vadd.f32 %v3701, %v607
          %v3718 = vadd.f32 %v3702, %v608
          %v3719 = vadd.f32 %v3703, %v609
          %v3720 = vadd.f32 %v3704, %v610
          %v3721 = vadd.f32 %v3705, %v611
          %v3722 = vadd.f32 %v3706, %v612
          %v3723 = vadd.f32 %v3707, %v613
          %v3724 = vmax.f32 %v3708, 0.0
          %v3725 = vmax.f32 %v3709, 0.0
          %v3726 = vmax.f32 %v3710, 0.0
          %v3727 = vmax.f32 %v3711, 0.0
          %v3728 = vmax.f32 %v3712, 0.0
          %v3729 = vmax.f32 %v3713, 0.0
          %v3730 = vmax.f32 %v3714, 0.0
          %v3731 = vmax.f32 %v3715, 0.0
          %v3732 = vmax.f32 %v3716, 0.0
          %v3733 = vmax.f32 %v3717, 0.0
          %v3734 = vmax.f32 %v3718, 0.0
          %v3735 = vmax.f32 %v3719, 0.0
          %v3736 = vmax.f32 %v3720, 0.0
          %v3737 = vmax.f32 %v3721, 0.0
          %v3738 = vmax.f32 %v3722, 0.0
          %v3739 = vmax.f32 %v3723, 0.0
          %v3740 = vadd.f32 %v3476, %v3724
          %v3741 = vadd.f32 %v3477, %v3725
          %v3742 = vadd.f32 %v3478, %v3726
          %v3743 = vadd.f32 %v3479, %v3727
          %v3744 = vadd.f32 %v3480, %v3728
          %v3745 = vadd.f32 %v3481, %v3729
          %v3746 = vadd.f32 %v3482, %v3730
          %v3747 = vadd.f32 %v3483, %v3731
          %v3748 = vadd.f32 %v3484, %v3732
          %v3749 = vadd.f32 %v3485, %v3733
          %v3750 = vadd.f32 %v3486, %v3734
          %v3751 = vadd.f32 %v3487, %v3735
          %v3752 = vadd.f32 %v3488, %v3736
          %v3753 = vadd.f32 %v3489, %v3737
          %v3754 = vadd.f32 %v3490, %v3738
          %v3755 = vadd.f32 %v3491, %v3739
          %3756 = vmatpush.msra.mxu0 0.0
          %3757 = vmatpush.msra.mxu0 0.0
          %3758 = vmatpush.msra.mxu0 0.0
          %3759 = vmatpush.msra.mxu0 0.0
          %3760 = vmatpush.msra.mxu0 0.0
          %3761 = vmatpush.msra.mxu0 0.0
          %3762 = vmatpush.msra.mxu0 0.0
          %3763 = vmatpush.msra.mxu0 0.0
          %3764 = vmatpush.msra.mxu0 0.0
          %3765 = vmatpush.msra.mxu0 0.0
          %3766 = vmatpush.msra.mxu0 0.0
          %3767 = vmatpush.msra.mxu0 0.0
          %3768 = vmatpush.msra.mxu0 0.0
          %3769 = vmatpush.msra.mxu0 0.0
          %3770 = vmatpush.msra.mxu0 0.0
          %3771 = vmatpush.msra.mxu0 %v3361
          %3772 = vmatmul.f32.gmra.mxu0 %v679
          %v3773 = vpop.f32.mrf.mxu0
          %v3774 = vadd.f32 0.0, %v3773
          %3775 = vmatmul.f32.gmra.mxu0 %v682
          %v3776 = vpop.f32.mrf.mxu0
          %v3777 = vadd.f32 0.0, %v3776
          %3778 = vmatmul.f32.gmra.mxu0 %v685
          %v3779 = vpop.f32.mrf.mxu0
          %v3780 = vadd.f32 0.0, %v3779
          %3781 = vmatmul.f32.gmra.mxu0 %v688
          %v3782 = vpop.f32.mrf.mxu0
          %v3783 = vadd.f32 0.0, %v3782
          %3784 = vmatmul.f32.gmra.mxu0 %v691
          %v3785 = vpop.f32.mrf.mxu0
          %v3786 = vadd.f32 0.0, %v3785
          %3787 = vmatmul.f32.gmra.mxu0 %v694
          %v3788 = vpop.f32.mrf.mxu0
          %v3789 = vadd.f32 0.0, %v3788
          %3790 = vmatmul.f32.gmra.mxu0 %v697
          %v3791 = vpop.f32.mrf.mxu0
          %v3792 = vadd.f32 0.0, %v3791
          %3793 = vmatmul.f32.gmra.mxu0 %v700
          %v3794 = vpop.f32.mrf.mxu0
          %v3795 = vadd.f32 0.0, %v3794
          %3796 = vmatmul.f32.gmra.mxu0 %v703
          %v3797 = vpop.f32.mrf.mxu0
          %v3798 = vadd.f32 0.0, %v3797
          %3799 = vmatmul.f32.gmra.mxu0 %v706
          %v3800 = vpop.f32.mrf.mxu0
          %v3801 = vadd.f32 0.0, %v3800
          %3802 = vmatmul.f32.gmra.mxu0 %v709
          %v3803 = vpop.f32.mrf.mxu0
          %v3804 = vadd.f32 0.0, %v3803
          %3805 = vmatmul.f32.gmra.mxu0 %v712
          %v3806 = vpop.f32.mrf.mxu0
          %v3807 = vadd.f32 0.0, %v3806
          %3808 = vmatmul.f32.gmra.mxu0 %v715
          %v3809 = vpop.f32.mrf.mxu0
          %v3810 = vadd.f32 0.0, %v3809
          %3811 = vmatmul.f32.gmra.mxu0 %v718
          %v3812 = vpop.f32.mrf.mxu0
          %v3813 = vadd.f32 0.0, %v3812
          %3814 = vmatmul.f32.gmra.mxu0 %v721
          %v3815 = vpop.f32.mrf.mxu0
          %v3816 = vadd.f32 0.0, %v3815
          %3817 = vmatmul.f32.gmra.mxu0 %v724
          %v3818 = vpop.f32.mrf.mxu0
          %v3819 = vadd.f32 0.0, %v3818
          %3820 = vdwg.mxu0
          %3821 = vmatpush.msra.mxu0 0.0
          %3822 = vmatpush.msra.mxu0 0.0
          %3823 = vmatpush.msra.mxu0 0.0
          %3824 = vmatpush.msra.mxu0 0.0
          %3825 = vmatpush.msra.mxu0 0.0
          %3826 = vmatpush.msra.mxu0 0.0
          %3827 = vmatpush.msra.mxu0 0.0
          %3828 = vmatpush.msra.mxu0 0.0
          %3829 = vmatpush.msra.mxu0 0.0
          %3830 = vmatpush.msra.mxu0 0.0
          %3831 = vmatpush.msra.mxu0 0.0
          %3832 = vmatpush.msra.mxu0 0.0
          %3833 = vmatpush.msra.mxu0 0.0
          %3834 = vmatpush.msra.mxu0 0.0
          %3835 = vmatpush.msra.mxu0 0.0
          %3836 = vmatpush.msra.mxu0 %v3625
          %3837 = vmatmul.f32.gmra.mxu0 %v483
          %v3838 = vpop.f32.mrf.mxu0
          %v3839 = vadd.f32 %v3774, %v3838
          %3840 = vmatmul.f32.gmra.mxu0 %v486
          %v3841 = vpop.f32.mrf.mxu0
          %v3842 = vadd.f32 %v3777, %v3841
          %3843 = vmatmul.f32.gmra.mxu0 %v489
          %v3844 = vpop.f32.mrf.mxu0
          %v3845 = vadd.f32 %v3780, %v3844
          %3846 = vmatmul.f32.gmra.mxu0 %v492
          %v3847 = vpop.f32.mrf.mxu0
          %v3848 = vadd.f32 %v3783, %v3847
          %3849 = vmatmul.f32.gmra.mxu0 %v495
          %v3850 = vpop.f32.mrf.mxu0
          %v3851 = vadd.f32 %v3786, %v3850
          %3852 = vmatmul.f32.gmra.mxu0 %v498
          %v3853 = vpop.f32.mrf.mxu0
          %v3854 = vadd.f32 %v3789, %v3853
          %3855 = vmatmul.f32.gmra.mxu0 %v501
          %v3856 = vpop.f32.mrf.mxu0
          %v3857 = vadd.f32 %v3792, %v3856
          %3858 = vmatmul.f32.gmra.mxu0 %v504
          %v3859 = vpop.f32.mrf.mxu0
          %v3860 = vadd.f32 %v3795, %v3859
          %3861 = vmatmul.f32.gmra.mxu0 %v507
          %v3862 = vpop.f32.mrf.mxu0
          %v3863 = vadd.f32 %v3798, %v3862
          %3864 = vmatmul.f32.gmra.mxu0 %v510
          %v3865 = vpop.f32.mrf.mxu0
          %v3866 = vadd.f32 %v3801, %v3865
          %3867 = vmatmul.f32.gmra.mxu0 %v513
          %v3868 = vpop.f32.mrf.mxu0
          %v3869 = vadd.f32 %v3804, %v3868
          %3870 = vmatmul.f32.gmra.mxu0 %v516
          %v3871 = vpop.f32.mrf.mxu0
          %v3872 = vadd.f32 %v3807, %v3871
          %3873 = vmatmul.f32.gmra.mxu0 %v519
          %v3874 = vpop.f32.mrf.mxu0
          %v3875 = vadd.f32 %v3810, %v3874
          %3876 = vmatmul.f32.gmra.mxu0 %v522
          %v3877 = vpop.f32.mrf.mxu0
          %v3878 = vadd.f32 %v3813, %v3877
          %3879 = vmatmul.f32.gmra.mxu0 %v525
          %v3880 = vpop.f32.mrf.mxu0
          %v3881 = vadd.f32 %v3816, %v3880
          %3882 = vmatmul.f32.gmra.mxu0 %v528
          %v3883 = vpop.f32.mrf.mxu0
          %v3884 = vadd.f32 %v3819, %v3883
          %3885 = vdwg.mxu0
          %v3886 = vld [vmem:[%s1932] sm:$0xf0]
          %v3888 = vrot.slane %v3886, 4
          %v3889 = vsel %vm413, %v3888, 0
          %3891 = vmatpush.msra.mxu0 0.0
          %3892 = vmatpush.msra.mxu0 0.0
          %3893 = vmatpush.msra.mxu0 0.0
          %3894 = vmatpush.msra.mxu0 0.0
          %3895 = vmatpush.msra.mxu0 0.0
          %3896 = vmatpush.msra.mxu0 0.0
          %3897 = vmatpush.msra.mxu0 0.0
          %3898 = vmatpush.msra.mxu0 0.0
          %3899 = vmatpush.msra.mxu0 0.0
          %3900 = vmatpush.msra.mxu0 0.0
          %3901 = vmatpush.msra.mxu0 0.0
          %3902 = vmatpush.msra.mxu0 0.0
          %3903 = vmatpush.msra.mxu0 0.0
          %3904 = vmatpush.msra.mxu0 0.0
          %3905 = vmatpush.msra.mxu0 0.0
          %3906 = vmatpush.msra.mxu0 %v3889
          %3907 = vmatmul.f32.gmra.mxu0 %v366
          %v3908 = vpop.f32.mrf.mxu0
          %v3909 = vadd.f32 0.0, %v3908
          %3910 = vmatmul.f32.gmra.mxu0 %v369
          %v3911 = vpop.f32.mrf.mxu0
          %v3912 = vadd.f32 0.0, %v3911
          %3913 = vmatmul.f32.gmra.mxu0 %v372
          %v3914 = vpop.f32.mrf.mxu0
          %v3915 = vadd.f32 0.0, %v3914
          %3916 = vmatmul.f32.gmra.mxu0 %v375
          %v3917 = vpop.f32.mrf.mxu0
          %v3918 = vadd.f32 0.0, %v3917
          %3919 = vmatmul.f32.gmra.mxu0 %v378
          %v3920 = vpop.f32.mrf.mxu0
          %v3921 = vadd.f32 0.0, %v3920
          %3922 = vmatmul.f32.gmra.mxu0 %v381
          %v3923 = vpop.f32.mrf.mxu0
          %v3924 = vadd.f32 0.0, %v3923
          %3925 = vmatmul.f32.gmra.mxu0 %v384
          %v3926 = vpop.f32.mrf.mxu0
          %v3927 = vadd.f32 0.0, %v3926
          %3928 = vmatmul.f32.gmra.mxu0 %v387
          %v3929 = vpop.f32.mrf.mxu0
          %v3930 = vadd.f32 0.0, %v3929
          %3931 = vmatmul.f32.gmra.mxu0 %v390
          %v3932 = vpop.f32.mrf.mxu0
          %v3933 = vadd.f32 0.0, %v3932
          %3934 = vmatmul.f32.gmra.mxu0 %v393
          %v3935 = vpop.f32.mrf.mxu0
          %v3936 = vadd.f32 0.0, %v3935
          %3937 = vmatmul.f32.gmra.mxu0 %v396
          %v3938 = vpop.f32.mrf.mxu0
          %v3939 = vadd.f32 0.0, %v3938
          %3940 = vmatmul.f32.gmra.mxu0 %v399
          %v3941 = vpop.f32.mrf.mxu0
          %v3942 = vadd.f32 0.0, %v3941
          %3943 = vmatmul.f32.gmra.mxu0 %v402
          %v3944 = vpop.f32.mrf.mxu0
          %v3945 = vadd.f32 0.0, %v3944
          %3946 = vmatmul.f32.gmra.mxu0 %v405
          %v3947 = vpop.f32.mrf.mxu0
          %v3948 = vadd.f32 0.0, %v3947
          %3949 = vmatmul.f32.gmra.mxu0 %v408
          %v3950 = vpop.f32.mrf.mxu0
          %v3951 = vadd.f32 0.0, %v3950
          %3952 = vmatmul.f32.gmra.mxu0 %v411
          %v3953 = vpop.f32.mrf.mxu0
          %v3954 = vadd.f32 0.0, %v3953
          %3955 = vdwg.mxu0
          %v3956 = vadd.f32 %v3839, %v3909
          %v3957 = vadd.f32 %v3842, %v3912
          %v3958 = vadd.f32 %v3845, %v3915
          %v3959 = vadd.f32 %v3848, %v3918
          %v3960 = vadd.f32 %v3851, %v3921
          %v3961 = vadd.f32 %v3854, %v3924
          %v3962 = vadd.f32 %v3857, %v3927
          %v3963 = vadd.f32 %v3860, %v3930
          %v3964 = vadd.f32 %v3863, %v3933
          %v3965 = vadd.f32 %v3866, %v3936
          %v3966 = vadd.f32 %v3869, %v3939
          %v3967 = vadd.f32 %v3872, %v3942
          %v3968 = vadd.f32 %v3875, %v3945
          %v3969 = vadd.f32 %v3878, %v3948
          %v3970 = vadd.f32 %v3881, %v3951
          %v3971 = vadd.f32 %v3884, %v3954
          %v3972 = vadd.f32 %v3956, %v598
          %v3973 = vadd.f32 %v3957, %v599
          %v3974 = vadd.f32 %v3958, %v600
          %v3975 = vadd.f32 %v3959, %v601
          %v3976 = vadd.f32 %v3960, %v602
          %v3977 = vadd.f32 %v3961, %v603
          %v3978 = vadd.f32 %v3962, %v604
          %v3979 = vadd.f32 %v3963, %v605
          %v3980 = vadd.f32 %v3964, %v606
          %v3981 = vadd.f32 %v3965, %v607
          %v3982 = vadd.f32 %v3966, %v608
          %v3983 = vadd.f32 %v3967, %v609
          %v3984 = vadd.f32 %v3968, %v610
          %v3985 = vadd.f32 %v3969, %v611
          %v3986 = vadd.f32 %v3970, %v612
          %v3987 = vadd.f32 %v3971, %v613
          %v3988 = vmax.f32 %v3972, 0.0
          %v3989 = vmax.f32 %v3973, 0.0
          %v3990 = vmax.f32 %v3974, 0.0
          %v3991 = vmax.f32 %v3975, 0.0
          %v3992 = vmax.f32 %v3976, 0.0
          %v3993 = vmax.f32 %v3977, 0.0
          %v3994 = vmax.f32 %v3978, 0.0
          %v3995 = vmax.f32 %v3979, 0.0
          %v3996 = vmax.f32 %v3980, 0.0
          %v3997 = vmax.f32 %v3981, 0.0
          %v3998 = vmax.f32 %v3982, 0.0
          %v3999 = vmax.f32 %v3983, 0.0
          %v4000 = vmax.f32 %v3984, 0.0
          %v4001 = vmax.f32 %v3985, 0.0
          %v4002 = vmax.f32 %v3986, 0.0
          %v4003 = vmax.f32 %v3987, 0.0
          %v4004 = vadd.f32 %v3740, %v3988
          %v4005 = vadd.f32 %v3741, %v3989
          %v4006 = vadd.f32 %v3742, %v3990
          %v4007 = vadd.f32 %v3743, %v3991
          %v4008 = vadd.f32 %v3744, %v3992
          %v4009 = vadd.f32 %v3745, %v3993
          %v4010 = vadd.f32 %v3746, %v3994
          %v4011 = vadd.f32 %v3747, %v3995
          %v4012 = vadd.f32 %v3748, %v3996
          %v4013 = vadd.f32 %v3749, %v3997
          %v4014 = vadd.f32 %v3750, %v3998
          %v4015 = vadd.f32 %v3751, %v3999
          %v4016 = vadd.f32 %v3752, %v4000
          %v4017 = vadd.f32 %v3753, %v4001
          %v4018 = vadd.f32 %v3754, %v4002
          %v4019 = vadd.f32 %v3755, %v4003
          %4020 = vmatpush.msra.mxu0 0.0
          %4021 = vmatpush.msra.mxu0 0.0
          %4022 = vmatpush.msra.mxu0 0.0
          %4023 = vmatpush.msra.mxu0 0.0
          %4024 = vmatpush.msra.mxu0 0.0
          %4025 = vmatpush.msra.mxu0 0.0
          %4026 = vmatpush.msra.mxu0 0.0
          %4027 = vmatpush.msra.mxu0 0.0
          %4028 = vmatpush.msra.mxu0 0.0
          %4029 = vmatpush.msra.mxu0 0.0
          %4030 = vmatpush.msra.mxu0 0.0
          %4031 = vmatpush.msra.mxu0 0.0
          %4032 = vmatpush.msra.mxu0 0.0
          %4033 = vmatpush.msra.mxu0 0.0
          %4034 = vmatpush.msra.mxu0 0.0
          %4035 = vmatpush.msra.mxu0 %v3625
          %4036 = vmatmul.f32.gmra.mxu0 %v679
          %v4037 = vpop.f32.mrf.mxu0
          %v4038 = vadd.f32 0.0, %v4037
          %4039 = vmatmul.f32.gmra.mxu0 %v682
          %v4040 = vpop.f32.mrf.mxu0
          %v4041 = vadd.f32 0.0, %v4040
          %4042 = vmatmul.f32.gmra.mxu0 %v685
          %v4043 = vpop.f32.mrf.mxu0
          %v4044 = vadd.f32 0.0, %v4043
          %4045 = vmatmul.f32.gmra.mxu0 %v688
          %v4046 = vpop.f32.mrf.mxu0
          %v4047 = vadd.f32 0.0, %v4046
          %4048 = vmatmul.f32.gmra.mxu0 %v691
          %v4049 = vpop.f32.mrf.mxu0
          %v4050 = vadd.f32 0.0, %v4049
          %4051 = vmatmul.f32.gmra.mxu0 %v694
          %v4052 = vpop.f32.mrf.mxu0
          %v4053 = vadd.f32 0.0, %v4052
          %4054 = vmatmul.f32.gmra.mxu0 %v697
          %v4055 = vpop.f32.mrf.mxu0
          %v4056 = vadd.f32 0.0, %v4055
          %4057 = vmatmul.f32.gmra.mxu0 %v700
          %v4058 = vpop.f32.mrf.mxu0
          %v4059 = vadd.f32 0.0, %v4058
          %4060 = vmatmul.f32.gmra.mxu0 %v703
          %v4061 = vpop.f32.mrf.mxu0
          %v4062 = vadd.f32 0.0, %v4061
          %4063 = vmatmul.f32.gmra.mxu0 %v706
          %v4064 = vpop.f32.mrf.mxu0
          %v4065 = vadd.f32 0.0, %v4064
          %4066 = vmatmul.f32.gmra.mxu0 %v709
          %v4067 = vpop.f32.mrf.mxu0
          %v4068 = vadd.f32 0.0, %v4067
          %4069 = vmatmul.f32.gmra.mxu0 %v712
          %v4070 = vpop.f32.mrf.mxu0
          %v4071 = vadd.f32 0.0, %v4070
          %4072 = vmatmul.f32.gmra.mxu0 %v715
          %v4073 = vpop.f32.mrf.mxu0
          %v4074 = vadd.f32 0.0, %v4073
          %4075 = vmatmul.f32.gmra.mxu0 %v718
          %v4076 = vpop.f32.mrf.mxu0
          %v4077 = vadd.f32 0.0, %v4076
          %4078 = vmatmul.f32.gmra.mxu0 %v721
          %v4079 = vpop.f32.mrf.mxu0
          %v4080 = vadd.f32 0.0, %v4079
          %4081 = vmatmul.f32.gmra.mxu0 %v724
          %v4082 = vpop.f32.mrf.mxu0
          %v4083 = vadd.f32 0.0, %v4082
          %4084 = vdwg.mxu0
          %4085 = vmatpush.msra.mxu0 0.0
          %4086 = vmatpush.msra.mxu0 0.0
          %4087 = vmatpush.msra.mxu0 0.0
          %4088 = vmatpush.msra.mxu0 0.0
          %4089 = vmatpush.msra.mxu0 0.0
          %4090 = vmatpush.msra.mxu0 0.0
          %4091 = vmatpush.msra.mxu0 0.0
          %4092 = vmatpush.msra.mxu0 0.0
          %4093 = vmatpush.msra.mxu0 0.0
          %4094 = vmatpush.msra.mxu0 0.0
          %4095 = vmatpush.msra.mxu0 0.0
          %4096 = vmatpush.msra.mxu0 0.0
          %4097 = vmatpush.msra.mxu0 0.0
          %4098 = vmatpush.msra.mxu0 0.0
          %4099 = vmatpush.msra.mxu0 0.0
          %4100 = vmatpush.msra.mxu0 %v3889
          %4101 = vmatmul.f32.gmra.mxu0 %v483
          %v4102 = vpop.f32.mrf.mxu0
          %v4103 = vadd.f32 %v4038, %v4102
          %4104 = vmatmul.f32.gmra.mxu0 %v486
          %v4105 = vpop.f32.mrf.mxu0
          %v4106 = vadd.f32 %v4041, %v4105
          %4107 = vmatmul.f32.gmra.mxu0 %v489
          %v4108 = vpop.f32.mrf.mxu0
          %v4109 = vadd.f32 %v4044, %v4108
          %4110 = vmatmul.f32.gmra.mxu0 %v492
          %v4111 = vpop.f32.mrf.mxu0
          %v4112 = vadd.f32 %v4047, %v4111
          %4113 = vmatmul.f32.gmra.mxu0 %v495
          %v4114 = vpop.f32.mrf.mxu0
          %v4115 = vadd.f32 %v4050, %v4114
          %4116 = vmatmul.f32.gmra.mxu0 %v498
          %v4117 = vpop.f32.mrf.mxu0
          %v4118 = vadd.f32 %v4053, %v4117
          %4119 = vmatmul.f32.gmra.mxu0 %v501
          %v4120 = vpop.f32.mrf.mxu0
          %v4121 = vadd.f32 %v4056, %v4120
          %4122 = vmatmul.f32.gmra.mxu0 %v504
          %v4123 = vpop.f32.mrf.mxu0
          %v4124 = vadd.f32 %v4059, %v4123
          %4125 = vmatmul.f32.gmra.mxu0 %v507
          %v4126 = vpop.f32.mrf.mxu0
          %v4127 = vadd.f32 %v4062, %v4126
          %4128 = vmatmul.f32.gmra.mxu0 %v510
          %v4129 = vpop.f32.mrf.mxu0
          %v4130 = vadd.f32 %v4065, %v4129
          %4131 = vmatmul.f32.gmra.mxu0 %v513
          %v4132 = vpop.f32.mrf.mxu0
          %v4133 = vadd.f32 %v4068, %v4132
          %4134 = vmatmul.f32.gmra.mxu0 %v516
          %v4135 = vpop.f32.mrf.mxu0
          %v4136 = vadd.f32 %v4071, %v4135
          %4137 = vmatmul.f32.gmra.mxu0 %v519
          %v4138 = vpop.f32.mrf.mxu0
          %v4139 = vadd.f32 %v4074, %v4138
          %4140 = vmatmul.f32.gmra.mxu0 %v522
          %v4141 = vpop.f32.mrf.mxu0
          %v4142 = vadd.f32 %v4077, %v4141
          %4143 = vmatmul.f32.gmra.mxu0 %v525
          %v4144 = vpop.f32.mrf.mxu0
          %v4145 = vadd.f32 %v4080, %v4144
          %4146 = vmatmul.f32.gmra.mxu0 %v528
          %v4147 = vpop.f32.mrf.mxu0
          %v4148 = vadd.f32 %v4083, %v4147
          %4149 = vdwg.mxu0
          %v4150 = vld [vmem:[%s2200] sm:$0xf0]
          %v4152 = vrot.slane %v4150, 4
          %v4153 = vsel %vm413, %v4152, 0
          %4155 = vmatpush.msra.mxu0 0.0
          %4156 = vmatpush.msra.mxu0 0.0
          %4157 = vmatpush.msra.mxu0 0.0
          %4158 = vmatpush.msra.mxu0 0.0
          %4159 = vmatpush.msra.mxu0 0.0
          %4160 = vmatpush.msra.mxu0 0.0
          %4161 = vmatpush.msra.mxu0 0.0
          %4162 = vmatpush.msra.mxu0 0.0
          %4163 = vmatpush.msra.mxu0 0.0
          %4164 = vmatpush.msra.mxu0 0.0
          %4165 = vmatpush.msra.mxu0 0.0
          %4166 = vmatpush.msra.mxu0 0.0
          %4167 = vmatpush.msra.mxu0 0.0
          %4168 = vmatpush.msra.mxu0 0.0
          %4169 = vmatpush.msra.mxu0 0.0
          %4170 = vmatpush.msra.mxu0 %v4153
          %4171 = vmatmul.f32.gmra.mxu0 %v366
          %v4172 = vpop.f32.mrf.mxu0
          %v4173 = vadd.f32 0.0, %v4172
          %4174 = vmatmul.f32.gmra.mxu0 %v369
          %v4175 = vpop.f32.mrf.mxu0
          %v4176 = vadd.f32 0.0, %v4175
          %4177 = vmatmul.f32.gmra.mxu0 %v372
          %v4178 = vpop.f32.mrf.mxu0
          %v4179 = vadd.f32 0.0, %v4178
          %4180 = vmatmul.f32.gmra.mxu0 %v375
          %v4181 = vpop.f32.mrf.mxu0
          %v4182 = vadd.f32 0.0, %v4181
          %4183 = vmatmul.f32.gmra.mxu0 %v378
          %v4184 = vpop.f32.mrf.mxu0
          %v4185 = vadd.f32 0.0, %v4184
          %4186 = vmatmul.f32.gmra.mxu0 %v381
          %v4187 = vpop.f32.mrf.mxu0
          %v4188 = vadd.f32 0.0, %v4187
          %4189 = vmatmul.f32.gmra.mxu0 %v384
          %v4190 = vpop.f32.mrf.mxu0
          %v4191 = vadd.f32 0.0, %v4190
          %4192 = vmatmul.f32.gmra.mxu0 %v387
          %v4193 = vpop.f32.mrf.mxu0
          %v4194 = vadd.f32 0.0, %v4193
          %4195 = vmatmul.f32.gmra.mxu0 %v390
          %v4196 = vpop.f32.mrf.mxu0
          %v4197 = vadd.f32 0.0, %v4196
          %4198 = vmatmul.f32.gmra.mxu0 %v393
          %v4199 = vpop.f32.mrf.mxu0
          %v4200 = vadd.f32 0.0, %v4199
          %4201 = vmatmul.f32.gmra.mxu0 %v396
          %v4202 = vpop.f32.mrf.mxu0
          %v4203 = vadd.f32 0.0, %v4202
          %4204 = vmatmul.f32.gmra.mxu0 %v399
          %v4205 = vpop.f32.mrf.mxu0
          %v4206 = vadd.f32 0.0, %v4205
          %4207 = vmatmul.f32.gmra.mxu0 %v402
          %v4208 = vpop.f32.mrf.mxu0
          %v4209 = vadd.f32 0.0, %v4208
          %4210 = vmatmul.f32.gmra.mxu0 %v405
          %v4211 = vpop.f32.mrf.mxu0
          %v4212 = vadd.f32 0.0, %v4211
          %4213 = vmatmul.f32.gmra.mxu0 %v408
          %v4214 = vpop.f32.mrf.mxu0
          %v4215 = vadd.f32 0.0, %v4214
          %4216 = vmatmul.f32.gmra.mxu0 %v411
          %v4217 = vpop.f32.mrf.mxu0
          %v4218 = vadd.f32 0.0, %v4217
          %4219 = vdwg.mxu0
          %v4220 = vadd.f32 %v4103, %v4173
          %v4221 = vadd.f32 %v4106, %v4176
          %v4222 = vadd.f32 %v4109, %v4179
          %v4223 = vadd.f32 %v4112, %v4182
          %v4224 = vadd.f32 %v4115, %v4185
          %v4225 = vadd.f32 %v4118, %v4188
          %v4226 = vadd.f32 %v4121, %v4191
          %v4227 = vadd.f32 %v4124, %v4194
          %v4228 = vadd.f32 %v4127, %v4197
          %v4229 = vadd.f32 %v4130, %v4200
          %v4230 = vadd.f32 %v4133, %v4203
          %v4231 = vadd.f32 %v4136, %v4206
          %v4232 = vadd.f32 %v4139, %v4209
          %v4233 = vadd.f32 %v4142, %v4212
          %v4234 = vadd.f32 %v4145, %v4215
          %v4235 = vadd.f32 %v4148, %v4218
          %v4236 = vadd.f32 %v4220, %v598
          %v4237 = vadd.f32 %v4221, %v599
          %v4238 = vadd.f32 %v4222, %v600
          %v4239 = vadd.f32 %v4223, %v601
          %v4240 = vadd.f32 %v4224, %v602
          %v4241 = vadd.f32 %v4225, %v603
          %v4242 = vadd.f32 %v4226, %v604
          %v4243 = vadd.f32 %v4227, %v605
          %v4244 = vadd.f32 %v4228, %v606
          %v4245 = vadd.f32 %v4229, %v607
          %v4246 = vadd.f32 %v4230, %v608
          %v4247 = vadd.f32 %v4231, %v609
          %v4248 = vadd.f32 %v4232, %v610
          %v4249 = vadd.f32 %v4233, %v611
          %v4250 = vadd.f32 %v4234, %v612
          %v4251 = vadd.f32 %v4235, %v613
          %v4252 = vmax.f32 %v4236, 0.0
          %v4253 = vmax.f32 %v4237, 0.0
          %v4254 = vmax.f32 %v4238, 0.0
          %v4255 = vmax.f32 %v4239, 0.0
          %v4256 = vmax.f32 %v4240, 0.0
          %v4257 = vmax.f32 %v4241, 0.0
          %v4258 = vmax.f32 %v4242, 0.0
          %v4259 = vmax.f32 %v4243, 0.0
          %v4260 = vmax.f32 %v4244, 0.0
          %v4261 = vmax.f32 %v4245, 0.0
          %v4262 = vmax.f32 %v4246, 0.0
          %v4263 = vmax.f32 %v4247, 0.0
          %v4264 = vmax.f32 %v4248, 0.0
          %v4265 = vmax.f32 %v4249, 0.0
          %v4266 = vmax.f32 %v4250, 0.0
          %v4267 = vmax.f32 %v4251, 0.0
          %v4268 = vadd.f32 %v4004, %v4252
          %v4269 = vadd.f32 %v4005, %v4253
          %v4270 = vadd.f32 %v4006, %v4254
          %v4271 = vadd.f32 %v4007, %v4255
          %v4272 = vadd.f32 %v4008, %v4256
          %v4273 = vadd.f32 %v4009, %v4257
          %v4274 = vadd.f32 %v4010, %v4258
          %v4275 = vadd.f32 %v4011, %v4259
          %v4276 = vadd.f32 %v4012, %v4260
          %v4277 = vadd.f32 %v4013, %v4261
          %v4278 = vadd.f32 %v4014, %v4262
          %v4279 = vadd.f32 %v4015, %v4263
          %v4280 = vadd.f32 %v4016, %v4264
          %v4281 = vadd.f32 %v4017, %v4265
          %v4282 = vadd.f32 %v4018, %v4266
          %v4283 = vadd.f32 %v4019, %v4267
          %4284 = vmatpush.msra.mxu0 0.0
          %4285 = vmatpush.msra.mxu0 0.0
          %4286 = vmatpush.msra.mxu0 0.0
          %4287 = vmatpush.msra.mxu0 0.0
          %4288 = vmatpush.msra.mxu0 0.0
          %4289 = vmatpush.msra.mxu0 0.0
          %4290 = vmatpush.msra.mxu0 0.0
          %4291 = vmatpush.msra.mxu0 0.0
          %4292 = vmatpush.msra.mxu0 0.0
          %4293 = vmatpush.msra.mxu0 0.0
          %4294 = vmatpush.msra.mxu0 0.0
          %4295 = vmatpush.msra.mxu0 0.0
          %4296 = vmatpush.msra.mxu0 0.0
          %4297 = vmatpush.msra.mxu0 0.0
          %4298 = vmatpush.msra.mxu0 0.0
          %4299 = vmatpush.msra.mxu0 %v3889
          %4300 = vmatmul.f32.gmra.mxu0 %v679
          %v4301 = vpop.f32.mrf.mxu0
          %v4302 = vadd.f32 0.0, %v4301
          %4303 = vmatmul.f32.gmra.mxu0 %v682
          %v4304 = vpop.f32.mrf.mxu0
          %v4305 = vadd.f32 0.0, %v4304
          %4306 = vmatmul.f32.gmra.mxu0 %v685
          %v4307 = vpop.f32.mrf.mxu0
          %v4308 = vadd.f32 0.0, %v4307
          %4309 = vmatmul.f32.gmra.mxu0 %v688
          %v4310 = vpop.f32.mrf.mxu0
          %v4311 = vadd.f32 0.0, %v4310
          %4312 = vmatmul.f32.gmra.mxu0 %v691
          %v4313 = vpop.f32.mrf.mxu0
          %v4314 = vadd.f32 0.0, %v4313
          %4315 = vmatmul.f32.gmra.mxu0 %v694
          %v4316 = vpop.f32.mrf.mxu0
          %v4317 = vadd.f32 0.0, %v4316
          %4318 = vmatmul.f32.gmra.mxu0 %v697
          %v4319 = vpop.f32.mrf.mxu0
          %v4320 = vadd.f32 0.0, %v4319
          %4321 = vmatmul.f32.gmra.mxu0 %v700
          %v4322 = vpop.f32.mrf.mxu0
          %v4323 = vadd.f32 0.0, %v4322
          %4324 = vmatmul.f32.gmra.mxu0 %v703
          %v4325 = vpop.f32.mrf.mxu0
          %v4326 = vadd.f32 0.0, %v4325
          %4327 = vmatmul.f32.gmra.mxu0 %v706
          %v4328 = vpop.f32.mrf.mxu0
          %v4329 = vadd.f32 0.0, %v4328
          %4330 = vmatmul.f32.gmra.mxu0 %v709
          %v4331 = vpop.f32.mrf.mxu0
          %v4332 = vadd.f32 0.0, %v4331
          %4333 = vmatmul.f32.gmra.mxu0 %v712
          %v4334 = vpop.f32.mrf.mxu0
          %v4335 = vadd.f32 0.0, %v4334
          %4336 = vmatmul.f32.gmra.mxu0 %v715
          %v4337 = vpop.f32.mrf.mxu0
          %v4338 = vadd.f32 0.0, %v4337
          %4339 = vmatmul.f32.gmra.mxu0 %v718
          %v4340 = vpop.f32.mrf.mxu0
          %v4341 = vadd.f32 0.0, %v4340
          %4342 = vmatmul.f32.gmra.mxu0 %v721
          %v4343 = vpop.f32.mrf.mxu0
          %v4344 = vadd.f32 0.0, %v4343
          %4345 = vmatmul.f32.gmra.mxu0 %v724
          %v4346 = vpop.f32.mrf.mxu0
          %v4347 = vadd.f32 0.0, %v4346
          %4348 = vdwg.mxu0
          %4349 = vmatpush.msra.mxu0 0.0
          %4350 = vmatpush.msra.mxu0 0.0
          %4351 = vmatpush.msra.mxu0 0.0
          %4352 = vmatpush.msra.mxu0 0.0
          %4353 = vmatpush.msra.mxu0 0.0
          %4354 = vmatpush.msra.mxu0 0.0
          %4355 = vmatpush.msra.mxu0 0.0
          %4356 = vmatpush.msra.mxu0 0.0
          %4357 = vmatpush.msra.mxu0 0.0
          %4358 = vmatpush.msra.mxu0 0.0
          %4359 = vmatpush.msra.mxu0 0.0
          %4360 = vmatpush.msra.mxu0 0.0
          %4361 = vmatpush.msra.mxu0 0.0
          %4362 = vmatpush.msra.mxu0 0.0
          %4363 = vmatpush.msra.mxu0 0.0
          %4364 = vmatpush.msra.mxu0 %v4153
          %4365 = vmatmul.f32.gmra.mxu0 %v483
          %v4366 = vpop.f32.mrf.mxu0
          %v4367 = vadd.f32 %v4302, %v4366
          %4368 = vmatmul.f32.gmra.mxu0 %v486
          %v4369 = vpop.f32.mrf.mxu0
          %v4370 = vadd.f32 %v4305, %v4369
          %4371 = vmatmul.f32.gmra.mxu0 %v489
          %v4372 = vpop.f32.mrf.mxu0
          %v4373 = vadd.f32 %v4308, %v4372
          %4374 = vmatmul.f32.gmra.mxu0 %v492
          %v4375 = vpop.f32.mrf.mxu0
          %v4376 = vadd.f32 %v4311, %v4375
          %4377 = vmatmul.f32.gmra.mxu0 %v495
          %v4378 = vpop.f32.mrf.mxu0
          %v4379 = vadd.f32 %v4314, %v4378
          %4380 = vmatmul.f32.gmra.mxu0 %v498
          %v4381 = vpop.f32.mrf.mxu0
          %v4382 = vadd.f32 %v4317, %v4381
          %4383 = vmatmul.f32.gmra.mxu0 %v501
          %v4384 = vpop.f32.mrf.mxu0
          %v4385 = vadd.f32 %v4320, %v4384
          %4386 = vmatmul.f32.gmra.mxu0 %v504
          %v4387 = vpop.f32.mrf.mxu0
          %v4388 = vadd.f32 %v4323, %v4387
          %4389 = vmatmul.f32.gmra.mxu0 %v507
          %v4390 = vpop.f32.mrf.mxu0
          %v4391 = vadd.f32 %v4326, %v4390
          %4392 = vmatmul.f32.gmra.mxu0 %v510
          %v4393 = vpop.f32.mrf.mxu0
          %v4394 = vadd.f32 %v4329, %v4393
          %4395 = vmatmul.f32.gmra.mxu0 %v513
          %v4396 = vpop.f32.mrf.mxu0
          %v4397 = vadd.f32 %v4332, %v4396
          %4398 = vmatmul.f32.gmra.mxu0 %v516
          %v4399 = vpop.f32.mrf.mxu0
          %v4400 = vadd.f32 %v4335, %v4399
          %4401 = vmatmul.f32.gmra.mxu0 %v519
          %v4402 = vpop.f32.mrf.mxu0
          %v4403 = vadd.f32 %v4338, %v4402
          %4404 = vmatmul.f32.gmra.mxu0 %v522
          %v4405 = vpop.f32.mrf.mxu0
          %v4406 = vadd.f32 %v4341, %v4405
          %4407 = vmatmul.f32.gmra.mxu0 %v525
          %v4408 = vpop.f32.mrf.mxu0
          %v4409 = vadd.f32 %v4344, %v4408
          %4410 = vmatmul.f32.gmra.mxu0 %v528
          %v4411 = vpop.f32.mrf.mxu0
          %v4412 = vadd.f32 %v4347, %v4411
          %4413 = vdwg.mxu0
          %v4414 = vadd.f32 %v4367, %v598
          %v4415 = vadd.f32 %v4370, %v599
          %v4416 = vadd.f32 %v4373, %v600
          %v4417 = vadd.f32 %v4376, %v601
          %v4418 = vadd.f32 %v4379, %v602
          %v4419 = vadd.f32 %v4382, %v603
          %v4420 = vadd.f32 %v4385, %v604
          %v4421 = vadd.f32 %v4388, %v605
          %v4422 = vadd.f32 %v4391, %v606
          %v4423 = vadd.f32 %v4394, %v607
          %v4424 = vadd.f32 %v4397, %v608
          %v4425 = vadd.f32 %v4400, %v609
          %v4426 = vadd.f32 %v4403, %v610
          %v4427 = vadd.f32 %v4406, %v611
          %v4428 = vadd.f32 %v4409, %v612
          %v4429 = vadd.f32 %v4412, %v613
          %v4430 = vmax.f32 %v4414, 0.0
          %v4431 = vmax.f32 %v4415, 0.0
          %v4432 = vmax.f32 %v4416, 0.0
          %v4433 = vmax.f32 %v4417, 0.0
          %v4434 = vmax.f32 %v4418, 0.0
          %v4435 = vmax.f32 %v4419, 0.0
          %v4436 = vmax.f32 %v4420, 0.0
          %v4437 = vmax.f32 %v4421, 0.0
          %v4438 = vmax.f32 %v4422, 0.0
          %v4439 = vmax.f32 %v4423, 0.0
          %v4440 = vmax.f32 %v4424, 0.0
          %v4441 = vmax.f32 %v4425, 0.0
          %v4442 = vmax.f32 %v4426, 0.0
          %v4443 = vmax.f32 %v4427, 0.0
          %v4444 = vmax.f32 %v4428, 0.0
          %v4445 = vmax.f32 %v4429, 0.0
          %v4446 = vadd.f32 %v4268, %v4430
          %v4447 = vadd.f32 %v4269, %v4431
          %v4448 = vadd.f32 %v4270, %v4432
          %v4449 = vadd.f32 %v4271, %v4433
          %v4450 = vadd.f32 %v4272, %v4434
          %v4451 = vadd.f32 %v4273, %v4435
          %v4452 = vadd.f32 %v4274, %v4436
          %v4453 = vadd.f32 %v4275, %v4437
          %v4454 = vadd.f32 %v4276, %v4438
          %v4455 = vadd.f32 %v4277, %v4439
          %v4456 = vadd.f32 %v4278, %v4440
          %v4457 = vadd.f32 %v4279, %v4441
          %v4458 = vadd.f32 %v4280, %v4442
          %v4459 = vadd.f32 %v4281, %v4443
          %v4460 = vadd.f32 %v4282, %v4444
          %v4461 = vadd.f32 %v4283, %v4445
          %4462 = vadd.xlane.f32.xlu0 %v4446
          %v4463 = vpop.xlane.xlu0 %4462
          %4464 = vadd.xlane.f32.xlu0 %v4447
          %v4465 = vpop.xlane.xlu0 %4464
          %4466 = vadd.xlane.f32.xlu0 %v4448
          %v4467 = vpop.xlane.xlu0 %4466
          %4468 = vadd.xlane.f32.xlu0 %v4449
          %v4469 = vpop.xlane.xlu0 %4468
          %4470 = vadd.xlane.f32.xlu0 %v4450
          %v4471 = vpop.xlane.xlu0 %4470
          %4472 = vadd.xlane.f32.xlu0 %v4451
          %v4473 = vpop.xlane.xlu0 %4472
          %4474 = vadd.xlane.f32.xlu0 %v4452
          %v4475 = vpop.xlane.xlu0 %4474
          %4476 = vadd.xlane.f32.xlu0 %v4453
          %v4477 = vpop.xlane.xlu0 %4476
          %4478 = vadd.xlane.f32.xlu0 %v4454
          %v4479 = vpop.xlane.xlu0 %4478
          %4480 = vadd.xlane.f32.xlu0 %v4455
          %v4481 = vpop.xlane.xlu0 %4480
          %4482 = vadd.xlane.f32.xlu0 %v4456
          %v4483 = vpop.xlane.xlu0 %4482
          %4484 = vadd.xlane.f32.xlu0 %v4457
          %v4485 = vpop.xlane.xlu0 %4484
          %4486 = vadd.xlane.f32.xlu0 %v4458
          %v4487 = vpop.xlane.xlu0 %4486
          %4488 = vadd.xlane.f32.xlu0 %v4459
          %v4489 = vpop.xlane.xlu0 %4488
          %4490 = vadd.xlane.f32.xlu0 %v4460
          %v4491 = vpop.xlane.xlu0 %4490
          %4492 = vadd.xlane.f32.xlu0 %v4461
          %v4493 = vpop.xlane.xlu0 %4492
          %v4494 = vlaneseq
          %v4495 = vand.u32 %v4494, 127
          %v4496 = vstv %s299
          %vm4497 = vcmp.eq.s32.totalorder %v4495, %v4496
          %v4498 = vsel %vm4497, 1, 0
          %v4499 = vcvt.s32.f32 %v4498
          %v4500 = vmul.f32 %v4463, %v4499
          %v4501 = vmul.f32 %v4465, %v4499
          %v4502 = vmul.f32 %v4467, %v4499
          %v4503 = vmul.f32 %v4469, %v4499
          %v4504 = vmul.f32 %v4471, %v4499
          %v4505 = vmul.f32 %v4473, %v4499
          %v4506 = vmul.f32 %v4475, %v4499
          %v4507 = vmul.f32 %v4477, %v4499
          %v4508 = vmul.f32 %v4479, %v4499
          %v4509 = vmul.f32 %v4481, %v4499
          %v4510 = vmul.f32 %v4483, %v4499
          %v4511 = vmul.f32 %v4485, %v4499
          %v4512 = vmul.f32 %v4487, %v4499
          %v4513 = vmul.f32 %v4489, %v4499
          %v4514 = vmul.f32 %v4491, %v4499
          %v4515 = vmul.f32 %v4493, %v4499
          %v4516 = vadd.f32 %v304, %v4500
          %v4517 = vadd.f32 %v305, %v4501
          %v4518 = vadd.f32 %v306, %v4502
          %v4519 = vadd.f32 %v307, %v4503
          %v4520 = vadd.f32 %v308, %v4504
          %v4521 = vadd.f32 %v309, %v4505
          %v4522 = vadd.f32 %v310, %v4506
          %v4523 = vadd.f32 %v311, %v4507
          %v4524 = vadd.f32 %v312, %v4508
          %v4525 = vadd.f32 %v313, %v4509
          %v4526 = vadd.f32 %v314, %v4510
          %v4527 = vadd.f32 %v315, %v4511
          %v4528 = vadd.f32 %v316, %v4512
          %v4529 = vadd.f32 %v317, %v4513
          %v4530 = vadd.f32 %v318, %v4514
          %v4531 = vadd.f32 %v319, %v4515
        $region57: #{tpu_custom_call.1} parent=47 // loop_footer
          %s303 = sadd.s32 1, %s299
        $region58: #{tpu_custom_call.1} parent=47 // loop_footer_branch
          %298 = sbr.rel target = $region54
        $region59: #{tpu_custom_call.1} parent=47 // loop_exit
          _
        %v4532 = vld [vmem:[%s5] sm:$0xff]
        %v4533 = vld [vmem:[%s5 + $0x8] sm:$0xff]
        %v4534 = vld [vmem:[%s5 + $0x10] sm:$0xff]
        %v4535 = vld [vmem:[%s5 + $0x18] sm:$0xff]
        %v4536 = vld [vmem:[%s5 + $0x20] sm:$0xff]
        %v4537 = vld [vmem:[%s5 + $0x28] sm:$0xff]
        %v4538 = vld [vmem:[%s5 + $0x30] sm:$0xff]
        %v4539 = vld [vmem:[%s5 + $0x38] sm:$0xff]
        %v4540 = vld [vmem:[%s5 + $0x40] sm:$0xff]
        %v4541 = vld [vmem:[%s5 + $0x48] sm:$0xff]
        %v4542 = vld [vmem:[%s5 + $0x50] sm:$0xff]
        %v4543 = vld [vmem:[%s5 + $0x58] sm:$0xff]
        %v4544 = vld [vmem:[%s5 + $0x60] sm:$0xff]
        %v4545 = vld [vmem:[%s5 + $0x68] sm:$0xff]
        %v4546 = vld [vmem:[%s5 + $0x70] sm:$0xff]
        %v4547 = vld [vmem:[%s5 + $0x78] sm:$0xff]
        %4548 = vxpose.xlu0.b32.start [1/16] %v304, 128
        %4549 = vxpose.xlu0.b32.cont [2/16] %v305, 128
        %4550 = vxpose.xlu0.b32.cont [3/16] %v306, 128
        %4551 = vxpose.xlu0.b32.cont [4/16] %v307, 128
        %4552 = vxpose.xlu0.b32.cont [5/16] %v308, 128
        %4553 = vxpose.xlu0.b32.cont [6/16] %v309, 128
        %4554 = vxpose.xlu0.b32.cont [7/16] %v310, 128
        %4555 = vxpose.xlu0.b32.cont [8/16] %v311, 128
        %4556 = vxpose.xlu0.b32.cont [9/16] %v312, 128
        %4557 = vxpose.xlu0.b32.cont [10/16] %v313, 128
        %4558 = vxpose.xlu0.b32.cont [11/16] %v314, 128
        %4559 = vxpose.xlu0.b32.cont [12/16] %v315, 128
        %4560 = vxpose.xlu0.b32.cont [13/16] %v316, 128
        %4561 = vxpose.xlu0.b32.cont [14/16] %v317, 128
        %4562 = vxpose.xlu0.b32.cont [15/16] %v318, 128
        %4563 = vxpose.xlu0.b32.end [16/16] %v319, 128
        %v4564 = vpop.trf.xlu0
        %v4565 = vpop.trf.xlu0
        %v4566 = vpop.trf.xlu0
        %v4567 = vpop.trf.xlu0
        %v4568 = vpop.trf.xlu0
        %v4569 = vpop.trf.xlu0
        %v4570 = vpop.trf.xlu0
        %v4571 = vpop.trf.xlu0
        %v4572 = vpop.trf.xlu0
        %v4573 = vpop.trf.xlu0
        %v4574 = vpop.trf.xlu0
        %v4575 = vpop.trf.xlu0
        %v4576 = vpop.trf.xlu0
        %v4577 = vpop.trf.xlu0
        %v4578 = vpop.trf.xlu0
        %v4579 = vpop.trf.xlu0
        %4580 = vmatpush.msra.mxu0 %v4547
        %4581 = vmatpush.msra.mxu0 %v4546
        %4582 = vmatpush.msra.mxu0 %v4545
        %4583 = vmatpush.msra.mxu0 %v4544
        %4584 = vmatpush.msra.mxu0 %v4543
        %4585 = vmatpush.msra.mxu0 %v4542
        %4586 = vmatpush.msra.mxu0 %v4541
        %4587 = vmatpush.msra.mxu0 %v4540
        %4588 = vmatpush.msra.mxu0 %v4539
        %4589 = vmatpush.msra.mxu0 %v4538
        %4590 = vmatpush.msra.mxu0 %v4537
        %4591 = vmatpush.msra.mxu0 %v4536
        %4592 = vmatpush.msra.mxu0 %v4535
        %4593 = vmatpush.msra.mxu0 %v4534
        %4594 = vmatpush.msra.mxu0 %v4533
        %4595 = vmatpush.msra.mxu0 %v4532
        %4596 = vmatmul.f32.gmra.mxu0 %v4564
        %v4597 = vpop.f32.mrf.mxu0
        %v4598 = vadd.f32 0.0, %v4597
        %4599 = vdwg.mxu0
        %v4600 = vmul.f32 %v4598, 0.00048828125
        %v4601 = vld [vmem:[%s6] sm:$0x1]
        %v4603 = vperm.slane %v4601, 0
        %v4605 = vadd.f32 %v4600, %v4603
        %4606 = vst [vmem:[%s296] sm:$0xff] %v4605
        %s4607 = sand.u32 %s184, 1
        %s4608 = scalar_lea.sflag [#allocation4], %s4607
        %s4609 = sand.u32 %s184, 1
        %s4610 = smul.addr %s4609, 8
        %s4611 = scalar_lea.vmem [#allocation5], %s4610
        // Predicated region
        $region60: #{tpu_custom_call.1} parent=47 // pred_check
          %p4612 = pneg %p194
        $region61: #{tpu_custom_call.1} parent=47 // pred_check_branch
          %4614 = sbr.rel (%p4612) target = $region63
        $region62: #{tpu_custom_call.1} parent=47 // pred_region
          %4616 = vsyncadd %s4608, 0
          %s4617 = smul.addr %s24, 8
          %s4618 = scalar_lea.hbm %s7, %s4617
          %s4620 = sshll.u32 %s4611, 4
          %s4621 = int_to_ptr.vmem [resolvable:$true] %s4620
          %s4622 = sshll.u32 %s4618, 4
          %s4623 = int_to_ptr.hbm [resolvable:$true] %s4622
          %4625 = dma.vmem_to_hbm [thread:$0]  %s4621, 128, %s4623, %s4608
        $region63: #{tpu_custom_call.1} parent=47 // pred_fallthru
          _
      $region48: #{tpu_custom_call.1} parent=5 // pred_fallthru
        _
      %p4626 = scmp.le.s32.totalorder 2, %s19
      // Predicated region
      $region64: #{tpu_custom_call.1} parent=5 // pred_check
        %p4627 = pneg %p4626
      $region65: #{tpu_custom_call.1} parent=5 // pred_check_branch
        %4629 = sbr.rel (%p4627) target = $region67
      $region66: #{tpu_custom_call.1} parent=5 // pred_region
        %s4630 = ssub.s32 %s19, 2
        // Predicated region
        $region68: #{tpu_custom_call.1} parent=66 // pred_check
          %p4631 = pneg %p200
        $region69: #{tpu_custom_call.1} parent=66 // pred_check_branch
          %4633 = sbr.rel (%p4631) target = $region71
        $region70: #{tpu_custom_call.1} parent=66 // pred_region
          %s4634 = sand.u32 %s185, 1
          %s4635 = scalar_lea.sflag [#allocation4], %s4634
          %s4636 = sand.u32 %s185, 1
          %s4637 = smul.addr %s4636, 8
          %s4638 = scalar_lea.vmem [#allocation5], %s4637
          %4640 = dma.done %s4635, 128
        $region71: #{tpu_custom_call.1} parent=66 // pred_fallthru
          _
      $region67: #{tpu_custom_call.1} parent=5 // pred_fallthru
        _
    $region6: #{tpu_custom_call.1} parent=1 // loop_footer
      %s23 = sadd.s32 1, %s19
    $region7: #{tpu_custom_call.1} parent=1 // loop_footer_branch
      %18 = sbr.rel target = $region3
    $region8: #{tpu_custom_call.1} parent=1 // loop_exit
      _
    %4641 = vsyncpa [#allocation3], 1
    %s4642 = scalar_lea.sflag [#allocation3], 1
    %4643 = vsyncpa %s4642, 1
    %4644 = vsyncpa [#allocation4], 1
    %s4645 = scalar_lea.sflag [#allocation4], 1
    %4646 = vsyncpa %s4645, 1

</llo_original>
